<compile_context>
chip_gen: v5e
topology: v5e:2x2
jax: 0.10.0
libtpu: 0.0.40
codegen_flags: <defaults>
</compile_context>

<pallas_src>
import functools

import jax
import jax.numpy as jnp
from jax import lax
from jax.experimental import pallas as pl
from jax.experimental.pallas import tpu as pltpu


def _tpu_generation():
    """Best-effort TPU generation sniffing: 'v4'/'v5'/'v6'/'v7' or None."""
    try:
        kind = jax.devices()[0].device_kind.lower()
    except Exception:
        return None
    for tag in ("v7", "v6", "v5", "v4"):
        if tag in kind:
            return tag
    if "tpu7" in kind:
        return "v7"
    return None


def _pick_query_tile(hw, target):
    """Largest divisor of hw that is a multiple of 128 and <= target."""
    if hw < 128 or hw % 128 != 0:
        # TODO(synk): sub-128 HW needs a masked/padded store path; fall back to
        # a single full-row block (correct, lane-masked stores).
        return hw
    tq = min(target, hw)
    tq -= tq % 128
    while hw % tq != 0:
        tq -= 128
    return tq


def _self_attn_kernel(x_ref, wqkv_ref, bqkv_ref, gamma_ref, o_ref, qkv_scr,
                      *, exp_in_bf16):
    # x_ref:     (1, C, HW)   f32   NCHW flattened; residual read from here in f32
    # wqkv_ref:  (CQKV, C)    bf16  fused [Wq; Wk; Wv] (Cqk padded to mult. of 16)
    # bqkv_ref:  (CQKV, 1)    f32   fused [bq; 0; bv]  (bk cancels under softmax)
    # gamma_ref: (1,)         f32   SMEM scalar
    # o_ref:     (1, C, TQ)   out dtype (bf16 in the demo)
    # qkv_scr:   (CQKV, HW)   bf16  VMEM scratch, persists across query tiles
    qt = pl.program_id(1)
    C = x_ref.shape[1]
    HW = x_ref.shape[2]
    TQ = o_ref.shape[2]
    cqk = (wqkv_ref.shape[0] - C) // 2
    n_chunks = HW // TQ

    # ---- fused QKV projection, once per batch element (qt == 0 runs first) --
    # Chunked over HW so the f32 accumulator transient is only (CQKV, TQ).
    @pl.when(qt == 0)
    def _():
        def project_chunk(c, carry):
            c0 = pl.multiple_of(c * TQ, TQ)
            xc = x_ref[0, :, pl.ds(c0, TQ)].astype(jnp.bfloat16)       # (C, TQ)
            qkv_c = jnp.dot(wqkv_ref[...], xc,
                            preferred_element_type=jnp.float32)        # (CQKV, TQ) f32
            qkv_c = qkv_c + bqkv_ref[...]
            qkv_scr[:, pl.ds(c0, TQ)] = qkv_c.astype(jnp.bfloat16)
            return carry
        lax.fori_loop(0, n_chunks, project_chunk, 0, unroll=n_chunks <= 8)

    # ---- scores for this query tile:  s[i, j] = q_i . k_j -------------------
    q0 = pl.multiple_of(qt * TQ, TQ)
    q_t = qkv_scr[0:cqk, pl.ds(q0, TQ)]                                 # (cqk, TQ) bf16
    k_t = qkv_scr[cqk:2 * cqk, :]                                       # (cqk, HW) bf16
    v_t = qkv_scr[2 * cqk:, :]                                          # (C,  HW)  bf16
    # Contract axis 0 of both operands -> no materialized q transpose.
    s = lax.dot_general(q_t, k_t, (((0,), (0,)), ((), ())),
                        preferred_element_type=jnp.float32)             # (TQ, HW) f32

    # ---- unnormalized softmax; normalization folded into the (C,TQ) epilogue
    m = jnp.max(s, axis=-1, keepdims=True)                              # (TQ, 1)
    if exp_in_bf16:
        # v6e/v7x: bf16 EUP -> ~2x exp throughput, half the (TQ,HW) footprint.
        p_mxu = jnp.exp((s - m).astype(jnp.bfloat16))                   # (TQ, HW) bf16
        l = jnp.sum(p_mxu, axis=-1, keepdims=True, dtype=jnp.float32)   # (TQ, 1) f32
    else:
        # v5e: no bf16 VPU/EUP -- keep exp in f32, cast only for the MXU.
        p = jnp.exp(s - m)                                              # (TQ, HW) f32
        l = jnp.sum(p, axis=-1, keepdims=True)
        p_mxu = p.astype(jnp.bfloat16)

    # out_u[c, i] = sum_j v[c, j] * p[i, j]  (contract last axes; no transpose)
    out_u = lax.dot_general(v_t, p_mxu, (((1,), (1,)), ((), ())),
                            preferred_element_type=jnp.float32)         # (C, TQ) f32

    # Epilogue: softmax denominator and gamma applied on (C, TQ) (not (TQ, HW)).
    scale = gamma_ref[0] * pl.reciprocal(l, approx=True)                # (TQ, 1)
    x_tile = x_ref[0, :, pl.ds(q0, TQ)]                                 # (C, TQ) f32 residual
    o_ref[0] = (out_u * scale.reshape(1, TQ) + x_tile).astype(o_ref.dtype)


def self_attention(x_nchw, wq, bq, wk, bk, wv, bv, gamma, *,
                   q_tile=None, out_dtype=None):
    """SAGAN self-attention forward.

    x_nchw: (B, C, H, W).  wq/wk: (Cqk, C), wv: (C, C) torch 1x1-conv layout;
    bq/bk/bv matching biases; gamma: scalar.  Returns (B, C, H, W).
    """
    B, C, H, W = x_nchw.shape
    HW = H * W
    Cqk = wq.shape[0]
    out_dt = jnp.dtype(out_dtype) if out_dtype is not None else jnp.dtype(x_nchw.dtype)

    gen = _tpu_generation()
    if q_tile is None:
        # v6e/v7x MXU is 256-wide -> TQ=256 fills M (scores) / N (PV);
        # v5e's 128x128 MXU is already full at 128 (bigger only inflates VMEM).
        q_tile = 128 if gen in ("v4", "v5") else 256
    exp_in_bf16 = gen in ("v6", "v7")   # v5e has no bf16 EUP/VPU

    TQ = _pick_query_tile(HW, q_tile)
    n_qt = HW // TQ

    # Pad Cqk up to a bf16 sublane tile (16 rows) so the q/k slices of the
    # fused QKV scratch are tile-aligned (no hidden relayout copies per tile).
    cqk_pad = max(16, -(-Cqk // 16) * 16)
    rpad = cqk_pad - Cqk
    wq_p = jnp.pad(wq, ((0, rpad), (0, 0)))
    wk_p = jnp.pad(wk, ((0, rpad), (0, 0)))
    bq_p = jnp.pad(bq, ((0, rpad),)).astype(jnp.float32)
    CQKV = 2 * cqk_pad + C

    # NCHW -> (B, C, HW): pure reshape.  Kept in f32 so the residual path is
    # exact; the kernel casts to bf16 only for the QKV matmul.
    x = x_nchw.reshape(B, C, HW).astype(jnp.float32)
    w_qkv = jnp.concatenate([wq_p, wk_p, wv], axis=0).astype(jnp.bfloat16)
    # k-bias dropped: (q_i + bq).bk is constant along the softmax axis.
    b_qkv = jnp.concatenate(
        [bq_p, jnp.zeros((cqk_pad,), jnp.float32), bv.astype(jnp.float32)]
    ).reshape(CQKV, 1)
    g = jnp.asarray(gamma, jnp.float32).reshape(1)

    # VMEM budget (bytes) with headroom -- never request 100% of a v7x TC.
    est = (2 * C * HW * 4                       # x block (f32, double-buffered)
           + CQKV * C * 2                       # fused weights (single-buffered)
           + 2 * CQKV * 128 * 4                 # bias (lane-padded)
           + CQKV * HW * 2                      # bf16 QKV scratch
           + 2 * C * TQ * out_dt.itemsize       # output blocks
           + 2 * TQ * HW * 4                    # f32 score/exp temps (upper bound)
           + CQKV * TQ * 4)                     # per-chunk f32 QKV transient
    cap = (48 if gen == "v7" else 100) * 1024 * 1024
    vmem_limit = int(min(cap, max(16 * 1024 * 1024, est * 5 // 4)))

    def build(single_buffer_consts):
        const_kw = {}
        if single_buffer_consts:
            # Constant blocks never change -> no need for double buffering.
            const_kw = dict(pipeline_mode=pl.Buffered(1))
        grid_spec = pltpu.PrefetchScalarGridSpec(
            num_scalar_prefetch=0,
            grid=(B, n_qt),
            in_specs=[
                pl.BlockSpec((1, C, HW), lambda b, q: (b, 0, 0)),     # x, whole image
                pl.BlockSpec((CQKV, C), lambda b, q: (0, 0), **const_kw),
                pl.BlockSpec((CQKV, 1), lambda b, q: (0, 0), **const_kw),
                pl.BlockSpec(memory_space=pltpu.MemorySpace.SMEM),    # gamma scalar
            ],
            out_specs=pl.BlockSpec((1, C, TQ), lambda b, q: (b, 0, q)),
            scratch_shapes=[pltpu.VMEM((CQKV, HW), jnp.bfloat16)],
        )
        return pl.pallas_call(
            functools.partial(_self_attn_kernel, exp_in_bf16=exp_in_bf16),
            out_shape=jax.ShapeDtypeStruct((B, C, HW), out_dt),
            grid_spec=grid_spec,
            compiler_params=pltpu.CompilerParams(
                # b: parallel; qt: arbitrary (QKV scratch written at qt==0 is
                # reused by the later query tiles of the same b).
                dimension_semantics=("parallel", "arbitrary"),
                vmem_limit_bytes=vmem_limit),
        )

    try:
        out = jax.block_until_ready(build(True)(x, w_qkv, b_qkv, g))
    except Exception:
        # pl.Buffered(1) single-buffering not accepted on this jax version:
        # fall back to default double-buffered constant blocks (same math).
        out = build(False)(x, w_qkv, b_qkv, g)

    # (B, C, HW) is already the NCHW flat layout: reshape only, no transpose.
    return out.reshape(B, C, H, W)


def self_attention_ref(x_nchw, wq, bq, wk, bk, wv, bv, gamma):
    """Pure-JAX f32 reference mirroring the PyTorch forward (NCHW, 1x1 convs)."""
    B, C, H, W = x_nchw.shape
    HW = H * W
    xf = x_nchw.reshape(B, C, HW).astype(jnp.float32)                  # (B, C, HW)
    q = jnp.einsum('oc,bcp->bop', wq, xf) + bq[None, :, None]          # (B, Cqk, HW)
    k = jnp.einsum('oc,bcp->bop', wk, xf) + bk[None, :, None]
    v = jnp.einsum('oc,bcp->bop', wv, xf) + bv[None, :, None]          # (B, C, HW)
    attn = jax.nn.softmax(jnp.einsum('bcq,bck->bqk', q, k), axis=-1)   # (B, HWq, HWk)
    out = jnp.einsum('bck,bqk->bcq', v, attn)                          # (B, C, HW)
    return gamma * out.reshape(B, C, H, W) + x_nchw


if __name__ == "__main__":
    # HW = 512 exercises the query-tiled path on every generation
    # (4 tiles at TQ=128 on v5e, 2 tiles at TQ=256 on v6e/v7x).
    B, C, H, W = 2, 16, 32, 16
    Cqk = C // 8

    key = jax.random.PRNGKey(0)
    kx, k1, k2, k3, k4, k5, k6 = jax.random.split(key, 7)

    x = jax.random.normal(kx, (B, C, H, W), jnp.float32)

    # Conv2d(kernel_size=1) params (torch layout (C_out, C_in), k-dims squeezed).
    wq = 0.1 * jax.random.normal(k1, (Cqk, C), jnp.float32)
    bq = 0.1 * jax.random.normal(k2, (Cqk,), jnp.float32)
    wk = 0.1 * jax.random.normal(k3, (Cqk, C), jnp.float32)
    bk = 0.1 * jax.random.normal(k4, (Cqk,), jnp.float32)
    wv = 0.1 * jax.random.normal(k5, (C, C), jnp.float32)
    bv = 0.1 * jax.random.normal(k6, (C,), jnp.float32)
    # Module inits gamma to 0 (out == x trivially); use nonzero so the
    # attention path is actually exercised.
    gamma = jnp.float32(0.5)

    y = self_attention(x, wq, bq, wk, bk, wv, bv, gamma, out_dtype=jnp.bfloat16)
    y = jax.block_until_ready(y)

    y_ref = self_attention_ref(x, wq, bq, wk, bk, wv, bv, gamma)
    assert y.shape == (B, C, H, W) and y.dtype == jnp.bfloat16
    yf = y.astype(jnp.float32)
    assert bool(jnp.all(jnp.isfinite(yf)))
    # bf16 MXU operands, bf16 output store, approx reciprocal vs f32 reference.
    err = jnp.max(jnp.abs(yf - y_ref))
    assert jnp.allclose(yf, y_ref, atol=3e-2, rtol=3e-2), f"max abs err {err}"

    print("KERNEL_OK")
</pallas_src>

<mosaic_0001>
module attributes {stable_mosaic.version = 11 : i64} {
  func.func @_self_attn_kernel(%arg0: i32, %arg1: i32, %arg2: memref<1x16x512xf32, #tpu.memory_space<vmem>>, %arg3: memref<48x16xbf16, #tpu.memory_space<vmem>>, %arg4: memref<48x1xf32, #tpu.memory_space<vmem>>, %arg5: memref<1xf32, #tpu.memory_space<smem>>, %arg6: memref<1x16x256xbf16, #tpu.memory_space<vmem>>, %arg7: memref<48x512xbf16, #tpu.memory_space<vmem>>) attributes {dimension_semantics = [#tpu.dimension_semantics<parallel>, #tpu.dimension_semantics<arbitrary>], iteration_bounds = array<i64: 2, 2>, scalar_prefetch = 0 : i64, scratch_operands = 1 : i64, tpu.core_type = #tpu.core_type<tc>, window_params = [{transform_indices = @transform_0, window_bounds = array<i64: 1, 16, 512>}, {pipeline_mode = #tpu.pipeline_mode<synchronous>, transform_indices = @transform_1, window_bounds = array<i64: 48, 16>}, {pipeline_mode = #tpu.pipeline_mode<synchronous>, transform_indices = @transform_2, window_bounds = array<i64: 48, 1>}, {transform_indices = @transform_3, window_bounds = array<i64: 1>}, {transform_indices = @transform_4, window_bounds = array<i64: 1, 16, 256>}]} {
    %c0_i32 = arith.constant 0 : i32
    %0 = arith.cmpi eq, %arg1, %c0_i32 : i32
    %1 = arith.extui %0 : i1 to i32
    %c0_i32_0 = arith.constant 0 : i32
    %2 = arith.cmpi ne, %1, %c0_i32_0 : i32
    scf.if %2 {
      %c0_i32_12 = arith.constant 0 : i32
      %c256_i32_13 = arith.constant 256 : i32
      %34 = arith.muli %c0_i32_12, %c256_i32_13 : i32
      %35 = tpu.assume_multiple %34, 256 : i32
      %c0_14 = arith.constant 0 : index
      %c0_15 = arith.constant 0 : index
      %36 = arith.index_cast %35 : i32 to index
      %37 = vector.load %arg2[%c0_14, %c0_15, %36] : memref<1x16x512xf32, #tpu.memory_space<vmem>>, vector<1x16x256xf32>
      %38 = vector.shape_cast %37 : vector<1x16x256xf32> to vector<16x256xf32>
      %39 = arith.truncf %38 : vector<16x256xf32> to vector<16x256xbf16>
      %c0_16 = arith.constant 0 : index
      %c0_17 = arith.constant 0 : index
      %40 = vector.load %arg3[%c0_16, %c0_17] : memref<48x16xbf16, #tpu.memory_space<vmem>>, vector<48x16xbf16>
      %cst_18 = arith.constant dense<0.000000e+00> : vector<48x256xf32>
      %41 = tpu.matmul %40, %39, %cst_18 {dimension_numbers = #tpu.dot_dimension_numbers<[1], [0], [0], [1], [0, 0, 1, 1], [], []>} : vector<48x16xbf16>, vector<16x256xbf16>, vector<48x256xf32> -> vector<48x256xf32>
      %c0_19 = arith.constant 0 : index
      %c0_20 = arith.constant 0 : index
      %42 = vector.load %arg4[%c0_19, %c0_20] : memref<48x1xf32, #tpu.memory_space<vmem>>, vector<48x1xf32>
      %43 = vector.broadcast %42 : vector<48x1xf32> to vector<48x256xf32>
      %44 = arith.addf %41, %43 : vector<48x256xf32>
      %45 = arith.truncf %44 : vector<48x256xf32> to vector<48x256xbf16>
      %c0_21 = arith.constant 0 : index
      %46 = arith.index_cast %35 : i32 to index
      %47 = vector.load %arg7[%c0_21, %46] : memref<48x512xbf16, #tpu.memory_space<vmem>>, vector<48x256xbf16>
      tpu.vector_store %arg7[%c0_21, %46], %45 {strides = array<i32>} : memref<48x512xbf16, #tpu.memory_space<vmem>>, vector<48x256xbf16>,
      %c1_i32 = arith.constant 1 : i32
      %c256_i32_22 = arith.constant 256 : i32
      %48 = arith.muli %c1_i32, %c256_i32_22 : i32
      %49 = tpu.assume_multiple %48, 256 : i32
      %c0_23 = arith.constant 0 : index
      %c0_24 = arith.constant 0 : index
      %50 = arith.index_cast %49 : i32 to index
      %51 = vector.load %arg2[%c0_23, %c0_24, %50] : memref<1x16x512xf32, #tpu.memory_space<vmem>>, vector<1x16x256xf32>
      %52 = vector.shape_cast %51 : vector<1x16x256xf32> to vector<16x256xf32>
      %53 = arith.truncf %52 : vector<16x256xf32> to vector<16x256xbf16>
      %c0_25 = arith.constant 0 : index
      %c0_26 = arith.constant 0 : index
      %54 = vector.load %arg3[%c0_25, %c0_26] : memref<48x16xbf16, #tpu.memory_space<vmem>>, vector<48x16xbf16>
      %cst_27 = arith.constant dense<0.000000e+00> : vector<48x256xf32>
      %55 = tpu.matmul %54, %53, %cst_27 {dimension_numbers = #tpu.dot_dimension_numbers<[1], [0], [0], [1], [0, 0, 1, 1], [], []>} : vector<48x16xbf16>, vector<16x256xbf16>, vector<48x256xf32> -> vector<48x256xf32>
      %c0_28 = arith.constant 0 : index
      %c0_29 = arith.constant 0 : index
      %56 = vector.load %arg4[%c0_28, %c0_29] : memref<48x1xf32, #tpu.memory_space<vmem>>, vector<48x1xf32>
      %57 = vector.broadcast %56 : vector<48x1xf32> to vector<48x256xf32>
      %58 = arith.addf %55, %57 : vector<48x256xf32>
      %59 = arith.truncf %58 : vector<48x256xf32> to vector<48x256xbf16>
      %c0_30 = arith.constant 0 : index
      %60 = arith.index_cast %49 : i32 to index
      %61 = vector.load %arg7[%c0_30, %60] : memref<48x512xbf16, #tpu.memory_space<vmem>>, vector<48x256xbf16>
      tpu.vector_store %arg7[%c0_30, %60], %59 {strides = array<i32>} : memref<48x512xbf16, #tpu.memory_space<vmem>>, vector<48x256xbf16>,
      %c2_i32 = arith.constant 2 : i32
    } else {
    }
    %c256_i32 = arith.constant 256 : i32
    %3 = arith.muli %arg1, %c256_i32 : i32
    %4 = tpu.assume_multiple %3, 256 : i32
    %c0 = arith.constant 0 : index
    %5 = arith.index_cast %4 : i32 to index
    %6 = vector.load %arg7[%c0, %5] : memref<48x512xbf16, #tpu.memory_space<vmem>>, vector<16x256xbf16>
    %c16 = arith.constant 16 : index
    %c0_1 = arith.constant 0 : index
    %7 = vector.load %arg7[%c16, %c0_1] : memref<48x512xbf16, #tpu.memory_space<vmem>>, vector<16x512xbf16>
    %c32 = arith.constant 32 : index
    %c0_2 = arith.constant 0 : index
    %8 = vector.load %arg7[%c32, %c0_2] : memref<48x512xbf16, #tpu.memory_space<vmem>>, vector<16x512xbf16>
    %cst = arith.constant dense<0.000000e+00> : vector<256x512xf32>
    %9 = tpu.matmul %6, %7, %cst {dimension_numbers = #tpu.dot_dimension_numbers<[0], [0], [1], [1], [0, 1, 1, 1], [], []>} : vector<16x256xbf16>, vector<16x512xbf16>, vector<256x512xf32> -> vector<256x512xf32>
    %cst_3 = arith.constant dense<0xFF800000> : vector<256xf32>
    %10 = vector.multi_reduction <maximumf>, %9, %cst_3 [1] : vector<256x512xf32> to vector<256xf32>
    %11 = vector.shape_cast %10 : vector<256xf32> to vector<256x1xf32>
    %12 = vector.broadcast %11 : vector<256x1xf32> to vector<256x512xf32>
    %13 = arith.subf %9, %12 : vector<256x512xf32>
    %14 = math.exp %13 : vector<256x512xf32>
    %cst_4 = arith.constant dense<0.000000e+00> : vector<256xf32>
    %15 = vector.multi_reduction <add>, %14, %cst_4 [1] : vector<256x512xf32> to vector<256xf32>
    %16 = vector.shape_cast %15 : vector<256xf32> to vector<256x1xf32>
    %17 = arith.truncf %14 : vector<256x512xf32> to vector<256x512xbf16>
    %cst_5 = arith.constant dense<0.000000e+00> : vector<16x256xf32>
    %18 = tpu.matmul %8, %17, %cst_5 {dimension_numbers = #tpu.dot_dimension_numbers<[1], [1], [0], [0], [0, 0, 1, 0], [], []>} : vector<16x512xbf16>, vector<256x512xbf16>, vector<16x256xf32> -> vector<16x256xf32>
    %c0_6 = arith.constant 0 : index
    %19 = memref.load %arg5[%c0_6] : memref<1xf32, #tpu.memory_space<smem>>
    %20 = tpu.reciprocal %16 {approx = true} : vector<256x1xf32> -> vector<256x1xf32>
    %21 = vector.broadcast %19 : f32 to vector<256x1xf32>
    %22 = arith.mulf %21, %20 : vector<256x1xf32>
    %c0_7 = arith.constant 0 : index
    %c0_8 = arith.constant 0 : index
    %23 = arith.index_cast %4 : i32 to index
    %24 = vector.load %arg2[%c0_7, %c0_8, %23] : memref<1x16x512xf32, #tpu.memory_space<vmem>>, vector<1x16x256xf32>
    %25 = vector.shape_cast %24 : vector<1x16x256xf32> to vector<16x256xf32>
    %26 = vector.shape_cast %22 : vector<256x1xf32> to vector<1x256xf32>
    %27 = vector.broadcast %26 : vector<1x256xf32> to vector<16x256xf32>
    %28 = arith.mulf %18, %27 : vector<16x256xf32>
    %29 = arith.addf %28, %25 : vector<16x256xf32>
    %30 = arith.truncf %29 : vector<16x256xf32> to vector<16x256xbf16>
    %c0_9 = arith.constant 0 : index
    %c0_10 = arith.constant 0 : index
    %c0_11 = arith.constant 0 : index
    %31 = vector.load %arg6[%c0_9, %c0_10, %c0_11] : memref<1x16x256xbf16, #tpu.memory_space<vmem>>, vector<1x16x256xbf16>
    %32 = vector.shape_cast %31 : vector<1x16x256xbf16> to vector<16x256xbf16>
    %33 = vector.shape_cast %30 : vector<16x256xbf16> to vector<1x16x256xbf16>
    tpu.vector_store %arg6[%c0_9, %c0_10, %c0_11], %33 {strides = array<i32>} : memref<1x16x256xbf16, #tpu.memory_space<vmem>>, vector<1x16x256xbf16>,
    return
  }
  func.func @transform_0(%arg0: i32, %arg1: i32) -> (i32, i32, i32) {
    %c0_i32 = arith.constant 0 : i32
    %c0_i32_0 = arith.constant 0 : i32
    %c0_i32_1 = arith.constant 0 : i32
    return %arg0, %c0_i32, %c0_i32_0 : i32, i32, i32
  }
  func.func @transform_1(%arg0: i32, %arg1: i32) -> (i32, i32) {
    %c0_i32 = arith.constant 0 : i32
    %c0_i32_0 = arith.constant 0 : i32
    %c0_i32_1 = arith.constant 0 : i32
    return %c0_i32, %c0_i32_0 : i32, i32
  }
  func.func @transform_2(%arg0: i32, %arg1: i32) -> (i32, i32) {
    %c0_i32 = arith.constant 0 : i32
    %c0_i32_0 = arith.constant 0 : i32
    %c0_i32_1 = arith.constant 0 : i32
    return %c0_i32, %c0_i32_0 : i32, i32
  }
  func.func @transform_3(%arg0: i32, %arg1: i32) -> i32 {
    %c0_i32 = arith.constant 0 : i32
    %c0_i32_0 = arith.constant 0 : i32
    return %c0_i32 : i32
  }
  func.func @transform_4(%arg0: i32, %arg1: i32) -> (i32, i32, i32) {
    %c0_i32 = arith.constant 0 : i32
    %c0_i32_0 = arith.constant 0 : i32
    return %arg0, %c0_i32, %arg1 : i32, i32, i32
  }
}

module attributes {stable_mosaic.version = 11 : i64} {
  func.func @_self_attn_kernel(%arg0: i32, %arg1: i32, %arg2: memref<1x16x512xf32, #tpu.memory_space<vmem>>, %arg3: memref<48x16xbf16, #tpu.memory_space<vmem>>, %arg4: memref<48x1xf32, #tpu.memory_space<vmem>>, %arg5: memref<1xf32, #tpu.memory_space<smem>>, %arg6: memref<1x16x256xbf16, #tpu.memory_space<vmem>>, %arg7: memref<48x512xbf16, #tpu.memory_space<vmem>>) attributes {dimension_semantics = [#tpu.dimension_semantics<parallel>, #tpu.dimension_semantics<arbitrary>], iteration_bounds = array<i64: 2, 2>, scalar_prefetch = 0 : i64, scratch_operands = 1 : i64, tpu.core_type = #tpu.core_type<tc>, window_params = [{transform_indices = @transform_0, window_bounds = array<i64: 1, 16, 512>}, {pipeline_mode = #tpu.pipeline_mode<synchronous>, transform_indices = @transform_1, window_bounds = array<i64: 48, 16>}, {pipeline_mode = #tpu.pipeline_mode<synchronous>, transform_indices = @transform_2, window_bounds = array<i64: 48, 1>}, {transform_indices = @transform_3, window_bounds = array<i64: 1>}, {transform_indices = @transform_4, window_bounds = array<i64: 1, 16, 256>}]} {
    %c0_i32 = arith.constant 0 : i32
    %0 = arith.cmpi eq, %arg1, %c0_i32 : i32
    %1 = arith.extui %0 : i1 to i32
    %c0_i32_0 = arith.constant 0 : i32
    %2 = arith.cmpi ne, %1, %c0_i32_0 : i32
    scf.if %2 {
      %c0_i32_12 = arith.constant 0 : i32
      %c256_i32_13 = arith.constant 256 : i32
      %34 = arith.muli %c0_i32_12, %c256_i32_13 : i32
      %35 = tpu.assume_multiple %34, 256 : i32
      %c0_14 = arith.constant 0 : index
      %c0_15 = arith.constant 0 : index
      %36 = arith.index_cast %35 : i32 to index
      %37 = vector.load %arg2[%c0_14, %c0_15, %36] : memref<1x16x512xf32, #tpu.memory_space<vmem>>, vector<1x16x256xf32>
      %38 = vector.shape_cast %37 : vector<1x16x256xf32> to vector<16x256xf32>
      %39 = arith.truncf %38 : vector<16x256xf32> to vector<16x256xbf16>
      %c0_16 = arith.constant 0 : index
      %c0_17 = arith.constant 0 : index
      %40 = vector.load %arg3[%c0_16, %c0_17] : memref<48x16xbf16, #tpu.memory_space<vmem>>, vector<48x16xbf16>
      %cst_18 = arith.constant dense<0.000000e+00> : vector<48x256xf32>
      %41 = tpu.matmul %40, %39, %cst_18 {dimension_numbers = #tpu.dot_dimension_numbers<[1], [0], [0], [1], [0, 0, 1, 1], [], []>} : vector<48x16xbf16>, vector<16x256xbf16>, vector<48x256xf32> -> vector<48x256xf32>
      %c0_19 = arith.constant 0 : index
      %c0_20 = arith.constant 0 : index
      %42 = vector.load %arg4[%c0_19, %c0_20] : memref<48x1xf32, #tpu.memory_space<vmem>>, vector<48x1xf32>
      %43 = vector.broadcast %42 : vector<48x1xf32> to vector<48x256xf32>
      %44 = arith.addf %41, %43 : vector<48x256xf32>
      %45 = arith.truncf %44 : vector<48x256xf32> to vector<48x256xbf16>
      %c0_21 = arith.constant 0 : index
      %46 = arith.index_cast %35 : i32 to index
      %47 = vector.load %arg7[%c0_21, %46] : memref<48x512xbf16, #tpu.memory_space<vmem>>, vector<48x256xbf16>
      tpu.vector_store %arg7[%c0_21, %46], %45 {strides = array<i32>} : memref<48x512xbf16, #tpu.memory_space<vmem>>, vector<48x256xbf16>,
      %c1_i32 = arith.constant 1 : i32
      %c256_i32_22 = arith.constant 256 : i32
      %48 = arith.muli %c1_i32, %c256_i32_22 : i32
      %49 = tpu.assume_multiple %48, 256 : i32
      %c0_23 = arith.constant 0 : index
      %c0_24 = arith.constant 0 : index
      %50 = arith.index_cast %49 : i32 to index
      %51 = vector.load %arg2[%c0_23, %c0_24, %50] : memref<1x16x512xf32, #tpu.memory_space<vmem>>, vector<1x16x256xf32>
      %52 = vector.shape_cast %51 : vector<1x16x256xf32> to vector<16x256xf32>
      %53 = arith.truncf %52 : vector<16x256xf32> to vector<16x256xbf16>
      %c0_25 = arith.constant 0 : index
      %c0_26 = arith.constant 0 : index
      %54 = vector.load %arg3[%c0_25, %c0_26] : memref<48x16xbf16, #tpu.memory_space<vmem>>, vector<48x16xbf16>
      %cst_27 = arith.constant dense<0.000000e+00> : vector<48x256xf32>
      %55 = tpu.matmul %54, %53, %cst_27 {dimension_numbers = #tpu.dot_dimension_numbers<[1], [0], [0], [1], [0, 0, 1, 1], [], []>} : vector<48x16xbf16>, vector<16x256xbf16>, vector<48x256xf32> -> vector<48x256xf32>
      %c0_28 = arith.constant 0 : index
      %c0_29 = arith.constant 0 : index
      %56 = vector.load %arg4[%c0_28, %c0_29] : memref<48x1xf32, #tpu.memory_space<vmem>>, vector<48x1xf32>
      %57 = vector.broadcast %56 : vector<48x1xf32> to vector<48x256xf32>
      %58 = arith.addf %55, %57 : vector<48x256xf32>
      %59 = arith.truncf %58 : vector<48x256xf32> to vector<48x256xbf16>
      %c0_30 = arith.constant 0 : index
      %60 = arith.index_cast %49 : i32 to index
      %61 = vector.load %arg7[%c0_30, %60] : memref<48x512xbf16, #tpu.memory_space<vmem>>, vector<48x256xbf16>
      tpu.vector_store %arg7[%c0_30, %60], %59 {strides = array<i32>} : memref<48x512xbf16, #tpu.memory_space<vmem>>, vector<48x256xbf16>,
      %c2_i32 = arith.constant 2 : i32
    } else {
    }
    %c256_i32 = arith.constant 256 : i32
    %3 = arith.muli %arg1, %c256_i32 : i32
    %4 = tpu.assume_multiple %3, 256 : i32
    %c0 = arith.constant 0 : index
    %5 = arith.index_cast %4 : i32 to index
    %6 = vector.load %arg7[%c0, %5] : memref<48x512xbf16, #tpu.memory_space<vmem>>, vector<16x256xbf16>
    %c16 = arith.constant 16 : index
    %c0_1 = arith.constant 0 : index
    %7 = vector.load %arg7[%c16, %c0_1] : memref<48x512xbf16, #tpu.memory_space<vmem>>, vector<16x512xbf16>
    %c32 = arith.constant 32 : index
    %c0_2 = arith.constant 0 : index
    %8 = vector.load %arg7[%c32, %c0_2] : memref<48x512xbf16, #tpu.memory_space<vmem>>, vector<16x512xbf16>
    %cst = arith.constant dense<0.000000e+00> : vector<256x512xf32>
    %9 = tpu.matmul %6, %7, %cst {dimension_numbers = #tpu.dot_dimension_numbers<[0], [0], [1], [1], [0, 1, 1, 1], [], []>} : vector<16x256xbf16>, vector<16x512xbf16>, vector<256x512xf32> -> vector<256x512xf32>
    %cst_3 = arith.constant dense<0xFF800000> : vector<256xf32>
    %10 = vector.multi_reduction <maximumf>, %9, %cst_3 [1] : vector<256x512xf32> to vector<256xf32>
    %11 = vector.shape_cast %10 : vector<256xf32> to vector<256x1xf32>
    %12 = vector.broadcast %11 : vector<256x1xf32> to vector<256x512xf32>
    %13 = arith.subf %9, %12 : vector<256x512xf32>
    %14 = math.exp %13 : vector<256x512xf32>
    %cst_4 = arith.constant dense<0.000000e+00> : vector<256xf32>
    %15 = vector.multi_reduction <add>, %14, %cst_4 [1] : vector<256x512xf32> to vector<256xf32>
    %16 = vector.shape_cast %15 : vector<256xf32> to vector<256x1xf32>
    %17 = arith.truncf %14 : vector<256x512xf32> to vector<256x512xbf16>
    %cst_5 = arith.constant dense<0.000000e+00> : vector<16x256xf32>
    %18 = tpu.matmul %8, %17, %cst_5 {dimension_numbers = #tpu.dot_dimension_numbers<[1], [1], [0], [0], [0, 0, 1, 0], [], []>} : vector<16x512xbf16>, vector<256x512xbf16>, vector<16x256xf32> -> vector<16x256xf32>
    %c0_6 = arith.constant 0 : index
    %19 = memref.load %arg5[%c0_6] : memref<1xf32, #tpu.memory_space<smem>>
    %20 = tpu.reciprocal %16 {approx = true} : vector<256x1xf32> -> vector<256x1xf32>
    %21 = vector.broadcast %19 : f32 to vector<256x1xf32>
    %22 = arith.mulf %21, %20 : vector<256x1xf32>
    %c0_7 = arith.constant 0 : index
    %c0_8 = arith.constant 0 : index
    %23 = arith.index_cast %4 : i32 to index
    %24 = vector.load %arg2[%c0_7, %c0_8, %23] : memref<1x16x512xf32, #tpu.memory_space<vmem>>, vector<1x16x256xf32>
    %25 = vector.shape_cast %24 : vector<1x16x256xf32> to vector<16x256xf32>
    %26 = vector.shape_cast %22 : vector<256x1xf32> to vector<1x256xf32>
    %27 = vector.broadcast %26 : vector<1x256xf32> to vector<16x256xf32>
    %28 = arith.mulf %18, %27 : vector<16x256xf32>
    %29 = arith.addf %28, %25 : vector<16x256xf32>
    %30 = arith.truncf %29 : vector<16x256xf32> to vector<16x256xbf16>
    %c0_9 = arith.constant 0 : index
    %c0_10 = arith.constant 0 : index
    %c0_11 = arith.constant 0 : index
    %31 = vector.load %arg6[%c0_9, %c0_10, %c0_11] : memref<1x16x256xbf16, #tpu.memory_space<vmem>>, vector<1x16x256xbf16>
    %32 = vector.shape_cast %31 : vector<1x16x256xbf16> to vector<16x256xbf16>
    %33 = vector.shape_cast %30 : vector<16x256xbf16> to vector<1x16x256xbf16>
    tpu.vector_store %arg6[%c0_9, %c0_10, %c0_11], %33 {strides = array<i32>} : memref<1x16x256xbf16, #tpu.memory_space<vmem>>, vector<1x16x256xbf16>,
    return
  }
  func.func @transform_0(%arg0: i32, %arg1: i32) -> (i32, i32, i32) {
    %c0_i32 = arith.constant 0 : i32
    %c0_i32_0 = arith.constant 0 : i32
    %c0_i32_1 = arith.constant 0 : i32
    return %arg0, %c0_i32, %c0_i32_0 : i32, i32, i32
  }
  func.func @transform_1(%arg0: i32, %arg1: i32) -> (i32, i32) {
    %c0_i32 = arith.constant 0 : i32
    %c0_i32_0 = arith.constant 0 : i32
    %c0_i32_1 = arith.constant 0 : i32
    return %c0_i32, %c0_i32_0 : i32, i32
  }
  func.func @transform_2(%arg0: i32, %arg1: i32) -> (i32, i32) {
    %c0_i32 = arith.constant 0 : i32
    %c0_i32_0 = arith.constant 0 : i32
    %c0_i32_1 = arith.constant 0 : i32
    return %c0_i32, %c0_i32_0 : i32, i32
  }
  func.func @transform_3(%arg0: i32, %arg1: i32) -> i32 {
    %c0_i32 = arith.constant 0 : i32
    %c0_i32_0 = arith.constant 0 : i32
    return %c0_i32 : i32
  }
  func.func @transform_4(%arg0: i32, %arg1: i32) -> (i32, i32, i32) {
    %c0_i32 = arith.constant 0 : i32
    %c0_i32_0 = arith.constant 0 : i32
    return %arg0, %c0_i32, %arg1 : i32, i32, i32
  }
}

</mosaic_0001>

<llo_original>
// kernel: tpu_custom_call.1
$region0: #{tpu_custom_call.1}
  #allocation0 [shape = 'u32[]', space=smem, size = 0x4, offset = 0x4, fixed_abs, tag = 'smem constant byte address 0x4 - core index']
  #allocation1 [shape = 'u32[72,128]{1,0:T(1,128)}', space=vmem, size = 0x9000, scoped, tag = 'internal scratch']
  #allocation2 [shape = 'bf16[48,512]{1,0:T(8,128)(2,1)}', space=vmem, size = 0xc000, scoped, tag = 'scratch operand']
  #allocation3 [shape = 'f32[1]{0:T(128)S(6)}', space=smem, size = 0x200, scoped, tag = 'scoped memory for tpu_custom_call.1']
  %s0 = inlined_call_operand.hbm [shape: f32[2,16,512], index: 0, kind: input, shape index: {}]
  %s1 = inlined_call_operand.vmem [shape: bf16[48,16], index: 1, kind: input, shape index: {}]
  %s2 = inlined_call_operand.vmem [shape: f32[48,1], index: 2, kind: input, shape index: {}]
  %s3 = inlined_call_operand.<no memory space> [shape: f32[1], index: 3, kind: input, shape index: {}]
  %s4 = inlined_call_operand.hbm [shape: bf16[2,16,512], index: 4, kind: output, shape index: {}]
  %s5 = sld [smem:[#allocation0]]
  $region57: #{tpu_custom_call.1} parent=0
    _
  %s7 = ssub.s32 1, %s5
  %s8 = scalar_select 0, %s7, %s5
  %9 = sst [smem:[#allocation3]] %s3
  $region1: #{tpu_custom_call.1} parent=0
    #allocation4 [shape = 'u8[65536]{0}', space=vmem, size = 0x10000, scoped, tag = 'input window, operand 0']
    #allocation5 [shape = 's32[2]{0}', space=sflag, size = 0x8, scoped, tag = 'scoped memory for tpu_custom_call.1']
    #allocation6 [shape = 's32[2]{0}', space=sflag, size = 0x8, scoped, tag = 'scoped memory for tpu_custom_call.1']
    #allocation7 [shape = 'u8[16384]{0}', space=vmem, size = 0x4000, scoped, tag = 'output window, operand 0']
    %10 = vsyncpa [#allocation5], 0
    %s11 = scalar_lea.sflag [#allocation5], 1
    %12 = vsyncpa %s11, 0
    %13 = vsyncpa [#allocation6], 0
    %s14 = scalar_lea.sflag [#allocation6], 1
    %15 = vsyncpa %s14, 0
    loop: start=0, step=1, limit=6
    $region2: #{tpu_custom_call.1} parent=1 // loop_pre_header
      _
    $region3: #{tpu_custom_call.1} parent=1 // loop_header
      %s17 = sphi 0, %s21
      %p18 = scmp.ge.s32.totalorder %s17, 6
      %s24 = sphi 0, %s36
      %s25 = sphi 0, %s32
      %s26 = sphi 0, %s24
      %s27 = sphi 0, %s25
      %s28 = sphi 0, %s26
      %s29 = sphi 0, %s27
      %s39 = sphi 0, %s41
      %s42 = sphi 0, %s39
      %s43 = sphi 0, %s42
      %s59 = sphi 0, %s43
      %s63 = sphi 0, %s63
      %s65 = sphi 0, %s63
      %s66 = sphi 0, %s65
      %s80 = sphi 0, %s66
      %s84 = sphi 0, %s84
      %s86 = sphi 0, %s84
      %s87 = sphi 0, %s86
      %s101 = sphi 0, %s87
      %s105 = sphi 0, %s105
      %s107 = sphi 0, %s105
      %s108 = sphi 0, %s107
      %s122 = sphi 0, %s108
      %s130 = sphi 0, %s132
      %s133 = sphi 0, %s130
      %s134 = sphi 0, %s133
      %s150 = sphi 0, %s134
    $region4: #{tpu_custom_call.1} parent=1 // loop_header_branch
      %20 = sbr.rel (%p18) target = $region8
    $region5: #{tpu_custom_call.1} parent=1 // loop_body
      %s22 = ssub.s32 %s17, 1
      %s23 = ssub.s32 %s17, 2
      %s30 = sadd.s32 1, %s25
      %p31 = scmp.ge.s32.totalorder %s30, 2
      %s32 = scalar_select %p31, 0, %s30
      %s33 = sadd.s32 1, %s24
      %s34 = scalar_select %p31, %s33, %s24
      %p35 = scmp.ge.s32.totalorder %s34, 2
      %s36 = scalar_select %p35, 0, %s34
      %s37 = ssub.s32 %s24, %s36
      %p38 = scmp.eq.s32.totalorder %s37, 0
      %s40 = sadd.s32 %s39, 1
      %s41 = scalar_select %p38, %s39, %s40
      %p44 = pneg %p38
      %p45 = scmp.eq.s32.totalorder %s17, 3
      %p46 = por %p44, %p45
      %p47 = scmp.ne.s32.totalorder %s39, %s42
      %p48 = scmp.eq.s32.totalorder %s17, 0
      %p49 = por %p47, %p48
      %p50 = scmp.ne.s32.totalorder %s39, %s42
      %p51 = scmp.eq.s32.totalorder %s22, 3
      %p52 = por %p50, %p51
      %p53 = scmp.ne.s32.totalorder %s42, %s43
      %p54 = scmp.eq.s32.totalorder %s22, 0
      %p55 = por %p53, %p54
      %p56 = scmp.ne.s32.totalorder %s42, %s43
      %p57 = scmp.eq.s32.totalorder %s23, 3
      %p58 = por %p56, %p57
      %p60 = scmp.ne.s32.totalorder %s43, %s59
      %p61 = scmp.eq.s32.totalorder %s23, 0
      %p62 = por %p60, %p61
      %s64 = sadd.s32 %s63, 1
      %p67 = scmp.eq.s32.totalorder %s17, 3
      %p68 = scmp.ne.s32.totalorder %s63, %s65
      %p69 = scmp.eq.s32.totalorder %s17, 0
      %p70 = por %p68, %p69
      %p71 = scmp.ne.s32.totalorder %s63, %s65
      %p72 = scmp.eq.s32.totalorder %s22, 3
      %p73 = por %p71, %p72
      %p74 = scmp.ne.s32.totalorder %s65, %s66
      %p75 = scmp.eq.s32.totalorder %s22, 0
      %p76 = por %p74, %p75
      %p77 = scmp.ne.s32.totalorder %s65, %s66
      %p78 = scmp.eq.s32.totalorder %s23, 3
      %p79 = por %p77, %p78
      %p81 = scmp.ne.s32.totalorder %s66, %s80
      %p82 = scmp.eq.s32.totalorder %s23, 0
      %p83 = por %p81, %p82
      %s85 = sadd.s32 %s84, 1
      %p88 = scmp.eq.s32.totalorder %s17, 3
      %p89 = scmp.ne.s32.totalorder %s84, %s86
      %p90 = scmp.eq.s32.totalorder %s17, 0
      %p91 = por %p89, %p90
      %p92 = scmp.ne.s32.totalorder %s84, %s86
      %p93 = scmp.eq.s32.totalorder %s22, 3
      %p94 = por %p92, %p93
      %p95 = scmp.ne.s32.totalorder %s86, %s87
      %p96 = scmp.eq.s32.totalorder %s22, 0
      %p97 = por %p95, %p96
      %p98 = scmp.ne.s32.totalorder %s86, %s87
      %p99 = scmp.eq.s32.totalorder %s23, 3
      %p100 = por %p98, %p99
      %p102 = scmp.ne.s32.totalorder %s87, %s101
      %p103 = scmp.eq.s32.totalorder %s23, 0
      %p104 = por %p102, %p103
      %s106 = sadd.s32 %s105, 1
      %p109 = scmp.eq.s32.totalorder %s17, 3
      %p110 = scmp.ne.s32.totalorder %s105, %s107
      %p111 = scmp.eq.s32.totalorder %s17, 0
      %p112 = por %p110, %p111
      %p113 = scmp.ne.s32.totalorder %s105, %s107
      %p114 = scmp.eq.s32.totalorder %s22, 3
      %p115 = por %p113, %p114
      %p116 = scmp.ne.s32.totalorder %s107, %s108
      %p117 = scmp.eq.s32.totalorder %s22, 0
      %p118 = por %p116, %p117
      %p119 = scmp.ne.s32.totalorder %s107, %s108
      %p120 = scmp.eq.s32.totalorder %s23, 3
      %p121 = por %p119, %p120
      %p123 = scmp.ne.s32.totalorder %s108, %s122
      %p124 = scmp.eq.s32.totalorder %s23, 0
      %p125 = por %p123, %p124
      %s126 = ssub.s32 %s24, %s36
      %s127 = ssub.s32 %s25, %s32
      %s128 = sor.u32 %s126, %s127
      %p129 = scmp.eq.s32.totalorder %s128, 0
      %s131 = sadd.s32 %s130, 1
      %s132 = scalar_select %p129, %s130, %s131
      %p135 = pneg %p129
      %p136 = scmp.eq.s32.totalorder %s17, 3
      %p137 = por %p135, %p136
      %p138 = scmp.ne.s32.totalorder %s130, %s133
      %p139 = scmp.eq.s32.totalorder %s17, 0
      %p140 = por %p138, %p139
      %p141 = scmp.ne.s32.totalorder %s130, %s133
      %p142 = scmp.eq.s32.totalorder %s22, 3
      %p143 = por %p141, %p142
      %p144 = scmp.ne.s32.totalorder %s133, %s134
      %p145 = scmp.eq.s32.totalorder %s22, 0
      %p146 = por %p144, %p145
      %p147 = scmp.ne.s32.totalorder %s133, %s134
      %p148 = scmp.eq.s32.totalorder %s23, 3
      %p149 = por %p147, %p148
      %p151 = scmp.ne.s32.totalorder %s134, %s150
      %p152 = scmp.eq.s32.totalorder %s23, 0
      %p153 = por %p151, %p152
      %p154 = scmp.le.s32.totalorder 1, %s17
      %p155 = scmp.lt.s32.totalorder %s17, 5
      %p156 = pnand %p154, %p155
      %p157 = pneg %p156
      // Predicated region
      $region9: #{tpu_custom_call.1} parent=5 // pred_check
        _
      $region10: #{tpu_custom_call.1} parent=5 // pred_check_branch
        %159 = sbr.rel (%p156) target = $region12
      $region11: #{tpu_custom_call.1} parent=5 // pred_region
        %s160 = ssub.s32 %s17, 1
        // Predicated region
        $region13: #{tpu_custom_call.1} parent=11 // pred_check
          %p161 = pneg %p76
        $region14: #{tpu_custom_call.1} parent=11 // pred_check_branch
          %163 = sbr.rel (%p161) target = $region16
        $region15: #{tpu_custom_call.1} parent=11 // pred_region
          _
        $region16: #{tpu_custom_call.1} parent=11 // pred_fallthru
          _
        // Predicated region
        $region17: #{tpu_custom_call.1} parent=11 // pred_check
          %p164 = pneg %p97
        $region18: #{tpu_custom_call.1} parent=11 // pred_check_branch
          %166 = sbr.rel (%p164) target = $region20
        $region19: #{tpu_custom_call.1} parent=11 // pred_region
          _
        $region20: #{tpu_custom_call.1} parent=11 // pred_fallthru
          _
        // Predicated region
        $region21: #{tpu_custom_call.1} parent=11 // pred_check
          %p167 = pneg %p118
        $region22: #{tpu_custom_call.1} parent=11 // pred_check_branch
          %169 = sbr.rel (%p167) target = $region24
        $region23: #{tpu_custom_call.1} parent=11 // pred_region
          _
        $region24: #{tpu_custom_call.1} parent=11 // pred_fallthru
          _
      $region12: #{tpu_custom_call.1} parent=5 // pred_fallthru
        _
      %p170 = scmp.lt.s32.totalorder %s17, 4
      // Predicated region
      $region25: #{tpu_custom_call.1} parent=5 // pred_check
        %p171 = pneg %p170
      $region26: #{tpu_custom_call.1} parent=5 // pred_check_branch
        %173 = sbr.rel (%p171) target = $region28
      $region27: #{tpu_custom_call.1} parent=5 // pred_region
        // Predicated region
        $region29: #{tpu_custom_call.1} parent=27 // pred_check
          %p174 = pneg %p49
        $region30: #{tpu_custom_call.1} parent=27 // pred_check_branch
          %176 = sbr.rel (%p174) target = $region32
        $region31: #{tpu_custom_call.1} parent=27 // pred_region
          %s177 = sand.u32 %s39, 1
          %s178 = scalar_lea.sflag [#allocation5], %s177
          %s179 = sand.u32 %s39, 1
          %s180 = smul.addr %s179, 64
          %s181 = scalar_lea.vmem [#allocation4], %s180
          %183 = vsyncadd %s178, 0
          %s184 = smul.addr %s24, 8
          %s185 = smul.addr %s184, 8
          %s186 = scalar_lea.hbm %s0, %s185
          %s187 = sshll.u32 %s186, 4
          %s188 = int_to_ptr.hbm [resolvable:$true] %s187
          %s189 = sshll.u32 %s181, 4
          %s190 = int_to_ptr.vmem [resolvable:$true] %s189
          %195 = dma.hbm_to_vmem [thread:$0]  %s188, 1024, %s190, %s178, 512, 512, 32
        $region32: #{tpu_custom_call.1} parent=27 // pred_fallthru
          _
      $region28: #{tpu_custom_call.1} parent=5 // pred_fallthru
        _
      %p196 = scmp.le.s32.totalorder 1, %s17
      %p197 = scmp.lt.s32.totalorder %s17, 5
      %p198 = pnand %p196, %p197
      %p199 = pneg %p198
      // Predicated region
      $region33: #{tpu_custom_call.1} parent=5 // pred_check
        _
      $region34: #{tpu_custom_call.1} parent=5 // pred_check_branch
        %201 = sbr.rel (%p198) target = $region36
      $region35: #{tpu_custom_call.1} parent=5 // pred_region
        %s202 = ssub.s32 %s17, 1
        %s203 = sand.u32 %s42, 1
        %s204 = scalar_lea.sflag [#allocation5], %s203
        %s205 = sand.u32 %s42, 1
        %s206 = smul.addr %s205, 64
        %s207 = scalar_lea.vmem [#allocation4], %s206
        // Predicated region
        $region37: #{tpu_custom_call.1} parent=35 // pred_check
          %p208 = pneg %p55
        $region38: #{tpu_custom_call.1} parent=35 // pred_check_branch
          %210 = sbr.rel (%p208) target = $region40
        $region39: #{tpu_custom_call.1} parent=35 // pred_region
          %212 = dma.done %s204, 1024
        $region40: #{tpu_custom_call.1} parent=35 // pred_fallthru
          _
        %s213 = sand.u32 %s42, 1
        %s214 = scalar_lea.sflag [#allocation5], %s213
        %s215 = sand.u32 %s42, 1
        %s216 = smul.addr %s215, 64
        %s217 = scalar_lea.vmem [#allocation4], %s216
        %p218 = pneg %p55
        %p219 = pneg %p52
        %p220 = pneg %p76
        %p221 = pneg %p73
        %p222 = pneg %p97
        %p223 = pneg %p94
        %p224 = pneg %p118
        %p225 = pneg %p115
        %p226 = pneg %p146
        %p227 = pneg %p143
        %s228 = sand.u32 %s133, 1
        %s229 = scalar_lea.sflag [#allocation6], %s228
        %s230 = sand.u32 %s133, 1
        %s231 = smul.addr %s230, 16
        %s232 = scalar_lea.vmem [#allocation7], %s231
        %s233 = smul.u32 2, %s27
        %p235 = scmp.eq.s32.totalorder %s27, 0
        // Predicated region
        $region41: #{tpu_custom_call.1} parent=35 // pred_check
          %p236 = pneg %p235
        $region42: #{tpu_custom_call.1} parent=35 // pred_check_branch
          %238 = sbr.rel (%p236) target = $region44
        $region43: #{tpu_custom_call.1} parent=35 // pred_region
          %v239 = vld [vmem:[%s207] sm:$0xff]
          %v240 = vld [vmem:[%s207 + $0x8] sm:$0xff]
          %v241 = vld [vmem:[%s207 + $0x20] sm:$0xff]
          %v242 = vld [vmem:[%s207 + $0x28] sm:$0xff]
          %v243 = vpack.c.bf16 %v241, %v239
          %v244 = vpack.c.bf16 %v242, %v240
          %v245 = vld [vmem:[%s1] sm:$0xf]
          %v246 = vld [vmem:[%s1 + $0x4] sm:$0xf]
          %v247 = vld [vmem:[%s1 + $0x8] sm:$0xf]
          %v248 = vld [vmem:[%s1 + $0xc] sm:$0xf]
          %v249 = vld [vmem:[%s1 + $0x10] sm:$0xf]
          %v250 = vld [vmem:[%s1 + $0x14] sm:$0xf]
          %v251 = vld [vmem:[%s2] sm:$0xff]
          %v252 = vld [vmem:[%s2 + $0x8] sm:$0xff]
          %v253 = vld [vmem:[%s2 + $0x10] sm:$0xff]
          %v254 = vld [vmem:[%s2 + $0x18] sm:$0xff]
          %v255 = vld [vmem:[%s2 + $0x20] sm:$0xff]
          %v256 = vld [vmem:[%s2 + $0x28] sm:$0xff]
          %258 = vset.pattern.permute.xlu0 0
          %259 = vperm.xlu0 %258, %v251
          %v260 = vpop.permute.xlu0 %259
          %263 = vset.pattern.permute.xlu0 0
          %264 = vperm.xlu0 %263, %v252
          %v265 = vpop.permute.xlu0 %264
          %268 = vset.pattern.permute.xlu0 0
          %269 = vperm.xlu0 %268, %v253
          %v270 = vpop.permute.xlu0 %269
          %273 = vset.pattern.permute.xlu0 0
          %274 = vperm.xlu0 %273, %v254
          %v275 = vpop.permute.xlu0 %274
          %278 = vset.pattern.permute.xlu0 0
          %279 = vperm.xlu0 %278, %v255
          %v280 = vpop.permute.xlu0 %279
          %283 = vset.pattern.permute.xlu0 0
          %284 = vperm.xlu0 %283, %v256
          %v285 = vpop.permute.xlu0 %284
          %v293 = vunpack.c.l.b16 %v245
          %v294 = vunpack.c.l.b16 %v246
          %v295 = vunpack.c.l.b16 %v247
          %v296 = vunpack.c.l.b16 %v248
          %v297 = vunpack.c.l.b16 %v249
          %v298 = vunpack.c.l.b16 %v250
          %v299 = vpack.c.b16 %v294, %v293
          %v300 = vpack.c.b16 %v296, %v295
          %v301 = vpack.c.b16 %v298, %v297
          %vm302 = vcmask 130048
          %v304 = vsel %vm302, %v299, 0
          %v307 = vsel %vm302, %v300, 0
          %v310 = vsel %vm302, %v301, 0
          %312 = vmatpush.bf16.msra.mxu0 0
          %313 = vmatpush.bf16.msra.mxu0 0
          %314 = vmatpush.bf16.msra.mxu0 0
          %315 = vmatpush.bf16.msra.mxu0 0
          %316 = vmatpush.bf16.msra.mxu0 0
          %317 = vmatpush.bf16.msra.mxu0 0
          %318 = vmatpush.bf16.msra.mxu0 0
          %319 = vmatpush.bf16.msra.mxu0 %v243
          %320 = vmatmul.bf16.gmra.mxu0 %v304
          %v321 = vpop.f32.mrf.mxu0
          %v322 = vadd.f32 %v260, %v321
          %v323 = vpop.f32.mrf.mxu0
          %v324 = vadd.f32 %v265, %v323
          %325 = vmatmul.bf16.gmra.mxu0 %v307
          %v326 = vpop.f32.mrf.mxu0
          %v327 = vadd.f32 %v270, %v326
          %v328 = vpop.f32.mrf.mxu0
          %v329 = vadd.f32 %v275, %v328
          %330 = vmatmul.bf16.gmra.mxu0 %v310
          %v331 = vpop.f32.mrf.mxu0
          %v332 = vadd.f32 %v280, %v331
          %v333 = vpop.f32.mrf.mxu0
          %v334 = vadd.f32 %v285, %v333
          %335 = vdwg.mxu0
          %336 = vmatpush.bf16.msra.mxu0 0
          %337 = vmatpush.bf16.msra.mxu0 0
          %338 = vmatpush.bf16.msra.mxu0 0
          %339 = vmatpush.bf16.msra.mxu0 0
          %340 = vmatpush.bf16.msra.mxu0 0
          %341 = vmatpush.bf16.msra.mxu0 0
          %342 = vmatpush.bf16.msra.mxu0 0
          %343 = vmatpush.bf16.msra.mxu0 %v244
          %344 = vmatmul.bf16.gmra.mxu0 %v304
          %v345 = vpop.f32.mrf.mxu0
          %v346 = vadd.f32 %v260, %v345
          %v347 = vpop.f32.mrf.mxu0
          %v348 = vadd.f32 %v265, %v347
          %349 = vmatmul.bf16.gmra.mxu0 %v307
          %v350 = vpop.f32.mrf.mxu0
          %v351 = vadd.f32 %v270, %v350
          %v352 = vpop.f32.mrf.mxu0
          %v353 = vadd.f32 %v275, %v352
          %354 = vmatmul.bf16.gmra.mxu0 %v310
          %v355 = vpop.f32.mrf.mxu0
          %v356 = vadd.f32 %v280, %v355
          %v357 = vpop.f32.mrf.mxu0
          %v358 = vadd.f32 %v285, %v357
          %359 = vdwg.mxu0
          %v360 = vpack.c.bf16 %v346, %v322
          %v361 = vpack.c.bf16 %v348, %v324
          %v362 = vpack.c.bf16 %v351, %v327
          %v363 = vpack.c.bf16 %v353, %v329
          %v364 = vpack.c.bf16 %v356, %v332
          %v365 = vpack.c.bf16 %v358, %v334
          %366 = vst [vmem:[#allocation2] sm:$0xff] %v360
          %367 = vst [vmem:[#allocation2 + $0x10] sm:$0xff] %v361
          %368 = vst [vmem:[#allocation2 + $0x20] sm:$0xff] %v362
          %369 = vst [vmem:[#allocation2 + $0x30] sm:$0xff] %v363
          %370 = vst [vmem:[#allocation2 + $0x40] sm:$0xff] %v364
          %371 = vst [vmem:[#allocation2 + $0x50] sm:$0xff] %v365
          %s372 = scalar_lea.vmem %s207, 16 [#allocation4]
          %v373 = vld [vmem:[%s372] sm:$0xff]
          %v374 = vld [vmem:[%s372 + $0x8] sm:$0xff]
          %v375 = vld [vmem:[%s372 + $0x20] sm:$0xff]
          %v376 = vld [vmem:[%s372 + $0x28] sm:$0xff]
          %v377 = vpack.c.bf16 %v375, %v373
          %v378 = vpack.c.bf16 %v376, %v374
          %v379 = vld [vmem:[%s1] sm:$0xf]
          %v380 = vld [vmem:[%s1 + $0x4] sm:$0xf]
          %v381 = vld [vmem:[%s1 + $0x8] sm:$0xf]
          %v382 = vld [vmem:[%s1 + $0xc] sm:$0xf]
          %v383 = vld [vmem:[%s1 + $0x10] sm:$0xf]
          %v384 = vld [vmem:[%s1 + $0x14] sm:$0xf]
          %v385 = vld [vmem:[%s2] sm:$0xff]
          %v386 = vld [vmem:[%s2 + $0x8] sm:$0xff]
          %v387 = vld [vmem:[%s2 + $0x10] sm:$0xff]
          %v388 = vld [vmem:[%s2 + $0x18] sm:$0xff]
          %v389 = vld [vmem:[%s2 + $0x20] sm:$0xff]
          %v390 = vld [vmem:[%s2 + $0x28] sm:$0xff]
          %392 = vset.pattern.permute.xlu0 0
          %393 = vperm.xlu0 %392, %v385
          %v394 = vpop.permute.xlu0 %393
          %397 = vset.pattern.permute.xlu0 0
          %398 = vperm.xlu0 %397, %v386
          %v399 = vpop.permute.xlu0 %398
          %402 = vset.pattern.permute.xlu0 0
          %403 = vperm.xlu0 %402, %v387
          %v404 = vpop.permute.xlu0 %403
          %407 = vset.pattern.permute.xlu0 0
          %408 = vperm.xlu0 %407, %v388
          %v409 = vpop.permute.xlu0 %408
          %412 = vset.pattern.permute.xlu0 0
          %413 = vperm.xlu0 %412, %v389
          %v414 = vpop.permute.xlu0 %413
          %417 = vset.pattern.permute.xlu0 0
          %418 = vperm.xlu0 %417, %v390
          %v419 = vpop.permute.xlu0 %418
          %v427 = vunpack.c.l.b16 %v379
          %v428 = vunpack.c.l.b16 %v380
          %v429 = vunpack.c.l.b16 %v381
          %v430 = vunpack.c.l.b16 %v382
          %v431 = vunpack.c.l.b16 %v383
          %v432 = vunpack.c.l.b16 %v384
          %v433 = vpack.c.b16 %v428, %v427
          %v434 = vpack.c.b16 %v430, %v429
          %v435 = vpack.c.b16 %v432, %v431
          %v437 = vsel %vm302, %v433, 0
          %v440 = vsel %vm302, %v434, 0
          %v443 = vsel %vm302, %v435, 0
          %445 = vmatpush.bf16.msra.mxu0 0
          %446 = vmatpush.bf16.msra.mxu0 0
          %447 = vmatpush.bf16.msra.mxu0 0
          %448 = vmatpush.bf16.msra.mxu0 0
          %449 = vmatpush.bf16.msra.mxu0 0
          %450 = vmatpush.bf16.msra.mxu0 0
          %451 = vmatpush.bf16.msra.mxu0 0
          %452 = vmatpush.bf16.msra.mxu0 %v377
          %453 = vmatmul.bf16.gmra.mxu0 %v437
          %v454 = vpop.f32.mrf.mxu0
          %v455 = vadd.f32 %v394, %v454
          %v456 = vpop.f32.mrf.mxu0
          %v457 = vadd.f32 %v399, %v456
          %458 = vmatmul.bf16.gmra.mxu0 %v440
          %v459 = vpop.f32.mrf.mxu0
          %v460 = vadd.f32 %v404, %v459
          %v461 = vpop.f32.mrf.mxu0
          %v462 = vadd.f32 %v409, %v461
          %463 = vmatmul.bf16.gmra.mxu0 %v443
          %v464 = vpop.f32.mrf.mxu0
          %v465 = vadd.f32 %v414, %v464
          %v466 = vpop.f32.mrf.mxu0
          %v467 = vadd.f32 %v419, %v466
          %468 = vdwg.mxu0
          %469 = vmatpush.bf16.msra.mxu0 0
          %470 = vmatpush.bf16.msra.mxu0 0
          %471 = vmatpush.bf16.msra.mxu0 0
          %472 = vmatpush.bf16.msra.mxu0 0
          %473 = vmatpush.bf16.msra.mxu0 0
          %474 = vmatpush.bf16.msra.mxu0 0
          %475 = vmatpush.bf16.msra.mxu0 0
          %476 = vmatpush.bf16.msra.mxu0 %v378
          %477 = vmatmul.bf16.gmra.mxu0 %v437
          %v478 = vpop.f32.mrf.mxu0
          %v479 = vadd.f32 %v394, %v478
          %v480 = vpop.f32.mrf.mxu0
          %v481 = vadd.f32 %v399, %v480
          %482 = vmatmul.bf16.gmra.mxu0 %v440
          %v483 = vpop.f32.mrf.mxu0
          %v484 = vadd.f32 %v404, %v483
          %v485 = vpop.f32.mrf.mxu0
          %v486 = vadd.f32 %v409, %v485
          %487 = vmatmul.bf16.gmra.mxu0 %v443
          %v488 = vpop.f32.mrf.mxu0
          %v489 = vadd.f32 %v414, %v488
          %v490 = vpop.f32.mrf.mxu0
          %v491 = vadd.f32 %v419, %v490
          %492 = vdwg.mxu0
          %v493 = vpack.c.bf16 %v479, %v455
          %v494 = vpack.c.bf16 %v481, %v457
          %v495 = vpack.c.bf16 %v484, %v460
          %v496 = vpack.c.bf16 %v486, %v462
          %v497 = vpack.c.bf16 %v489, %v465
          %v498 = vpack.c.bf16 %v491, %v467
          %s499 = scalar_lea.vmem [#allocation2], 8
          %500 = vst [vmem:[%s499] sm:$0xff] %v493
          %501 = vst [vmem:[%s499 + $0x10] sm:$0xff] %v494
          %502 = vst [vmem:[%s499 + $0x20] sm:$0xff] %v495
          %503 = vst [vmem:[%s499 + $0x30] sm:$0xff] %v496
          %504 = vst [vmem:[%s499 + $0x40] sm:$0xff] %v497
          %505 = vst [vmem:[%s499 + $0x50] sm:$0xff] %v498
        $region44: #{tpu_custom_call.1} parent=35 // pred_fallthru
          _
        %s506 = smul.u32 %s27, 256
        %s507 = sshra.s32 %s506, 7
        %s508 = sand.u32 %s506, 127
        %s509 = smul.addr %s507, 4
        %s510 = scalar_lea.vmem [#allocation2], %s509
        %v511 = vld [vmem:[%s510] sm:$0xff]
        %v512 = vld [vmem:[%s510 + $0x10] sm:$0xff]
        %v513 = vld [vmem:[#allocation2 + $0x20] sm:$0xff]
        %v514 = vld [vmem:[#allocation2 + $0x28] sm:$0xff]
        %v515 = vld [vmem:[#allocation2 + $0x30] sm:$0xff]
        %v516 = vld [vmem:[#allocation2 + $0x38] sm:$0xff]
        %v517 = vld [vmem:[#allocation2 + $0x40] sm:$0xff]
        %v518 = vld [vmem:[#allocation2 + $0x48] sm:$0xff]
        %v519 = vld [vmem:[#allocation2 + $0x50] sm:$0xff]
        %v520 = vld [vmem:[#allocation2 + $0x58] sm:$0xff]
        %v523 = vunpack.c.l.b16 %v511
        %v524 = vunpack.c.h.b16 %v511
        %v525 = vunpack.c.l.b16 %v512
        %v526 = vunpack.c.h.b16 %v512
        %v527 = vpack.c.b16 %v525, %v523
        %v528 = vpack.c.b16 %v526, %v524
        %531 = vxpose.binary.xlu0.c.b16.start [1/16] %v528, %v527, 128
        %532 = vxpose.binary.xlu0.c.b16.cont [2/16] 0, 0, 128
        %533 = vxpose.binary.xlu0.c.b16.cont [3/16] 0, 0, 128
        %534 = vxpose.binary.xlu0.c.b16.cont [4/16] 0, 0, 128
        %535 = vxpose.binary.xlu0.c.b16.cont [5/16] 0, 0, 128
        %536 = vxpose.binary.xlu0.c.b16.cont [6/16] 0, 0, 128
        %537 = vxpose.binary.xlu0.c.b16.cont [7/16] 0, 0, 128
        %538 = vxpose.binary.xlu0.c.b16.end [8/16] 0, 0, 128
        %v539 = vpop.trf.xlu0
        %v540 = vpop.trf.xlu0
        %v541 = vpop.trf.xlu0
        %v542 = vpop.trf.xlu0
        %v543 = vpop.trf.xlu0
        %v544 = vpop.trf.xlu0
        %v545 = vpop.trf.xlu0
        %v546 = vpop.trf.xlu0
        %v547 = vpop.trf.xlu0
        %v548 = vpop.trf.xlu0
        %v549 = vpop.trf.xlu0
        %v550 = vpop.trf.xlu0
        %v551 = vpop.trf.xlu0
        %v552 = vpop.trf.xlu0
        %v553 = vpop.trf.xlu0
        %v554 = vpop.trf.xlu0
        %v559 = vunpack.c.l.b16 %v513
        %v560 = vunpack.c.h.b16 %v513
        %v561 = vunpack.c.l.b16 %v514
        %v562 = vunpack.c.h.b16 %v514
        %v563 = vunpack.c.l.b16 %v515
        %v564 = vunpack.c.h.b16 %v515
        %v565 = vunpack.c.l.b16 %v516
        %v566 = vunpack.c.h.b16 %v516
        %v567 = vpack.c.b16 %v563, %v559
        %v568 = vpack.c.b16 %v564, %v560
        %v569 = vpack.c.b16 %v565, %v561
        %v570 = vpack.c.b16 %v566, %v562
        %vm575 = vcmask 130048
        %v577 = vsel %vm575, %v539, 0
        %v580 = vsel %vm575, %v541, 0
        %v583 = vsel %vm575, %v543, 0
        %v586 = vsel %vm575, %v545, 0
        %v589 = vsel %vm575, %v547, 0
        %v592 = vsel %vm575, %v549, 0
        %v595 = vsel %vm575, %v551, 0
        %v598 = vsel %vm575, %v553, 0
        %v601 = vsel %vm575, %v540, 0
        %v604 = vsel %vm575, %v542, 0
        %v607 = vsel %vm575, %v544, 0
        %v610 = vsel %vm575, %v546, 0
        %v613 = vsel %vm575, %v548, 0
        %v616 = vsel %vm575, %v550, 0
        %v619 = vsel %vm575, %v552, 0
        %v622 = vsel %vm575, %v554, 0
        %624 = vmatpush.bf16.msra.mxu0 0
        %625 = vmatpush.bf16.msra.mxu0 0
        %626 = vmatpush.bf16.msra.mxu0 0
        %627 = vmatpush.bf16.msra.mxu0 0
        %628 = vmatpush.bf16.msra.mxu0 0
        %629 = vmatpush.bf16.msra.mxu0 0
        %630 = vmatpush.bf16.msra.mxu0 0
        %631 = vmatpush.bf16.msra.mxu0 %v567
        %632 = vmatmul.bf16.gmra.mxu0 %v577
        %v633 = vpop.f32.mrf.mxu0
        %v634 = vadd.f32 0.0, %v633
        %v635 = vpop.f32.mrf.mxu0
        %v636 = vadd.f32 0.0, %v635
        %637 = vmatmul.bf16.gmra.mxu0 %v580
        %v638 = vpop.f32.mrf.mxu0
        %v639 = vadd.f32 0.0, %v638
        %v640 = vpop.f32.mrf.mxu0
        %v641 = vadd.f32 0.0, %v640
        %642 = vmatmul.bf16.gmra.mxu0 %v583
        %v643 = vpop.f32.mrf.mxu0
        %v644 = vadd.f32 0.0, %v643
        %v645 = vpop.f32.mrf.mxu0
        %v646 = vadd.f32 0.0, %v645
        %647 = vmatmul.bf16.gmra.mxu0 %v586
        %v648 = vpop.f32.mrf.mxu0
        %v649 = vadd.f32 0.0, %v648
        %v650 = vpop.f32.mrf.mxu0
        %v651 = vadd.f32 0.0, %v650
        %652 = vmatmul.bf16.gmra.mxu0 %v589
        %v653 = vpop.f32.mrf.mxu0
        %v654 = vadd.f32 0.0, %v653
        %v655 = vpop.f32.mrf.mxu0
        %v656 = vadd.f32 0.0, %v655
        %657 = vmatmul.bf16.gmra.mxu0 %v592
        %v658 = vpop.f32.mrf.mxu0
        %v659 = vadd.f32 0.0, %v658
        %v660 = vpop.f32.mrf.mxu0
        %v661 = vadd.f32 0.0, %v660
        %662 = vmatmul.bf16.gmra.mxu0 %v595
        %v663 = vpop.f32.mrf.mxu0
        %v664 = vadd.f32 0.0, %v663
        %v665 = vpop.f32.mrf.mxu0
        %v666 = vadd.f32 0.0, %v665
        %667 = vmatmul.bf16.gmra.mxu0 %v598
        %v668 = vpop.f32.mrf.mxu0
        %v669 = vadd.f32 0.0, %v668
        %v670 = vpop.f32.mrf.mxu0
        %v671 = vadd.f32 0.0, %v670
        %672 = vmatmul.bf16.gmra.mxu0 %v601
        %v673 = vpop.f32.mrf.mxu0
        %v674 = vadd.f32 0.0, %v673
        %v675 = vpop.f32.mrf.mxu0
        %v676 = vadd.f32 0.0, %v675
        %677 = vmatmul.bf16.gmra.mxu0 %v604
        %v678 = vpop.f32.mrf.mxu0
        %v679 = vadd.f32 0.0, %v678
        %v680 = vpop.f32.mrf.mxu0
        %v681 = vadd.f32 0.0, %v680
        %682 = vmatmul.bf16.gmra.mxu0 %v607
        %v683 = vpop.f32.mrf.mxu0
        %v684 = vadd.f32 0.0, %v683
        %v685 = vpop.f32.mrf.mxu0
        %v686 = vadd.f32 0.0, %v685
        %687 = vmatmul.bf16.gmra.mxu0 %v610
        %v688 = vpop.f32.mrf.mxu0
        %v689 = vadd.f32 0.0, %v688
        %v690 = vpop.f32.mrf.mxu0
        %v691 = vadd.f32 0.0, %v690
        %692 = vmatmul.bf16.gmra.mxu0 %v613
        %v693 = vpop.f32.mrf.mxu0
        %v694 = vadd.f32 0.0, %v693
        %v695 = vpop.f32.mrf.mxu0
        %v696 = vadd.f32 0.0, %v695
        %697 = vmatmul.bf16.gmra.mxu0 %v616
        %v698 = vpop.f32.mrf.mxu0
        %v699 = vadd.f32 0.0, %v698
        %v700 = vpop.f32.mrf.mxu0
        %v701 = vadd.f32 0.0, %v700
        %702 = vmatmul.bf16.gmra.mxu0 %v619
        %v703 = vpop.f32.mrf.mxu0
        %v704 = vadd.f32 0.0, %v703
        %v705 = vpop.f32.mrf.mxu0
        %v706 = vadd.f32 0.0, %v705
        %707 = vmatmul.bf16.gmra.mxu0 %v622
        %v708 = vpop.f32.mrf.mxu0
        %v709 = vadd.f32 0.0, %v708
        %v710 = vpop.f32.mrf.mxu0
        %v711 = vadd.f32 0.0, %v710
        %712 = vdwg.mxu0
        %713 = vmatpush.bf16.msra.mxu0 0
        %714 = vmatpush.bf16.msra.mxu0 0
        %715 = vmatpush.bf16.msra.mxu0 0
        %716 = vmatpush.bf16.msra.mxu0 0
        %717 = vmatpush.bf16.msra.mxu0 0
        %718 = vmatpush.bf16.msra.mxu0 0
        %719 = vmatpush.bf16.msra.mxu0 0
        %720 = vmatpush.bf16.msra.mxu0 %v568
        %721 = vmatmul.bf16.gmra.mxu0 %v577
        %v722 = vpop.f32.mrf.mxu0
        %v723 = vadd.f32 0.0, %v722
        %v724 = vpop.f32.mrf.mxu0
        %v725 = vadd.f32 0.0, %v724
        %726 = vmatmul.bf16.gmra.mxu0 %v580
        %v727 = vpop.f32.mrf.mxu0
        %v728 = vadd.f32 0.0, %v727
        %v729 = vpop.f32.mrf.mxu0
        %v730 = vadd.f32 0.0, %v729
        %731 = vmatmul.bf16.gmra.mxu0 %v583
        %v732 = vpop.f32.mrf.mxu0
        %v733 = vadd.f32 0.0, %v732
        %v734 = vpop.f32.mrf.mxu0
        %v735 = vadd.f32 0.0, %v734
        %736 = vmatmul.bf16.gmra.mxu0 %v586
        %v737 = vpop.f32.mrf.mxu0
        %v738 = vadd.f32 0.0, %v737
        %v739 = vpop.f32.mrf.mxu0
        %v740 = vadd.f32 0.0, %v739
        %741 = vmatmul.bf16.gmra.mxu0 %v589
        %v742 = vpop.f32.mrf.mxu0
        %v743 = vadd.f32 0.0, %v742
        %v744 = vpop.f32.mrf.mxu0
        %v745 = vadd.f32 0.0, %v744
        %746 = vmatmul.bf16.gmra.mxu0 %v592
        %v747 = vpop.f32.mrf.mxu0
        %v748 = vadd.f32 0.0, %v747
        %v749 = vpop.f32.mrf.mxu0
        %v750 = vadd.f32 0.0, %v749
        %751 = vmatmul.bf16.gmra.mxu0 %v595
        %v752 = vpop.f32.mrf.mxu0
        %v753 = vadd.f32 0.0, %v752
        %v754 = vpop.f32.mrf.mxu0
        %v755 = vadd.f32 0.0, %v754
        %756 = vmatmul.bf16.gmra.mxu0 %v598
        %v757 = vpop.f32.mrf.mxu0
        %v758 = vadd.f32 0.0, %v757
        %v759 = vpop.f32.mrf.mxu0
        %v760 = vadd.f32 0.0, %v759
        %761 = vmatmul.bf16.gmra.mxu0 %v601
        %v762 = vpop.f32.mrf.mxu0
        %v763 = vadd.f32 0.0, %v762
        %v764 = vpop.f32.mrf.mxu0
        %v765 = vadd.f32 0.0, %v764
        %766 = vmatmul.bf16.gmra.mxu0 %v604
        %v767 = vpop.f32.mrf.mxu0
        %v768 = vadd.f32 0.0, %v767
        %v769 = vpop.f32.mrf.mxu0
        %v770 = vadd.f32 0.0, %v769
        %771 = vmatmul.bf16.gmra.mxu0 %v607
        %v772 = vpop.f32.mrf.mxu0
        %v773 = vadd.f32 0.0, %v772
        %v774 = vpop.f32.mrf.mxu0
        %v775 = vadd.f32 0.0, %v774
        %776 = vmatmul.bf16.gmra.mxu0 %v610
        %v777 = vpop.f32.mrf.mxu0
        %v778 = vadd.f32 0.0, %v777
        %v779 = vpop.f32.mrf.mxu0
        %v780 = vadd.f32 0.0, %v779
        %781 = vmatmul.bf16.gmra.mxu0 %v613
        %v782 = vpop.f32.mrf.mxu0
        %v783 = vadd.f32 0.0, %v782
        %v784 = vpop.f32.mrf.mxu0
        %v785 = vadd.f32 0.0, %v784
        %786 = vmatmul.bf16.gmra.mxu0 %v616
        %v787 = vpop.f32.mrf.mxu0
        %v788 = vadd.f32 0.0, %v787
        %v789 = vpop.f32.mrf.mxu0
        %v790 = vadd.f32 0.0, %v789
        %791 = vmatmul.bf16.gmra.mxu0 %v619
        %v792 = vpop.f32.mrf.mxu0
        %v793 = vadd.f32 0.0, %v792
        %v794 = vpop.f32.mrf.mxu0
        %v795 = vadd.f32 0.0, %v794
        %796 = vmatmul.bf16.gmra.mxu0 %v622
        %v797 = vpop.f32.mrf.mxu0
        %v798 = vadd.f32 0.0, %v797
        %v799 = vpop.f32.mrf.mxu0
        %v800 = vadd.f32 0.0, %v799
        %801 = vdwg.mxu0
        %802 = vmatpush.bf16.msra.mxu0 0
        %803 = vmatpush.bf16.msra.mxu0 0
        %804 = vmatpush.bf16.msra.mxu0 0
        %805 = vmatpush.bf16.msra.mxu0 0
        %806 = vmatpush.bf16.msra.mxu0 0
        %807 = vmatpush.bf16.msra.mxu0 0
        %808 = vmatpush.bf16.msra.mxu0 0
        %809 = vmatpush.bf16.msra.mxu0 %v569
        %810 = vmatmul.bf16.gmra.mxu0 %v577
        %v811 = vpop.f32.mrf.mxu0
        %v812 = vadd.f32 0.0, %v811
        %v813 = vpop.f32.mrf.mxu0
        %v814 = vadd.f32 0.0, %v813
        %815 = vmatmul.bf16.gmra.mxu0 %v580
        %v816 = vpop.f32.mrf.mxu0
        %v817 = vadd.f32 0.0, %v816
        %v818 = vpop.f32.mrf.mxu0
        %v819 = vadd.f32 0.0, %v818
        %820 = vmatmul.bf16.gmra.mxu0 %v583
        %v821 = vpop.f32.mrf.mxu0
        %v822 = vadd.f32 0.0, %v821
        %v823 = vpop.f32.mrf.mxu0
        %v824 = vadd.f32 0.0, %v823
        %825 = vmatmul.bf16.gmra.mxu0 %v586
        %v826 = vpop.f32.mrf.mxu0
        %v827 = vadd.f32 0.0, %v826
        %v828 = vpop.f32.mrf.mxu0
        %v829 = vadd.f32 0.0, %v828
        %830 = vmatmul.bf16.gmra.mxu0 %v589
        %v831 = vpop.f32.mrf.mxu0
        %v832 = vadd.f32 0.0, %v831
        %v833 = vpop.f32.mrf.mxu0
        %v834 = vadd.f32 0.0, %v833
        %835 = vmatmul.bf16.gmra.mxu0 %v592
        %v836 = vpop.f32.mrf.mxu0
        %v837 = vadd.f32 0.0, %v836
        %v838 = vpop.f32.mrf.mxu0
        %v839 = vadd.f32 0.0, %v838
        %840 = vmatmul.bf16.gmra.mxu0 %v595
        %v841 = vpop.f32.mrf.mxu0
        %v842 = vadd.f32 0.0, %v841
        %v843 = vpop.f32.mrf.mxu0
        %v844 = vadd.f32 0.0, %v843
        %845 = vmatmul.bf16.gmra.mxu0 %v598
        %v846 = vpop.f32.mrf.mxu0
        %v847 = vadd.f32 0.0, %v846
        %v848 = vpop.f32.mrf.mxu0
        %v849 = vadd.f32 0.0, %v848
        %850 = vmatmul.bf16.gmra.mxu0 %v601
        %v851 = vpop.f32.mrf.mxu0
        %v852 = vadd.f32 0.0, %v851
        %v853 = vpop.f32.mrf.mxu0
        %v854 = vadd.f32 0.0, %v853
        %855 = vmatmul.bf16.gmra.mxu0 %v604
        %v856 = vpop.f32.mrf.mxu0
        %v857 = vadd.f32 0.0, %v856
        %v858 = vpop.f32.mrf.mxu0
        %v859 = vadd.f32 0.0, %v858
        %860 = vmatmul.bf16.gmra.mxu0 %v607
        %v861 = vpop.f32.mrf.mxu0
        %v862 = vadd.f32 0.0, %v861
        %v863 = vpop.f32.mrf.mxu0
        %v864 = vadd.f32 0.0, %v863
        %865 = vmatmul.bf16.gmra.mxu0 %v610
        %v866 = vpop.f32.mrf.mxu0
        %v867 = vadd.f32 0.0, %v866
        %v868 = vpop.f32.mrf.mxu0
        %v869 = vadd.f32 0.0, %v868
        %870 = vmatmul.bf16.gmra.mxu0 %v613
        %v871 = vpop.f32.mrf.mxu0
        %v872 = vadd.f32 0.0, %v871
        %v873 = vpop.f32.mrf.mxu0
        %v874 = vadd.f32 0.0, %v873
        %875 = vmatmul.bf16.gmra.mxu0 %v616
        %v876 = vpop.f32.mrf.mxu0
        %v877 = vadd.f32 0.0, %v876
        %v878 = vpop.f32.mrf.mxu0
        %v879 = vadd.f32 0.0, %v878
        %880 = vmatmul.bf16.gmra.mxu0 %v619
        %v881 = vpop.f32.mrf.mxu0
        %v882 = vadd.f32 0.0, %v881
        %v883 = vpop.f32.mrf.mxu0
        %v884 = vadd.f32 0.0, %v883
        %885 = vmatmul.bf16.gmra.mxu0 %v622
        %v886 = vpop.f32.mrf.mxu0
        %v887 = vadd.f32 0.0, %v886
        %v888 = vpop.f32.mrf.mxu0
        %v889 = vadd.f32 0.0, %v888
        %890 = vdwg.mxu0
        %891 = vmatpush.bf16.msra.mxu0 0
        %892 = vmatpush.bf16.msra.mxu0 0
        %893 = vmatpush.bf16.msra.mxu0 0
        %894 = vmatpush.bf16.msra.mxu0 0
        %895 = vmatpush.bf16.msra.mxu0 0
        %896 = vmatpush.bf16.msra.mxu0 0
        %897 = vmatpush.bf16.msra.mxu0 0
        %898 = vmatpush.bf16.msra.mxu0 %v570
        %899 = vmatmul.bf16.gmra.mxu0 %v577
        %v900 = vpop.f32.mrf.mxu0
        %v901 = vadd.f32 0.0, %v900
        %v902 = vpop.f32.mrf.mxu0
        %v903 = vadd.f32 0.0, %v902
        %904 = vmatmul.bf16.gmra.mxu0 %v580
        %v905 = vpop.f32.mrf.mxu0
        %v906 = vadd.f32 0.0, %v905
        %v907 = vpop.f32.mrf.mxu0
        %v908 = vadd.f32 0.0, %v907
        %909 = vmatmul.bf16.gmra.mxu0 %v583
        %v910 = vpop.f32.mrf.mxu0
        %v911 = vadd.f32 0.0, %v910
        %v912 = vpop.f32.mrf.mxu0
        %v913 = vadd.f32 0.0, %v912
        %914 = vmatmul.bf16.gmra.mxu0 %v586
        %v915 = vpop.f32.mrf.mxu0
        %v916 = vadd.f32 0.0, %v915
        %v917 = vpop.f32.mrf.mxu0
        %v918 = vadd.f32 0.0, %v917
        %919 = vmatmul.bf16.gmra.mxu0 %v589
        %v920 = vpop.f32.mrf.mxu0
        %v921 = vadd.f32 0.0, %v920
        %v922 = vpop.f32.mrf.mxu0
        %v923 = vadd.f32 0.0, %v922
        %924 = vmatmul.bf16.gmra.mxu0 %v592
        %v925 = vpop.f32.mrf.mxu0
        %v926 = vadd.f32 0.0, %v925
        %v927 = vpop.f32.mrf.mxu0
        %v928 = vadd.f32 0.0, %v927
        %929 = vmatmul.bf16.gmra.mxu0 %v595
        %v930 = vpop.f32.mrf.mxu0
        %v931 = vadd.f32 0.0, %v930
        %v932 = vpop.f32.mrf.mxu0
        %v933 = vadd.f32 0.0, %v932
        %934 = vmatmul.bf16.gmra.mxu0 %v598
        %v935 = vpop.f32.mrf.mxu0
        %v936 = vadd.f32 0.0, %v935
        %v937 = vpop.f32.mrf.mxu0
        %v938 = vadd.f32 0.0, %v937
        %939 = vmatmul.bf16.gmra.mxu0 %v601
        %v940 = vpop.f32.mrf.mxu0
        %v941 = vadd.f32 0.0, %v940
        %v942 = vpop.f32.mrf.mxu0
        %v943 = vadd.f32 0.0, %v942
        %944 = vmatmul.bf16.gmra.mxu0 %v604
        %v945 = vpop.f32.mrf.mxu0
        %v946 = vadd.f32 0.0, %v945
        %v947 = vpop.f32.mrf.mxu0
        %v948 = vadd.f32 0.0, %v947
        %949 = vmatmul.bf16.gmra.mxu0 %v607
        %v950 = vpop.f32.mrf.mxu0
        %v951 = vadd.f32 0.0, %v950
        %v952 = vpop.f32.mrf.mxu0
        %v953 = vadd.f32 0.0, %v952
        %954 = vmatmul.bf16.gmra.mxu0 %v610
        %v955 = vpop.f32.mrf.mxu0
        %v956 = vadd.f32 0.0, %v955
        %v957 = vpop.f32.mrf.mxu0
        %v958 = vadd.f32 0.0, %v957
        %959 = vmatmul.bf16.gmra.mxu0 %v613
        %v960 = vpop.f32.mrf.mxu0
        %v961 = vadd.f32 0.0, %v960
        %v962 = vpop.f32.mrf.mxu0
        %v963 = vadd.f32 0.0, %v962
        %964 = vmatmul.bf16.gmra.mxu0 %v616
        %v965 = vpop.f32.mrf.mxu0
        %v966 = vadd.f32 0.0, %v965
        %v967 = vpop.f32.mrf.mxu0
        %v968 = vadd.f32 0.0, %v967
        %969 = vmatmul.bf16.gmra.mxu0 %v619
        %v970 = vpop.f32.mrf.mxu0
        %v971 = vadd.f32 0.0, %v970
        %v972 = vpop.f32.mrf.mxu0
        %v973 = vadd.f32 0.0, %v972
        %974 = vmatmul.bf16.gmra.mxu0 %v622
        %v975 = vpop.f32.mrf.mxu0
        %v976 = vadd.f32 0.0, %v975
        %v977 = vpop.f32.mrf.mxu0
        %v978 = vadd.f32 0.0, %v977
        %979 = vdwg.mxu0
        %v980 = vmax.f32 %v634, %v723
        %v981 = vmax.f32 %v980, %v812
        %v982 = vmax.f32 %v981, %v901
        %983 = vmax.xlane.f32.xlu0 %v982
        %v984 = vpop.xlane.xlu0 %983
        %v985 = vmax.f32 %v636, %v725
        %v986 = vmax.f32 %v985, %v814
        %v987 = vmax.f32 %v986, %v903
        %988 = vmax.xlane.f32.xlu0 %v987
        %v989 = vpop.xlane.xlu0 %988
        %v990 = vmax.f32 %v639, %v728
        %v991 = vmax.f32 %v990, %v817
        %v992 = vmax.f32 %v991, %v906
        %993 = vmax.xlane.f32.xlu0 %v992
        %v994 = vpop.xlane.xlu0 %993
        %v995 = vmax.f32 %v641, %v730
        %v996 = vmax.f32 %v995, %v819
        %v997 = vmax.f32 %v996, %v908
        %998 = vmax.xlane.f32.xlu0 %v997
        %v999 = vpop.xlane.xlu0 %998
        %v1000 = vmax.f32 %v644, %v733
        %v1001 = vmax.f32 %v1000, %v822
        %v1002 = vmax.f32 %v1001, %v911
        %1003 = vmax.xlane.f32.xlu0 %v1002
        %v1004 = vpop.xlane.xlu0 %1003
        %v1005 = vmax.f32 %v646, %v735
        %v1006 = vmax.f32 %v1005, %v824
        %v1007 = vmax.f32 %v1006, %v913
        %1008 = vmax.xlane.f32.xlu0 %v1007
        %v1009 = vpop.xlane.xlu0 %1008
        %v1010 = vmax.f32 %v649, %v738
        %v1011 = vmax.f32 %v1010, %v827
        %v1012 = vmax.f32 %v1011, %v916
        %1013 = vmax.xlane.f32.xlu0 %v1012
        %v1014 = vpop.xlane.xlu0 %1013
        %v1015 = vmax.f32 %v651, %v740
        %v1016 = vmax.f32 %v1015, %v829
        %v1017 = vmax.f32 %v1016, %v918
        %1018 = vmax.xlane.f32.xlu0 %v1017
        %v1019 = vpop.xlane.xlu0 %1018
        %v1020 = vmax.f32 %v654, %v743
        %v1021 = vmax.f32 %v1020, %v832
        %v1022 = vmax.f32 %v1021, %v921
        %1023 = vmax.xlane.f32.xlu0 %v1022
        %v1024 = vpop.xlane.xlu0 %1023
        %v1025 = vmax.f32 %v656, %v745
        %v1026 = vmax.f32 %v1025, %v834
        %v1027 = vmax.f32 %v1026, %v923
        %1028 = vmax.xlane.f32.xlu0 %v1027
        %v1029 = vpop.xlane.xlu0 %1028
        %v1030 = vmax.f32 %v659, %v748
        %v1031 = vmax.f32 %v1030, %v837
        %v1032 = vmax.f32 %v1031, %v926
        %1033 = vmax.xlane.f32.xlu0 %v1032
        %v1034 = vpop.xlane.xlu0 %1033
        %v1035 = vmax.f32 %v661, %v750
        %v1036 = vmax.f32 %v1035, %v839
        %v1037 = vmax.f32 %v1036, %v928
        %1038 = vmax.xlane.f32.xlu0 %v1037
        %v1039 = vpop.xlane.xlu0 %1038
        %v1040 = vmax.f32 %v664, %v753
        %v1041 = vmax.f32 %v1040, %v842
        %v1042 = vmax.f32 %v1041, %v931
        %1043 = vmax.xlane.f32.xlu0 %v1042
        %v1044 = vpop.xlane.xlu0 %1043
        %v1045 = vmax.f32 %v666, %v755
        %v1046 = vmax.f32 %v1045, %v844
        %v1047 = vmax.f32 %v1046, %v933
        %1048 = vmax.xlane.f32.xlu0 %v1047
        %v1049 = vpop.xlane.xlu0 %1048
        %v1050 = vmax.f32 %v669, %v758
        %v1051 = vmax.f32 %v1050, %v847
        %v1052 = vmax.f32 %v1051, %v936
        %1053 = vmax.xlane.f32.xlu0 %v1052
        %v1054 = vpop.xlane.xlu0 %1053
        %v1055 = vmax.f32 %v671, %v760
        %v1056 = vmax.f32 %v1055, %v849
        %v1057 = vmax.f32 %v1056, %v938
        %1058 = vmax.xlane.f32.xlu0 %v1057
        %v1059 = vpop.xlane.xlu0 %1058
        %v1060 = vmax.f32 %v674, %v763
        %v1061 = vmax.f32 %v1060, %v852
        %v1062 = vmax.f32 %v1061, %v941
        %1063 = vmax.xlane.f32.xlu0 %v1062
        %v1064 = vpop.xlane.xlu0 %1063
        %v1065 = vmax.f32 %v676, %v765
        %v1066 = vmax.f32 %v1065, %v854
        %v1067 = vmax.f32 %v1066, %v943
        %1068 = vmax.xlane.f32.xlu0 %v1067
        %v1069 = vpop.xlane.xlu0 %1068
        %v1070 = vmax.f32 %v679, %v768
        %v1071 = vmax.f32 %v1070, %v857
        %v1072 = vmax.f32 %v1071, %v946
        %1073 = vmax.xlane.f32.xlu0 %v1072
        %v1074 = vpop.xlane.xlu0 %1073
        %v1075 = vmax.f32 %v681, %v770
        %v1076 = vmax.f32 %v1075, %v859
        %v1077 = vmax.f32 %v1076, %v948
        %1078 = vmax.xlane.f32.xlu0 %v1077
        %v1079 = vpop.xlane.xlu0 %1078
        %v1080 = vmax.f32 %v684, %v773
        %v1081 = vmax.f32 %v1080, %v862
        %v1082 = vmax.f32 %v1081, %v951
        %1083 = vmax.xlane.f32.xlu0 %v1082
        %v1084 = vpop.xlane.xlu0 %1083
        %v1085 = vmax.f32 %v686, %v775
        %v1086 = vmax.f32 %v1085, %v864
        %v1087 = vmax.f32 %v1086, %v953
        %1088 = vmax.xlane.f32.xlu0 %v1087
        %v1089 = vpop.xlane.xlu0 %1088
        %v1090 = vmax.f32 %v689, %v778
        %v1091 = vmax.f32 %v1090, %v867
        %v1092 = vmax.f32 %v1091, %v956
        %1093 = vmax.xlane.f32.xlu0 %v1092
        %v1094 = vpop.xlane.xlu0 %1093
        %v1095 = vmax.f32 %v691, %v780
        %v1096 = vmax.f32 %v1095, %v869
        %v1097 = vmax.f32 %v1096, %v958
        %1098 = vmax.xlane.f32.xlu0 %v1097
        %v1099 = vpop.xlane.xlu0 %1098
        %v1100 = vmax.f32 %v694, %v783
        %v1101 = vmax.f32 %v1100, %v872
        %v1102 = vmax.f32 %v1101, %v961
        %1103 = vmax.xlane.f32.xlu0 %v1102
        %v1104 = vpop.xlane.xlu0 %1103
        %v1105 = vmax.f32 %v696, %v785
        %v1106 = vmax.f32 %v1105, %v874
        %v1107 = vmax.f32 %v1106, %v963
        %1108 = vmax.xlane.f32.xlu0 %v1107
        %v1109 = vpop.xlane.xlu0 %1108
        %v1110 = vmax.f32 %v699, %v788
        %v1111 = vmax.f32 %v1110, %v877
        %v1112 = vmax.f32 %v1111, %v966
        %1113 = vmax.xlane.f32.xlu0 %v1112
        %v1114 = vpop.xlane.xlu0 %1113
        %v1115 = vmax.f32 %v701, %v790
        %v1116 = vmax.f32 %v1115, %v879
        %v1117 = vmax.f32 %v1116, %v968
        %1118 = vmax.xlane.f32.xlu0 %v1117
        %v1119 = vpop.xlane.xlu0 %1118
        %v1120 = vmax.f32 %v704, %v793
        %v1121 = vmax.f32 %v1120, %v882
        %v1122 = vmax.f32 %v1121, %v971
        %1123 = vmax.xlane.f32.xlu0 %v1122
        %v1124 = vpop.xlane.xlu0 %1123
        %v1125 = vmax.f32 %v706, %v795
        %v1126 = vmax.f32 %v1125, %v884
        %v1127 = vmax.f32 %v1126, %v973
        %1128 = vmax.xlane.f32.xlu0 %v1127
        %v1129 = vpop.xlane.xlu0 %1128
        %v1130 = vmax.f32 %v709, %v798
        %v1131 = vmax.f32 %v1130, %v887
        %v1132 = vmax.f32 %v1131, %v976
        %1133 = vmax.xlane.f32.xlu0 %v1132
        %v1134 = vpop.xlane.xlu0 %1133
        %v1135 = vmax.f32 %v711, %v800
        %v1136 = vmax.f32 %v1135, %v889
        %v1137 = vmax.f32 %v1136, %v978
        %1138 = vmax.xlane.f32.xlu0 %v1137
        %v1139 = vpop.xlane.xlu0 %1138
        %v1140 = vsub.f32 %v634, %v984
        %v1141 = vsub.f32 %v723, %v984
        %v1142 = vsub.f32 %v812, %v984
        %v1143 = vsub.f32 %v901, %v984
        %v1144 = vsub.f32 %v636, %v989
        %v1145 = vsub.f32 %v725, %v989
        %v1146 = vsub.f32 %v814, %v989
        %v1147 = vsub.f32 %v903, %v989
        %v1148 = vsub.f32 %v639, %v994
        %v1149 = vsub.f32 %v728, %v994
        %v1150 = vsub.f32 %v817, %v994
        %v1151 = vsub.f32 %v906, %v994
        %v1152 = vsub.f32 %v641, %v999
        %v1153 = vsub.f32 %v730, %v999
        %v1154 = vsub.f32 %v819, %v999
        %v1155 = vsub.f32 %v908, %v999
        %v1156 = vsub.f32 %v644, %v1004
        %v1157 = vsub.f32 %v733, %v1004
        %v1158 = vsub.f32 %v822, %v1004
        %v1159 = vsub.f32 %v911, %v1004
        %v1160 = vsub.f32 %v646, %v1009
        %v1161 = vsub.f32 %v735, %v1009
        %v1162 = vsub.f32 %v824, %v1009
        %v1163 = vsub.f32 %v913, %v1009
        %v1164 = vsub.f32 %v649, %v1014
        %v1165 = vsub.f32 %v738, %v1014
        %v1166 = vsub.f32 %v827, %v1014
        %v1167 = vsub.f32 %v916, %v1014
        %v1168 = vsub.f32 %v651, %v1019
        %v1169 = vsub.f32 %v740, %v1019
        %v1170 = vsub.f32 %v829, %v1019
        %v1171 = vsub.f32 %v918, %v1019
        %v1172 = vsub.f32 %v654, %v1024
        %v1173 = vsub.f32 %v743, %v1024
        %v1174 = vsub.f32 %v832, %v1024
        %v1175 = vsub.f32 %v921, %v1024
        %v1176 = vsub.f32 %v656, %v1029
        %v1177 = vsub.f32 %v745, %v1029
        %v1178 = vsub.f32 %v834, %v1029
        %v1179 = vsub.f32 %v923, %v1029
        %v1180 = vsub.f32 %v659, %v1034
        %v1181 = vsub.f32 %v748, %v1034
        %v1182 = vsub.f32 %v837, %v1034
        %v1183 = vsub.f32 %v926, %v1034
        %v1184 = vsub.f32 %v661, %v1039
        %v1185 = vsub.f32 %v750, %v1039
        %v1186 = vsub.f32 %v839, %v1039
        %v1187 = vsub.f32 %v928, %v1039
        %v1188 = vsub.f32 %v664, %v1044
        %v1189 = vsub.f32 %v753, %v1044
        %v1190 = vsub.f32 %v842, %v1044
        %v1191 = vsub.f32 %v931, %v1044
        %v1192 = vsub.f32 %v666, %v1049
        %v1193 = vsub.f32 %v755, %v1049
        %v1194 = vsub.f32 %v844, %v1049
        %v1195 = vsub.f32 %v933, %v1049
        %v1196 = vsub.f32 %v669, %v1054
        %v1197 = vsub.f32 %v758, %v1054
        %v1198 = vsub.f32 %v847, %v1054
        %v1199 = vsub.f32 %v936, %v1054
        %v1200 = vsub.f32 %v671, %v1059
        %v1201 = vsub.f32 %v760, %v1059
        %v1202 = vsub.f32 %v849, %v1059
        %v1203 = vsub.f32 %v938, %v1059
        %v1204 = vsub.f32 %v674, %v1064
        %v1205 = vsub.f32 %v763, %v1064
        %v1206 = vsub.f32 %v852, %v1064
        %v1207 = vsub.f32 %v941, %v1064
        %v1208 = vsub.f32 %v676, %v1069
        %v1209 = vsub.f32 %v765, %v1069
        %v1210 = vsub.f32 %v854, %v1069
        %v1211 = vsub.f32 %v943, %v1069
        %v1212 = vsub.f32 %v679, %v1074
        %v1213 = vsub.f32 %v768, %v1074
        %v1214 = vsub.f32 %v857, %v1074
        %v1215 = vsub.f32 %v946, %v1074
        %v1216 = vsub.f32 %v681, %v1079
        %v1217 = vsub.f32 %v770, %v1079
        %v1218 = vsub.f32 %v859, %v1079
        %v1219 = vsub.f32 %v948, %v1079
        %v1220 = vsub.f32 %v684, %v1084
        %v1221 = vsub.f32 %v773, %v1084
        %v1222 = vsub.f32 %v862, %v1084
        %v1223 = vsub.f32 %v951, %v1084
        %v1224 = vsub.f32 %v686, %v1089
        %v1225 = vsub.f32 %v775, %v1089
        %v1226 = vsub.f32 %v864, %v1089
        %v1227 = vsub.f32 %v953, %v1089
        %v1228 = vsub.f32 %v689, %v1094
        %v1229 = vsub.f32 %v778, %v1094
        %v1230 = vsub.f32 %v867, %v1094
        %v1231 = vsub.f32 %v956, %v1094
        %v1232 = vsub.f32 %v691, %v1099
        %v1233 = vsub.f32 %v780, %v1099
        %v1234 = vsub.f32 %v869, %v1099
        %v1235 = vsub.f32 %v958, %v1099
        %v1236 = vsub.f32 %v694, %v1104
        %v1237 = vsub.f32 %v783, %v1104
        %v1238 = vsub.f32 %v872, %v1104
        %v1239 = vsub.f32 %v961, %v1104
        %v1240 = vsub.f32 %v696, %v1109
        %v1241 = vsub.f32 %v785, %v1109
        %v1242 = vsub.f32 %v874, %v1109
        %v1243 = vsub.f32 %v963, %v1109
        %v1244 = vsub.f32 %v699, %v1114
        %v1245 = vsub.f32 %v788, %v1114
        %v1246 = vsub.f32 %v877, %v1114
        %v1247 = vsub.f32 %v966, %v1114
        %v1248 = vsub.f32 %v701, %v1119
        %v1249 = vsub.f32 %v790, %v1119
        %v1250 = vsub.f32 %v879, %v1119
        %v1251 = vsub.f32 %v968, %v1119
        %v1252 = vsub.f32 %v704, %v1124
        %v1253 = vsub.f32 %v793, %v1124
        %v1254 = vsub.f32 %v882, %v1124
        %v1255 = vsub.f32 %v971, %v1124
        %v1256 = vsub.f32 %v706, %v1129
        %v1257 = vsub.f32 %v795, %v1129
        %v1258 = vsub.f32 %v884, %v1129
        %v1259 = vsub.f32 %v973, %v1129
        %v1260 = vsub.f32 %v709, %v1134
        %v1261 = vsub.f32 %v798, %v1134
        %v1262 = vsub.f32 %v887, %v1134
        %v1263 = vsub.f32 %v976, %v1134
        %v1264 = vsub.f32 %v711, %v1139
        %v1265 = vsub.f32 %v800, %v1139
        %v1266 = vsub.f32 %v889, %v1139
        %v1267 = vsub.f32 %v978, %v1139
        %v1268 = vmul.f32 %v1140, 1.442695
        %v1269 = vpow.pop %v1268
        %v1270 = vmul.f32 %v1141, 1.442695
        %v1271 = vpow.pop %v1270
        %v1272 = vmul.f32 %v1142, 1.442695
        %v1273 = vpow.pop %v1272
        %v1274 = vmul.f32 %v1143, 1.442695
        %v1275 = vpow.pop %v1274
        %v1276 = vmul.f32 %v1144, 1.442695
        %v1277 = vpow.pop %v1276
        %v1278 = vmul.f32 %v1145, 1.442695
        %v1279 = vpow.pop %v1278
        %v1280 = vmul.f32 %v1146, 1.442695
        %v1281 = vpow.pop %v1280
        %v1282 = vmul.f32 %v1147, 1.442695
        %v1283 = vpow.pop %v1282
        %v1284 = vmul.f32 %v1148, 1.442695
        %v1285 = vpow.pop %v1284
        %v1286 = vmul.f32 %v1149, 1.442695
        %v1287 = vpow.pop %v1286
        %v1288 = vmul.f32 %v1150, 1.442695
        %v1289 = vpow.pop %v1288
        %v1290 = vmul.f32 %v1151, 1.442695
        %v1291 = vpow.pop %v1290
        %v1292 = vmul.f32 %v1152, 1.442695
        %v1293 = vpow.pop %v1292
        %v1294 = vmul.f32 %v1153, 1.442695
        %v1295 = vpow.pop %v1294
        %v1296 = vmul.f32 %v1154, 1.442695
        %v1297 = vpow.pop %v1296
        %v1298 = vmul.f32 %v1155, 1.442695
        %v1299 = vpow.pop %v1298
        %v1300 = vmul.f32 %v1156, 1.442695
        %v1301 = vpow.pop %v1300
        %v1302 = vmul.f32 %v1157, 1.442695
        %v1303 = vpow.pop %v1302
        %v1304 = vmul.f32 %v1158, 1.442695
        %v1305 = vpow.pop %v1304
        %v1306 = vmul.f32 %v1159, 1.442695
        %v1307 = vpow.pop %v1306
        %v1308 = vmul.f32 %v1160, 1.442695
        %v1309 = vpow.pop %v1308
        %v1310 = vmul.f32 %v1161, 1.442695
        %v1311 = vpow.pop %v1310
        %v1312 = vmul.f32 %v1162, 1.442695
        %v1313 = vpow.pop %v1312
        %v1314 = vmul.f32 %v1163, 1.442695
        %v1315 = vpow.pop %v1314
        %v1316 = vmul.f32 %v1164, 1.442695
        %v1317 = vpow.pop %v1316
        %v1318 = vmul.f32 %v1165, 1.442695
        %v1319 = vpow.pop %v1318
        %v1320 = vmul.f32 %v1166, 1.442695
        %v1321 = vpow.pop %v1320
        %v1322 = vmul.f32 %v1167, 1.442695
        %v1323 = vpow.pop %v1322
        %v1324 = vmul.f32 %v1168, 1.442695
        %v1325 = vpow.pop %v1324
        %v1326 = vmul.f32 %v1169, 1.442695
        %v1327 = vpow.pop %v1326
        %v1328 = vmul.f32 %v1170, 1.442695
        %v1329 = vpow.pop %v1328
        %v1330 = vmul.f32 %v1171, 1.442695
        %v1331 = vpow.pop %v1330
        %v1332 = vmul.f32 %v1172, 1.442695
        %v1333 = vpow.pop %v1332
        %v1334 = vmul.f32 %v1173, 1.442695
        %v1335 = vpow.pop %v1334
        %v1336 = vmul.f32 %v1174, 1.442695
        %v1337 = vpow.pop %v1336
        %v1338 = vmul.f32 %v1175, 1.442695
        %v1339 = vpow.pop %v1338
        %v1340 = vmul.f32 %v1176, 1.442695
        %v1341 = vpow.pop %v1340
        %v1342 = vmul.f32 %v1177, 1.442695
        %v1343 = vpow.pop %v1342
        %v1344 = vmul.f32 %v1178, 1.442695
        %v1345 = vpow.pop %v1344
        %v1346 = vmul.f32 %v1179, 1.442695
        %v1347 = vpow.pop %v1346
        %v1348 = vmul.f32 %v1180, 1.442695
        %v1349 = vpow.pop %v1348
        %v1350 = vmul.f32 %v1181, 1.442695
        %v1351 = vpow.pop %v1350
        %v1352 = vmul.f32 %v1182, 1.442695
        %v1353 = vpow.pop %v1352
        %v1354 = vmul.f32 %v1183, 1.442695
        %v1355 = vpow.pop %v1354
        %v1356 = vmul.f32 %v1184, 1.442695
        %v1357 = vpow.pop %v1356
        %v1358 = vmul.f32 %v1185, 1.442695
        %v1359 = vpow.pop %v1358
        %v1360 = vmul.f32 %v1186, 1.442695
        %v1361 = vpow.pop %v1360
        %v1362 = vmul.f32 %v1187, 1.442695
        %v1363 = vpow.pop %v1362
        %v1364 = vmul.f32 %v1188, 1.442695
        %v1365 = vpow.pop %v1364
        %v1366 = vmul.f32 %v1189, 1.442695
        %v1367 = vpow.pop %v1366
        %v1368 = vmul.f32 %v1190, 1.442695
        %v1369 = vpow.pop %v1368
        %v1370 = vmul.f32 %v1191, 1.442695
        %v1371 = vpow.pop %v1370
        %v1372 = vmul.f32 %v1192, 1.442695
        %v1373 = vpow.pop %v1372
        %v1374 = vmul.f32 %v1193, 1.442695
        %v1375 = vpow.pop %v1374
        %v1376 = vmul.f32 %v1194, 1.442695
        %v1377 = vpow.pop %v1376
        %v1378 = vmul.f32 %v1195, 1.442695
        %v1379 = vpow.pop %v1378
        %v1380 = vmul.f32 %v1196, 1.442695
        %v1381 = vpow.pop %v1380
        %v1382 = vmul.f32 %v1197, 1.442695
        %v1383 = vpow.pop %v1382
        %v1384 = vmul.f32 %v1198, 1.442695
        %v1385 = vpow.pop %v1384
        %v1386 = vmul.f32 %v1199, 1.442695
        %v1387 = vpow.pop %v1386
        %v1388 = vmul.f32 %v1200, 1.442695
        %v1389 = vpow.pop %v1388
        %v1390 = vmul.f32 %v1201, 1.442695
        %v1391 = vpow.pop %v1390
        %v1392 = vmul.f32 %v1202, 1.442695
        %v1393 = vpow.pop %v1392
        %v1394 = vmul.f32 %v1203, 1.442695
        %v1395 = vpow.pop %v1394
        %v1396 = vmul.f32 %v1204, 1.442695
        %v1397 = vpow.pop %v1396
        %v1398 = vmul.f32 %v1205, 1.442695
        %v1399 = vpow.pop %v1398
        %v1400 = vmul.f32 %v1206, 1.442695
        %v1401 = vpow.pop %v1400
        %v1402 = vmul.f32 %v1207, 1.442695
        %v1403 = vpow.pop %v1402
        %v1404 = vmul.f32 %v1208, 1.442695
        %v1405 = vpow.pop %v1404
        %v1406 = vmul.f32 %v1209, 1.442695
        %v1407 = vpow.pop %v1406
        %v1408 = vmul.f32 %v1210, 1.442695
        %v1409 = vpow.pop %v1408
        %v1410 = vmul.f32 %v1211, 1.442695
        %v1411 = vpow.pop %v1410
        %v1412 = vmul.f32 %v1212, 1.442695
        %v1413 = vpow.pop %v1412
        %v1414 = vmul.f32 %v1213, 1.442695
        %v1415 = vpow.pop %v1414
        %v1416 = vmul.f32 %v1214, 1.442695
        %v1417 = vpow.pop %v1416
        %v1418 = vmul.f32 %v1215, 1.442695
        %v1419 = vpow.pop %v1418
        %v1420 = vmul.f32 %v1216, 1.442695
        %v1421 = vpow.pop %v1420
        %v1422 = vmul.f32 %v1217, 1.442695
        %v1423 = vpow.pop %v1422
        %v1424 = vmul.f32 %v1218, 1.442695
        %v1425 = vpow.pop %v1424
        %v1426 = vmul.f32 %v1219, 1.442695
        %v1427 = vpow.pop %v1426
        %v1428 = vmul.f32 %v1220, 1.442695
        %v1429 = vpow.pop %v1428
        %v1430 = vmul.f32 %v1221, 1.442695
        %v1431 = vpow.pop %v1430
        %v1432 = vmul.f32 %v1222, 1.442695
        %v1433 = vpow.pop %v1432
        %v1434 = vmul.f32 %v1223, 1.442695
        %v1435 = vpow.pop %v1434
        %v1436 = vmul.f32 %v1224, 1.442695
        %v1437 = vpow.pop %v1436
        %v1438 = vmul.f32 %v1225, 1.442695
        %v1439 = vpow.pop %v1438
        %v1440 = vmul.f32 %v1226, 1.442695
        %v1441 = vpow.pop %v1440
        %v1442 = vmul.f32 %v1227, 1.442695
        %v1443 = vpow.pop %v1442
        %v1444 = vmul.f32 %v1228, 1.442695
        %v1445 = vpow.pop %v1444
        %v1446 = vmul.f32 %v1229, 1.442695
        %v1447 = vpow.pop %v1446
        %v1448 = vmul.f32 %v1230, 1.442695
        %v1449 = vpow.pop %v1448
        %v1450 = vmul.f32 %v1231, 1.442695
        %v1451 = vpow.pop %v1450
        %v1452 = vmul.f32 %v1232, 1.442695
        %v1453 = vpow.pop %v1452
        %v1454 = vmul.f32 %v1233, 1.442695
        %v1455 = vpow.pop %v1454
        %v1456 = vmul.f32 %v1234, 1.442695
        %v1457 = vpow.pop %v1456
        %v1458 = vmul.f32 %v1235, 1.442695
        %v1459 = vpow.pop %v1458
        %v1460 = vmul.f32 %v1236, 1.442695
        %v1461 = vpow.pop %v1460
        %v1462 = vmul.f32 %v1237, 1.442695
        %v1463 = vpow.pop %v1462
        %v1464 = vmul.f32 %v1238, 1.442695
        %v1465 = vpow.pop %v1464
        %v1466 = vmul.f32 %v1239, 1.442695
        %v1467 = vpow.pop %v1466
        %v1468 = vmul.f32 %v1240, 1.442695
        %v1469 = vpow.pop %v1468
        %v1470 = vmul.f32 %v1241, 1.442695
        %v1471 = vpow.pop %v1470
        %v1472 = vmul.f32 %v1242, 1.442695
        %v1473 = vpow.pop %v1472
        %v1474 = vmul.f32 %v1243, 1.442695
        %v1475 = vpow.pop %v1474
        %v1476 = vmul.f32 %v1244, 1.442695
        %v1477 = vpow.pop %v1476
        %v1478 = vmul.f32 %v1245, 1.442695
        %v1479 = vpow.pop %v1478
        %v1480 = vmul.f32 %v1246, 1.442695
        %v1481 = vpow.pop %v1480
        %v1482 = vmul.f32 %v1247, 1.442695
        %v1483 = vpow.pop %v1482
        %v1484 = vmul.f32 %v1248, 1.442695
        %v1485 = vpow.pop %v1484
        %v1486 = vmul.f32 %v1249, 1.442695
        %v1487 = vpow.pop %v1486
        %v1488 = vmul.f32 %v1250, 1.442695
        %v1489 = vpow.pop %v1488
        %v1490 = vmul.f32 %v1251, 1.442695
        %v1491 = vpow.pop %v1490
        %v1492 = vmul.f32 %v1252, 1.442695
        %v1493 = vpow.pop %v1492
        %v1494 = vmul.f32 %v1253, 1.442695
        %v1495 = vpow.pop %v1494
        %v1496 = vmul.f32 %v1254, 1.442695
        %v1497 = vpow.pop %v1496
        %v1498 = vmul.f32 %v1255, 1.442695
        %v1499 = vpow.pop %v1498
        %v1500 = vmul.f32 %v1256, 1.442695
        %v1501 = vpow.pop %v1500
        %v1502 = vmul.f32 %v1257, 1.442695
        %v1503 = vpow.pop %v1502
        %v1504 = vmul.f32 %v1258, 1.442695
        %v1505 = vpow.pop %v1504
        %v1506 = vmul.f32 %v1259, 1.442695
        %v1507 = vpow.pop %v1506
        %v1508 = vmul.f32 %v1260, 1.442695
        %v1509 = vpow.pop %v1508
        %v1510 = vmul.f32 %v1261, 1.442695
        %v1511 = vpow.pop %v1510
        %v1512 = vmul.f32 %v1262, 1.442695
        %v1513 = vpow.pop %v1512
        %v1514 = vmul.f32 %v1263, 1.442695
        %v1515 = vpow.pop %v1514
        %v1516 = vmul.f32 %v1264, 1.442695
        %v1517 = vpow.pop %v1516
        %v1518 = vmul.f32 %v1265, 1.442695
        %v1519 = vpow.pop %v1518
        %v1520 = vmul.f32 %v1266, 1.442695
        %v1521 = vpow.pop %v1520
        %v1522 = vmul.f32 %v1267, 1.442695
        %v1523 = vpow.pop %v1522
        %v1524 = vadd.f32 %v1269, %v1271
        %v1525 = vadd.f32 %v1524, %v1273
        %v1526 = vadd.f32 %v1525, %v1275
        %1527 = vadd.xlane.f32.xlu0 %v1526
        %v1528 = vpop.xlane.xlu0 %1527
        %v1529 = vadd.f32 %v1277, %v1279
        %v1530 = vadd.f32 %v1529, %v1281
        %v1531 = vadd.f32 %v1530, %v1283
        %1532 = vadd.xlane.f32.xlu0 %v1531
        %v1533 = vpop.xlane.xlu0 %1532
        %v1534 = vadd.f32 %v1285, %v1287
        %v1535 = vadd.f32 %v1534, %v1289
        %v1536 = vadd.f32 %v1535, %v1291
        %1537 = vadd.xlane.f32.xlu0 %v1536
        %v1538 = vpop.xlane.xlu0 %1537
        %v1539 = vadd.f32 %v1293, %v1295
        %v1540 = vadd.f32 %v1539, %v1297
        %v1541 = vadd.f32 %v1540, %v1299
        %1542 = vadd.xlane.f32.xlu0 %v1541
        %v1543 = vpop.xlane.xlu0 %1542
        %v1544 = vadd.f32 %v1301, %v1303
        %v1545 = vadd.f32 %v1544, %v1305
        %v1546 = vadd.f32 %v1545, %v1307
        %1547 = vadd.xlane.f32.xlu0 %v1546
        %v1548 = vpop.xlane.xlu0 %1547
        %v1549 = vadd.f32 %v1309, %v1311
        %v1550 = vadd.f32 %v1549, %v1313
        %v1551 = vadd.f32 %v1550, %v1315
        %1552 = vadd.xlane.f32.xlu0 %v1551
        %v1553 = vpop.xlane.xlu0 %1552
        %v1554 = vadd.f32 %v1317, %v1319
        %v1555 = vadd.f32 %v1554, %v1321
        %v1556 = vadd.f32 %v1555, %v1323
        %1557 = vadd.xlane.f32.xlu0 %v1556
        %v1558 = vpop.xlane.xlu0 %1557
        %v1559 = vadd.f32 %v1325, %v1327
        %v1560 = vadd.f32 %v1559, %v1329
        %v1561 = vadd.f32 %v1560, %v1331
        %1562 = vadd.xlane.f32.xlu0 %v1561
        %v1563 = vpop.xlane.xlu0 %1562
        %v1564 = vadd.f32 %v1333, %v1335
        %v1565 = vadd.f32 %v1564, %v1337
        %v1566 = vadd.f32 %v1565, %v1339
        %1567 = vadd.xlane.f32.xlu0 %v1566
        %v1568 = vpop.xlane.xlu0 %1567
        %v1569 = vadd.f32 %v1341, %v1343
        %v1570 = vadd.f32 %v1569, %v1345
        %v1571 = vadd.f32 %v1570, %v1347
        %1572 = vadd.xlane.f32.xlu0 %v1571
        %v1573 = vpop.xlane.xlu0 %1572
        %v1574 = vadd.f32 %v1349, %v1351
        %v1575 = vadd.f32 %v1574, %v1353
        %v1576 = vadd.f32 %v1575, %v1355
        %1577 = vadd.xlane.f32.xlu0 %v1576
        %v1578 = vpop.xlane.xlu0 %1577
        %v1579 = vadd.f32 %v1357, %v1359
        %v1580 = vadd.f32 %v1579, %v1361
        %v1581 = vadd.f32 %v1580, %v1363
        %1582 = vadd.xlane.f32.xlu0 %v1581
        %v1583 = vpop.xlane.xlu0 %1582
        %v1584 = vadd.f32 %v1365, %v1367
        %v1585 = vadd.f32 %v1584, %v1369
        %v1586 = vadd.f32 %v1585, %v1371
        %1587 = vadd.xlane.f32.xlu0 %v1586
        %v1588 = vpop.xlane.xlu0 %1587
        %v1589 = vadd.f32 %v1373, %v1375
        %v1590 = vadd.f32 %v1589, %v1377
        %v1591 = vadd.f32 %v1590, %v1379
        %1592 = vadd.xlane.f32.xlu0 %v1591
        %v1593 = vpop.xlane.xlu0 %1592
        %v1594 = vadd.f32 %v1381, %v1383
        %v1595 = vadd.f32 %v1594, %v1385
        %v1596 = vadd.f32 %v1595, %v1387
        %1597 = vadd.xlane.f32.xlu0 %v1596
        %v1598 = vpop.xlane.xlu0 %1597
        %v1599 = vadd.f32 %v1389, %v1391
        %v1600 = vadd.f32 %v1599, %v1393
        %v1601 = vadd.f32 %v1600, %v1395
        %1602 = vadd.xlane.f32.xlu0 %v1601
        %v1603 = vpop.xlane.xlu0 %1602
        %v1604 = vadd.f32 %v1397, %v1399
        %v1605 = vadd.f32 %v1604, %v1401
        %v1606 = vadd.f32 %v1605, %v1403
        %1607 = vadd.xlane.f32.xlu0 %v1606
        %v1608 = vpop.xlane.xlu0 %1607
        %v1609 = vadd.f32 %v1405, %v1407
        %v1610 = vadd.f32 %v1609, %v1409
        %v1611 = vadd.f32 %v1610, %v1411
        %1612 = vadd.xlane.f32.xlu0 %v1611
        %v1613 = vpop.xlane.xlu0 %1612
        %v1614 = vadd.f32 %v1413, %v1415
        %v1615 = vadd.f32 %v1614, %v1417
        %v1616 = vadd.f32 %v1615, %v1419
        %1617 = vadd.xlane.f32.xlu0 %v1616
        %v1618 = vpop.xlane.xlu0 %1617
        %v1619 = vadd.f32 %v1421, %v1423
        %v1620 = vadd.f32 %v1619, %v1425
        %v1621 = vadd.f32 %v1620, %v1427
        %1622 = vadd.xlane.f32.xlu0 %v1621
        %v1623 = vpop.xlane.xlu0 %1622
        %v1624 = vadd.f32 %v1429, %v1431
        %v1625 = vadd.f32 %v1624, %v1433
        %v1626 = vadd.f32 %v1625, %v1435
        %1627 = vadd.xlane.f32.xlu0 %v1626
        %v1628 = vpop.xlane.xlu0 %1627
        %v1629 = vadd.f32 %v1437, %v1439
        %v1630 = vadd.f32 %v1629, %v1441
        %v1631 = vadd.f32 %v1630, %v1443
        %1632 = vadd.xlane.f32.xlu0 %v1631
        %v1633 = vpop.xlane.xlu0 %1632
        %v1634 = vadd.f32 %v1445, %v1447
        %v1635 = vadd.f32 %v1634, %v1449
        %v1636 = vadd.f32 %v1635, %v1451
        %1637 = vadd.xlane.f32.xlu0 %v1636
        %v1638 = vpop.xlane.xlu0 %1637
        %v1639 = vadd.f32 %v1453, %v1455
        %v1640 = vadd.f32 %v1639, %v1457
        %v1641 = vadd.f32 %v1640, %v1459
        %1642 = vadd.xlane.f32.xlu0 %v1641
        %v1643 = vpop.xlane.xlu0 %1642
        %v1644 = vadd.f32 %v1461, %v1463
        %v1645 = vadd.f32 %v1644, %v1465
        %v1646 = vadd.f32 %v1645, %v1467
        %1647 = vadd.xlane.f32.xlu0 %v1646
        %v1648 = vpop.xlane.xlu0 %1647
        %v1649 = vadd.f32 %v1469, %v1471
        %v1650 = vadd.f32 %v1649, %v1473
        %v1651 = vadd.f32 %v1650, %v1475
        %1652 = vadd.xlane.f32.xlu0 %v1651
        %v1653 = vpop.xlane.xlu0 %1652
        %v1654 = vadd.f32 %v1477, %v1479
        %v1655 = vadd.f32 %v1654, %v1481
        %v1656 = vadd.f32 %v1655, %v1483
        %1657 = vadd.xlane.f32.xlu0 %v1656
        %v1658 = vpop.xlane.xlu0 %1657
        %v1659 = vadd.f32 %v1485, %v1487
        %v1660 = vadd.f32 %v1659, %v1489
        %v1661 = vadd.f32 %v1660, %v1491
        %1662 = vadd.xlane.f32.xlu0 %v1661
        %v1663 = vpop.xlane.xlu0 %1662
        %v1664 = vadd.f32 %v1493, %v1495
        %v1665 = vadd.f32 %v1664, %v1497
        %v1666 = vadd.f32 %v1665, %v1499
        %1667 = vadd.xlane.f32.xlu0 %v1666
        %v1668 = vpop.xlane.xlu0 %1667
        %v1669 = vadd.f32 %v1501, %v1503
        %v1670 = vadd.f32 %v1669, %v1505
        %v1671 = vadd.f32 %v1670, %v1507
        %1672 = vadd.xlane.f32.xlu0 %v1671
        %v1673 = vpop.xlane.xlu0 %1672
        %v1674 = vadd.f32 %v1509, %v1511
        %v1675 = vadd.f32 %v1674, %v1513
        %v1676 = vadd.f32 %v1675, %v1515
        %1677 = vadd.xlane.f32.xlu0 %v1676
        %v1678 = vpop.xlane.xlu0 %1677
        %v1679 = vadd.f32 %v1517, %v1519
        %v1680 = vadd.f32 %v1679, %v1521
        %v1681 = vadd.f32 %v1680, %v1523
        %1682 = vadd.xlane.f32.xlu0 %v1681
        %v1683 = vpop.xlane.xlu0 %1682
        %v1684 = vpack.c.bf16 %v1277, %v1269
        %v1685 = vpack.c.bf16 %v1279, %v1271
        %v1686 = vpack.c.bf16 %v1281, %v1273
        %v1687 = vpack.c.bf16 %v1283, %v1275
        %v1688 = vpack.c.bf16 %v1293, %v1285
        %v1689 = vpack.c.bf16 %v1295, %v1287
        %v1690 = vpack.c.bf16 %v1297, %v1289
        %v1691 = vpack.c.bf16 %v1299, %v1291
        %v1692 = vpack.c.bf16 %v1309, %v1301
        %v1693 = vpack.c.bf16 %v1311, %v1303
        %v1694 = vpack.c.bf16 %v1313, %v1305
        %v1695 = vpack.c.bf16 %v1315, %v1307
        %v1696 = vpack.c.bf16 %v1325, %v1317
        %v1697 = vpack.c.bf16 %v1327, %v1319
        %v1698 = vpack.c.bf16 %v1329, %v1321
        %v1699 = vpack.c.bf16 %v1331, %v1323
        %v1700 = vpack.c.bf16 %v1341, %v1333
        %v1701 = vpack.c.bf16 %v1343, %v1335
        %v1702 = vpack.c.bf16 %v1345, %v1337
        %v1703 = vpack.c.bf16 %v1347, %v1339
        %v1704 = vpack.c.bf16 %v1357, %v1349
        %v1705 = vpack.c.bf16 %v1359, %v1351
        %v1706 = vpack.c.bf16 %v1361, %v1353
        %v1707 = vpack.c.bf16 %v1363, %v1355
        %v1708 = vpack.c.bf16 %v1373, %v1365
        %v1709 = vpack.c.bf16 %v1375, %v1367
        %v1710 = vpack.c.bf16 %v1377, %v1369
        %v1711 = vpack.c.bf16 %v1379, %v1371
        %v1712 = vpack.c.bf16 %v1389, %v1381
        %v1713 = vpack.c.bf16 %v1391, %v1383
        %v1714 = vpack.c.bf16 %v1393, %v1385
        %v1715 = vpack.c.bf16 %v1395, %v1387
        %v1716 = vpack.c.bf16 %v1405, %v1397
        %v1717 = vpack.c.bf16 %v1407, %v1399
        %v1718 = vpack.c.bf16 %v1409, %v1401
        %v1719 = vpack.c.bf16 %v1411, %v1403
        %v1720 = vpack.c.bf16 %v1421, %v1413
        %v1721 = vpack.c.bf16 %v1423, %v1415
        %v1722 = vpack.c.bf16 %v1425, %v1417
        %v1723 = vpack.c.bf16 %v1427, %v1419
        %v1724 = vpack.c.bf16 %v1437, %v1429
        %v1725 = vpack.c.bf16 %v1439, %v1431
        %v1726 = vpack.c.bf16 %v1441, %v1433
        %v1727 = vpack.c.bf16 %v1443, %v1435
        %v1728 = vpack.c.bf16 %v1453, %v1445
        %v1729 = vpack.c.bf16 %v1455, %v1447
        %v1730 = vpack.c.bf16 %v1457, %v1449
        %v1731 = vpack.c.bf16 %v1459, %v1451
        %v1732 = vpack.c.bf16 %v1469, %v1461
        %v1733 = vpack.c.bf16 %v1471, %v1463
        %v1734 = vpack.c.bf16 %v1473, %v1465
        %v1735 = vpack.c.bf16 %v1475, %v1467
        %v1736 = vpack.c.bf16 %v1485, %v1477
        %v1737 = vpack.c.bf16 %v1487, %v1479
        %v1738 = vpack.c.bf16 %v1489, %v1481
        %v1739 = vpack.c.bf16 %v1491, %v1483
        %v1740 = vpack.c.bf16 %v1501, %v1493
        %v1741 = vpack.c.bf16 %v1503, %v1495
        %v1742 = vpack.c.bf16 %v1505, %v1497
        %v1743 = vpack.c.bf16 %v1507, %v1499
        %v1744 = vpack.c.bf16 %v1517, %v1509
        %v1745 = vpack.c.bf16 %v1519, %v1511
        %v1746 = vpack.c.bf16 %v1521, %v1513
        %v1747 = vpack.c.bf16 %v1523, %v1515
        %v1752 = vunpack.c.l.b16 %v517
        %v1753 = vunpack.c.h.b16 %v517
        %v1754 = vunpack.c.l.b16 %v518
        %v1755 = vunpack.c.h.b16 %v518
        %v1756 = vunpack.c.l.b16 %v519
        %v1757 = vunpack.c.h.b16 %v519
        %v1758 = vunpack.c.l.b16 %v520
        %v1759 = vunpack.c.h.b16 %v520
        %v1760 = vpack.c.b16 %v1756, %v1752
        %v1761 = vpack.c.b16 %v1757, %v1753
        %v1762 = vpack.c.b16 %v1758, %v1754
        %v1763 = vpack.c.b16 %v1759, %v1755
        %1768 = vmatpush.bf16.xpose.msra.mxu0 %v1712
        %1769 = vmatpush.bf16.xpose.msra.mxu0 %v1708
        %1770 = vmatpush.bf16.xpose.msra.mxu0 %v1704
        %1771 = vmatpush.bf16.xpose.msra.mxu0 %v1700
        %1772 = vmatpush.bf16.xpose.msra.mxu0 %v1696
        %1773 = vmatpush.bf16.xpose.msra.mxu0 %v1692
        %1774 = vmatpush.bf16.xpose.msra.mxu0 %v1688
        %1775 = vmatpush.bf16.xpose.msra.mxu0 %v1684
        %1776 = vmatmul.bf16.gmra.mxu0 %v1760
        %v1777 = vpop.f32.mrf.mxu0
        %v1778 = vadd.f32 0.0, %v1777
        %v1779 = vpop.f32.mrf.mxu0
        %v1780 = vadd.f32 0.0, %v1779
        %1781 = vdwg.mxu0
        %1782 = vmatpush.bf16.xpose.msra.mxu0 %v1713
        %1783 = vmatpush.bf16.xpose.msra.mxu0 %v1709
        %1784 = vmatpush.bf16.xpose.msra.mxu0 %v1705
        %1785 = vmatpush.bf16.xpose.msra.mxu0 %v1701
        %1786 = vmatpush.bf16.xpose.msra.mxu0 %v1697
        %1787 = vmatpush.bf16.xpose.msra.mxu0 %v1693
        %1788 = vmatpush.bf16.xpose.msra.mxu0 %v1689
        %1789 = vmatpush.bf16.xpose.msra.mxu0 %v1685
        %1790 = vmatmul.bf16.gmra.mxu0 %v1761
        %v1791 = vpop.f32.mrf.mxu0
        %v1792 = vadd.f32 %v1778, %v1791
        %v1793 = vpop.f32.mrf.mxu0
        %v1794 = vadd.f32 %v1780, %v1793
        %1795 = vdwg.mxu0
        %1796 = vmatpush.bf16.xpose.msra.mxu0 %v1714
        %1797 = vmatpush.bf16.xpose.msra.mxu0 %v1710
        %1798 = vmatpush.bf16.xpose.msra.mxu0 %v1706
        %1799 = vmatpush.bf16.xpose.msra.mxu0 %v1702
        %1800 = vmatpush.bf16.xpose.msra.mxu0 %v1698
        %1801 = vmatpush.bf16.xpose.msra.mxu0 %v1694
        %1802 = vmatpush.bf16.xpose.msra.mxu0 %v1690
        %1803 = vmatpush.bf16.xpose.msra.mxu0 %v1686
        %1804 = vmatmul.bf16.gmra.mxu0 %v1762
        %v1805 = vpop.f32.mrf.mxu0
        %v1806 = vadd.f32 %v1792, %v1805
        %v1807 = vpop.f32.mrf.mxu0
        %v1808 = vadd.f32 %v1794, %v1807
        %1809 = vdwg.mxu0
        %1810 = vmatpush.bf16.xpose.msra.mxu0 %v1715
        %1811 = vmatpush.bf16.xpose.msra.mxu0 %v1711
        %1812 = vmatpush.bf16.xpose.msra.mxu0 %v1707
        %1813 = vmatpush.bf16.xpose.msra.mxu0 %v1703
        %1814 = vmatpush.bf16.xpose.msra.mxu0 %v1699
        %1815 = vmatpush.bf16.xpose.msra.mxu0 %v1695
        %1816 = vmatpush.bf16.xpose.msra.mxu0 %v1691
        %1817 = vmatpush.bf16.xpose.msra.mxu0 %v1687
        %1818 = vmatmul.bf16.gmra.mxu0 %v1763
        %v1819 = vpop.f32.mrf.mxu0
        %v1820 = vadd.f32 %v1806, %v1819
        %v1821 = vpop.f32.mrf.mxu0
        %v1822 = vadd.f32 %v1808, %v1821
        %1823 = vdwg.mxu0
        %1824 = vmatpush.bf16.xpose.msra.mxu0 %v1744
        %1825 = vmatpush.bf16.xpose.msra.mxu0 %v1740
        %1826 = vmatpush.bf16.xpose.msra.mxu0 %v1736
        %1827 = vmatpush.bf16.xpose.msra.mxu0 %v1732
        %1828 = vmatpush.bf16.xpose.msra.mxu0 %v1728
        %1829 = vmatpush.bf16.xpose.msra.mxu0 %v1724
        %1830 = vmatpush.bf16.xpose.msra.mxu0 %v1720
        %1831 = vmatpush.bf16.xpose.msra.mxu0 %v1716
        %1832 = vmatmul.bf16.gmra.mxu0 %v1760
        %v1833 = vpop.f32.mrf.mxu0
        %v1834 = vadd.f32 0.0, %v1833
        %v1835 = vpop.f32.mrf.mxu0
        %v1836 = vadd.f32 0.0, %v1835
        %1837 = vdwg.mxu0
        %1838 = vmatpush.bf16.xpose.msra.mxu0 %v1745
        %1839 = vmatpush.bf16.xpose.msra.mxu0 %v1741
        %1840 = vmatpush.bf16.xpose.msra.mxu0 %v1737
        %1841 = vmatpush.bf16.xpose.msra.mxu0 %v1733
        %1842 = vmatpush.bf16.xpose.msra.mxu0 %v1729
        %1843 = vmatpush.bf16.xpose.msra.mxu0 %v1725
        %1844 = vmatpush.bf16.xpose.msra.mxu0 %v1721
        %1845 = vmatpush.bf16.xpose.msra.mxu0 %v1717
        %1846 = vmatmul.bf16.gmra.mxu0 %v1761
        %v1847 = vpop.f32.mrf.mxu0
        %v1848 = vadd.f32 %v1834, %v1847
        %v1849 = vpop.f32.mrf.mxu0
        %v1850 = vadd.f32 %v1836, %v1849
        %1851 = vdwg.mxu0
        %1852 = vmatpush.bf16.xpose.msra.mxu0 %v1746
        %1853 = vmatpush.bf16.xpose.msra.mxu0 %v1742
        %1854 = vmatpush.bf16.xpose.msra.mxu0 %v1738
        %1855 = vmatpush.bf16.xpose.msra.mxu0 %v1734
        %1856 = vmatpush.bf16.xpose.msra.mxu0 %v1730
        %1857 = vmatpush.bf16.xpose.msra.mxu0 %v1726
        %1858 = vmatpush.bf16.xpose.msra.mxu0 %v1722
        %1859 = vmatpush.bf16.xpose.msra.mxu0 %v1718
        %1860 = vmatmul.bf16.gmra.mxu0 %v1762
        %v1861 = vpop.f32.mrf.mxu0
        %v1862 = vadd.f32 %v1848, %v1861
        %v1863 = vpop.f32.mrf.mxu0
        %v1864 = vadd.f32 %v1850, %v1863
        %1865 = vdwg.mxu0
        %1866 = vmatpush.bf16.xpose.msra.mxu0 %v1747
        %1867 = vmatpush.bf16.xpose.msra.mxu0 %v1743
        %1868 = vmatpush.bf16.xpose.msra.mxu0 %v1739
        %1869 = vmatpush.bf16.xpose.msra.mxu0 %v1735
        %1870 = vmatpush.bf16.xpose.msra.mxu0 %v1731
        %1871 = vmatpush.bf16.xpose.msra.mxu0 %v1727
        %1872 = vmatpush.bf16.xpose.msra.mxu0 %v1723
        %1873 = vmatpush.bf16.xpose.msra.mxu0 %v1719
        %1874 = vmatmul.bf16.gmra.mxu0 %v1763
        %v1875 = vpop.f32.mrf.mxu0
        %v1876 = vadd.f32 %v1862, %v1875
        %v1877 = vpop.f32.mrf.mxu0
        %v1878 = vadd.f32 %v1864, %v1877
        %1879 = vdwg.mxu0
        %s1880 = sld [smem:[#allocation3]]
        %v1881 = vrcp.pop %v1528
        %v1882 = vrcp.pop %v1533
        %v1883 = vrcp.pop %v1538
        %v1884 = vrcp.pop %v1543
        %v1885 = vrcp.pop %v1548
        %v1886 = vrcp.pop %v1553
        %v1887 = vrcp.pop %v1558
        %v1888 = vrcp.pop %v1563
        %v1889 = vrcp.pop %v1568
        %v1890 = vrcp.pop %v1573
        %v1891 = vrcp.pop %v1578
        %v1892 = vrcp.pop %v1583
        %v1893 = vrcp.pop %v1588
        %v1894 = vrcp.pop %v1593
        %v1895 = vrcp.pop %v1598
        %v1896 = vrcp.pop %v1603
        %v1897 = vrcp.pop %v1608
        %v1898 = vrcp.pop %v1613
        %v1899 = vrcp.pop %v1618
        %v1900 = vrcp.pop %v1623
        %v1901 = vrcp.pop %v1628
        %v1902 = vrcp.pop %v1633
        %v1903 = vrcp.pop %v1638
        %v1904 = vrcp.pop %v1643
        %v1905 = vrcp.pop %v1648
        %v1906 = vrcp.pop %v1653
        %v1907 = vrcp.pop %v1658
        %v1908 = vrcp.pop %v1663
        %v1909 = vrcp.pop %v1668
        %v1910 = vrcp.pop %v1673
        %v1911 = vrcp.pop %v1678
        %v1912 = vrcp.pop %v1683
        %v1913 = vstv %s1880
        %v1914 = vmul.f32 %v1913, %v1881
        %v1915 = vmul.f32 %v1913, %v1882
        %v1916 = vmul.f32 %v1913, %v1883
        %v1917 = vmul.f32 %v1913, %v1884
        %v1918 = vmul.f32 %v1913, %v1885
        %v1919 = vmul.f32 %v1913, %v1886
        %v1920 = vmul.f32 %v1913, %v1887
        %v1921 = vmul.f32 %v1913, %v1888
        %v1922 = vmul.f32 %v1913, %v1889
        %v1923 = vmul.f32 %v1913, %v1890
        %v1924 = vmul.f32 %v1913, %v1891
        %v1925 = vmul.f32 %v1913, %v1892
        %v1926 = vmul.f32 %v1913, %v1893
        %v1927 = vmul.f32 %v1913, %v1894
        %v1928 = vmul.f32 %v1913, %v1895
        %v1929 = vmul.f32 %v1913, %v1896
        %v1930 = vmul.f32 %v1913, %v1897
        %v1931 = vmul.f32 %v1913, %v1898
        %v1932 = vmul.f32 %v1913, %v1899
        %v1933 = vmul.f32 %v1913, %v1900
        %v1934 = vmul.f32 %v1913, %v1901
        %v1935 = vmul.f32 %v1913, %v1902
        %v1936 = vmul.f32 %v1913, %v1903
        %v1937 = vmul.f32 %v1913, %v1904
        %v1938 = vmul.f32 %v1913, %v1905
        %v1939 = vmul.f32 %v1913, %v1906
        %v1940 = vmul.f32 %v1913, %v1907
        %v1941 = vmul.f32 %v1913, %v1908
        %v1942 = vmul.f32 %v1913, %v1909
        %v1943 = vmul.f32 %v1913, %v1910
        %v1944 = vmul.f32 %v1913, %v1911
        %v1945 = vmul.f32 %v1913, %v1912
        %s1946 = smul.addr %s507, 8
        %s1947 = scalar_lea.vmem %s207, %s1946 [#allocation4]
        %v1948 = vld [vmem:[%s1947] sm:$0xff]
        %v1949 = vld [vmem:[%s1947 + $0x8] sm:$0xff]
        %v1950 = vld [vmem:[%s1947 + $0x20] sm:$0xff]
        %v1951 = vld [vmem:[%s1947 + $0x28] sm:$0xff]
        %v1984 = vlaneseq
        %v1985 = vand.u32 %v1984, 127
        %v1986 = vperm.slane %v1914, %v1985
        %v1987 = vadd.s32 %v1985, 4294967288
        %v1988 = vperm.slane %v1915, %v1987
        %vm1989 = vcmask 130112
        %v1990 = vsel %vm1989, %v1988, %v1986
        %v1991 = vadd.s32 %v1985, 4294967280
        %v1992 = vperm.slane %v1916, %v1991
        %vm1993 = vcmask 195712
        %v1994 = vsel %vm1993, %v1992, %v1990
        %v1995 = vadd.s32 %v1985, 4294967272
        %v1996 = vperm.slane %v1917, %v1995
        %vm1997 = vcmask 261312
        %v1998 = vsel %vm1997, %v1996, %v1994
        %v1999 = vadd.s32 %v1985, 4294967264
        %v2000 = vperm.slane %v1918, %v1999
        %vm2001 = vcmask 326912
        %v2002 = vsel %vm2001, %v2000, %v1998
        %v2003 = vadd.s32 %v1985, 4294967256
        %v2004 = vperm.slane %v1919, %v2003
        %vm2005 = vcmask 392512
        %v2006 = vsel %vm2005, %v2004, %v2002
        %v2007 = vadd.s32 %v1985, 4294967248
        %v2008 = vperm.slane %v1920, %v2007
        %vm2009 = vcmask 458112
        %v2010 = vsel %vm2009, %v2008, %v2006
        %v2011 = vadd.s32 %v1985, 4294967240
        %v2012 = vperm.slane %v1921, %v2011
        %vm2013 = vcmask 523712
        %v2014 = vsel %vm2013, %v2012, %v2010
        %v2015 = vadd.s32 %v1985, 4294967232
        %v2016 = vperm.slane %v1922, %v2015
        %vm2017 = vcmask 589312
        %v2018 = vsel %vm2017, %v2016, %v2014
        %v2019 = vadd.s32 %v1985, 4294967224
        %v2020 = vperm.slane %v1923, %v2019
        %vm2021 = vcmask 654912
        %v2022 = vsel %vm2021, %v2020, %v2018
        %v2023 = vadd.s32 %v1985, 4294967216
        %v2024 = vperm.slane %v1924, %v2023
        %vm2025 = vcmask 720512
        %v2026 = vsel %vm2025, %v2024, %v2022
        %v2027 = vadd.s32 %v1985, 4294967208
        %v2028 = vperm.slane %v1925, %v2027
        %vm2029 = vcmask 786112
        %v2030 = vsel %vm2029, %v2028, %v2026
        %v2031 = vadd.s32 %v1985, 4294967200
        %v2032 = vperm.slane %v1926, %v2031
        %vm2033 = vcmask 851712
        %v2034 = vsel %vm2033, %v2032, %v2030
        %v2035 = vadd.s32 %v1985, 4294967192
        %v2036 = vperm.slane %v1927, %v2035
        %vm2037 = vcmask 917312
        %v2038 = vsel %vm2037, %v2036, %v2034
        %v2039 = vadd.s32 %v1985, 4294967184
        %v2040 = vperm.slane %v1928, %v2039
        %vm2041 = vcmask 982912
        %v2042 = vsel %vm2041, %v2040, %v2038
        %v2043 = vadd.s32 %v1985, 4294967176
        %v2044 = vperm.slane %v1929, %v2043
        %vm2045 = vcmask 1048512
        %v2046 = vsel %vm2045, %v2044, %v2042
        %v2047 = vperm.slane %v1930, %v1985
        %v2048 = vperm.slane %v1931, %v1987
        %v2049 = vsel %vm1989, %v2048, %v2047
        %v2050 = vperm.slane %v1932, %v1991
        %v2051 = vsel %vm1993, %v2050, %v2049
        %v2052 = vperm.slane %v1933, %v1995
        %v2053 = vsel %vm1997, %v2052, %v2051
        %v2054 = vperm.slane %v1934, %v1999
        %v2055 = vsel %vm2001, %v2054, %v2053
        %v2056 = vperm.slane %v1935, %v2003
        %v2057 = vsel %vm2005, %v2056, %v2055
        %v2058 = vperm.slane %v1936, %v2007
        %v2059 = vsel %vm2009, %v2058, %v2057
        %v2060 = vperm.slane %v1937, %v2011
        %v2061 = vsel %vm2013, %v2060, %v2059
        %v2062 = vperm.slane %v1938, %v2015
        %v2063 = vsel %vm2017, %v2062, %v2061
        %v2064 = vperm.slane %v1939, %v2019
        %v2065 = vsel %vm2021, %v2064, %v2063
        %v2066 = vperm.slane %v1940, %v2023
        %v2067 = vsel %vm2025, %v2066, %v2065
        %v2068 = vperm.slane %v1941, %v2027
        %v2069 = vsel %vm2029, %v2068, %v2067
        %v2070 = vperm.slane %v1942, %v2031
        %v2071 = vsel %vm2033, %v2070, %v2069
        %v2072 = vperm.slane %v1943, %v2035
        %v2073 = vsel %vm2037, %v2072, %v2071
        %v2074 = vperm.slane %v1944, %v2039
        %v2075 = vsel %vm2041, %v2074, %v2073
        %v2076 = vperm.slane %v1945, %v2043
        %v2077 = vsel %vm2045, %v2076, %v2075
        %vm2078 = vcmask 1042434
        %v2079 = vsel %vm2078, %v2046, %v2046
        %vm2080 = vcmask 1043459
        %v2081 = vsel %vm2080, %v2046, %v2079
        %vm2082 = vcmask 1044484
        %v2083 = vsel %vm2082, %v2046, %v2081
        %vm2084 = vcmask 1045509
        %v2085 = vsel %vm2084, %v2046, %v2083
        %vm2086 = vcmask 1046534
        %v2087 = vsel %vm2086, %v2046, %v2085
        %vm2088 = vcmask 1047559
        %v2089 = vsel %vm2088, %v2046, %v2087
        %v2090 = vsel %vm2078, %v2077, %v2077
        %v2091 = vsel %vm2080, %v2077, %v2090
        %v2092 = vsel %vm2082, %v2077, %v2091
        %v2093 = vsel %vm2084, %v2077, %v2092
        %v2094 = vsel %vm2086, %v2077, %v2093
        %v2095 = vsel %vm2088, %v2077, %v2094
        %v2098 = vmul.f32 %v1820, %v2089
        %v2099 = vmul.f32 %v1876, %v2095
        %v2100 = vmul.f32 %v1822, %v2089
        %v2101 = vmul.f32 %v1878, %v2095
        %v2102 = vadd.f32 %v2098, %v1948
        %v2103 = vadd.f32 %v2099, %v1949
        %v2104 = vadd.f32 %v2100, %v1950
        %v2105 = vadd.f32 %v2101, %v1951
        %v2106 = vpack.c.bf16 %v2103, %v2102
        %v2107 = vpack.c.bf16 %v2105, %v2104
        %2108 = vst [vmem:[%s232] sm:$0xff] %v2106
        %2109 = vst [vmem:[%s232 + $0x8] sm:$0xff] %v2107
        %s2110 = sand.u32 %s133, 1
        %s2111 = scalar_lea.sflag [#allocation6], %s2110
        %s2112 = sand.u32 %s133, 1
        %s2113 = smul.addr %s2112, 16
        %s2114 = scalar_lea.vmem [#allocation7], %s2113
        // Predicated region
        $region45: #{tpu_custom_call.1} parent=35 // pred_check
          %p2115 = pneg %p143
        $region46: #{tpu_custom_call.1} parent=35 // pred_check_branch
          %2117 = sbr.rel (%p2115) target = $region48
        $region47: #{tpu_custom_call.1} parent=35 // pred_region
          %s2118 = smul.u32 2, %s27
          %2120 = vsyncadd %s2111, 0
          %s2121 = smul.addr %s26, 8
          %s2122 = sadd.s32 %s2118, %s2121
          %s2123 = smul.addr %s2122, 4
          %s2124 = scalar_lea.hbm %s4, %s2123
          %s2125 = sshll.u32 %s2114, 4
          %s2126 = int_to_ptr.vmem [resolvable:$true] %s2125
          %s2127 = sshll.u32 %s2124, 4
          %s2128 = int_to_ptr.hbm [resolvable:$true] %s2127
          %2133 = dma.vmem_to_hbm [thread:$0]  %s2126, 256, %s2128, %s2111, 128, 256, 8
        $region48: #{tpu_custom_call.1} parent=35 // pred_fallthru
          _
      $region36: #{tpu_custom_call.1} parent=5 // pred_fallthru
        _
      %p2134 = scmp.le.s32.totalorder 2, %s17
      // Predicated region
      $region49: #{tpu_custom_call.1} parent=5 // pred_check
        %p2135 = pneg %p2134
      $region50: #{tpu_custom_call.1} parent=5 // pred_check_branch
        %2137 = sbr.rel (%p2135) target = $region52
      $region51: #{tpu_custom_call.1} parent=5 // pred_region
        %s2138 = ssub.s32 %s17, 2
        // Predicated region
        $region53: #{tpu_custom_call.1} parent=51 // pred_check
          %p2139 = pneg %p149
        $region54: #{tpu_custom_call.1} parent=51 // pred_check_branch
          %2141 = sbr.rel (%p2139) target = $region56
        $region55: #{tpu_custom_call.1} parent=51 // pred_region
          %s2142 = sand.u32 %s134, 1
          %s2143 = scalar_lea.sflag [#allocation6], %s2142
          %s2144 = sand.u32 %s134, 1
          %s2145 = smul.addr %s2144, 16
          %s2146 = scalar_lea.vmem [#allocation7], %s2145
          %2148 = dma.done %s2143, 256
        $region56: #{tpu_custom_call.1} parent=51 // pred_fallthru
          _
      $region52: #{tpu_custom_call.1} parent=5 // pred_fallthru
        _
    $region6: #{tpu_custom_call.1} parent=1 // loop_footer
      %s21 = sadd.s32 1, %s17
    $region7: #{tpu_custom_call.1} parent=1 // loop_footer_branch
      %16 = sbr.rel target = $region3
    $region8: #{tpu_custom_call.1} parent=1 // loop_exit
      _
    %2149 = vsyncpa [#allocation5], 1
    %s2150 = scalar_lea.sflag [#allocation5], 1
    %2151 = vsyncpa %s2150, 1
    %2152 = vsyncpa [#allocation6], 1
    %s2153 = scalar_lea.sflag [#allocation6], 1
    %2154 = vsyncpa %s2153, 1

// kernel: tpu_custom_call.1
$region0: #{tpu_custom_call.1}
  #allocation0 [shape = 'u32[]', space=smem, size = 0x4, offset = 0x4, fixed_abs, tag = 'smem constant byte address 0x4 - core index']
  #allocation1 [shape = 'u32[72,128]{1,0:T(1,128)}', space=vmem, size = 0x9000, scoped, tag = 'internal scratch']
  #allocation2 [shape = 'bf16[48,512]{1,0:T(8,128)(2,1)}', space=vmem, size = 0xc000, scoped, tag = 'scratch operand']
  #allocation3 [shape = 'f32[1]{0:T(128)S(6)}', space=smem, size = 0x200, scoped, tag = 'scoped memory for tpu_custom_call.1']
  %s0 = inlined_call_operand.hbm [shape: f32[2,16,512], index: 0, kind: input, shape index: {}]
  %s1 = inlined_call_operand.vmem [shape: bf16[48,16], index: 1, kind: input, shape index: {}]
  %s2 = inlined_call_operand.vmem [shape: f32[48,1], index: 2, kind: input, shape index: {}]
  %s3 = inlined_call_operand.<no memory space> [shape: f32[1], index: 3, kind: input, shape index: {}]
  %s4 = inlined_call_operand.hbm [shape: bf16[2,16,512], index: 4, kind: output, shape index: {}]
  %s5 = sld [smem:[#allocation0]]
  $region57: #{tpu_custom_call.1} parent=0
    _
  %s7 = ssub.s32 1, %s5
  %s8 = scalar_select 0, %s7, %s5
  %9 = sst [smem:[#allocation3]] %s3
  $region1: #{tpu_custom_call.1} parent=0
    #allocation4 [shape = 'u8[65536]{0}', space=vmem, size = 0x10000, scoped, tag = 'input window, operand 0']
    #allocation5 [shape = 's32[2]{0}', space=sflag, size = 0x8, scoped, tag = 'scoped memory for tpu_custom_call.1']
    #allocation6 [shape = 's32[2]{0}', space=sflag, size = 0x8, scoped, tag = 'scoped memory for tpu_custom_call.1']
    #allocation7 [shape = 'u8[16384]{0}', space=vmem, size = 0x4000, scoped, tag = 'output window, operand 0']
    %10 = vsyncpa [#allocation5], 0
    %s11 = scalar_lea.sflag [#allocation5], 1
    %12 = vsyncpa %s11, 0
    %13 = vsyncpa [#allocation6], 0
    %s14 = scalar_lea.sflag [#allocation6], 1
    %15 = vsyncpa %s14, 0
    loop: start=0, step=1, limit=6
    $region2: #{tpu_custom_call.1} parent=1 // loop_pre_header
      _
    $region3: #{tpu_custom_call.1} parent=1 // loop_header
      %s17 = sphi 0, %s21
      %p18 = scmp.ge.s32.totalorder %s17, 6
      %s24 = sphi 0, %s36
      %s25 = sphi 0, %s32
      %s26 = sphi 0, %s24
      %s27 = sphi 0, %s25
      %s28 = sphi 0, %s26
      %s29 = sphi 0, %s27
      %s39 = sphi 0, %s41
      %s42 = sphi 0, %s39
      %s43 = sphi 0, %s42
      %s59 = sphi 0, %s43
      %s63 = sphi 0, %s63
      %s65 = sphi 0, %s63
      %s66 = sphi 0, %s65
      %s80 = sphi 0, %s66
      %s84 = sphi 0, %s84
      %s86 = sphi 0, %s84
      %s87 = sphi 0, %s86
      %s101 = sphi 0, %s87
      %s105 = sphi 0, %s105
      %s107 = sphi 0, %s105
      %s108 = sphi 0, %s107
      %s122 = sphi 0, %s108
      %s130 = sphi 0, %s132
      %s133 = sphi 0, %s130
      %s134 = sphi 0, %s133
      %s150 = sphi 0, %s134
    $region4: #{tpu_custom_call.1} parent=1 // loop_header_branch
      %20 = sbr.rel (%p18) target = $region8
    $region5: #{tpu_custom_call.1} parent=1 // loop_body
      %s22 = ssub.s32 %s17, 1
      %s23 = ssub.s32 %s17, 2
      %s30 = sadd.s32 1, %s25
      %p31 = scmp.ge.s32.totalorder %s30, 2
      %s32 = scalar_select %p31, 0, %s30
      %s33 = sadd.s32 1, %s24
      %s34 = scalar_select %p31, %s33, %s24
      %p35 = scmp.ge.s32.totalorder %s34, 2
      %s36 = scalar_select %p35, 0, %s34
      %s37 = ssub.s32 %s24, %s36
      %p38 = scmp.eq.s32.totalorder %s37, 0
      %s40 = sadd.s32 %s39, 1
      %s41 = scalar_select %p38, %s39, %s40
      %p44 = pneg %p38
      %p45 = scmp.eq.s32.totalorder %s17, 3
      %p46 = por %p44, %p45
      %p47 = scmp.ne.s32.totalorder %s39, %s42
      %p48 = scmp.eq.s32.totalorder %s17, 0
      %p49 = por %p47, %p48
      %p50 = scmp.ne.s32.totalorder %s39, %s42
      %p51 = scmp.eq.s32.totalorder %s22, 3
      %p52 = por %p50, %p51
      %p53 = scmp.ne.s32.totalorder %s42, %s43
      %p54 = scmp.eq.s32.totalorder %s22, 0
      %p55 = por %p53, %p54
      %p56 = scmp.ne.s32.totalorder %s42, %s43
      %p57 = scmp.eq.s32.totalorder %s23, 3
      %p58 = por %p56, %p57
      %p60 = scmp.ne.s32.totalorder %s43, %s59
      %p61 = scmp.eq.s32.totalorder %s23, 0
      %p62 = por %p60, %p61
      %s64 = sadd.s32 %s63, 1
      %p67 = scmp.eq.s32.totalorder %s17, 3
      %p68 = scmp.ne.s32.totalorder %s63, %s65
      %p69 = scmp.eq.s32.totalorder %s17, 0
      %p70 = por %p68, %p69
      %p71 = scmp.ne.s32.totalorder %s63, %s65
      %p72 = scmp.eq.s32.totalorder %s22, 3
      %p73 = por %p71, %p72
      %p74 = scmp.ne.s32.totalorder %s65, %s66
      %p75 = scmp.eq.s32.totalorder %s22, 0
      %p76 = por %p74, %p75
      %p77 = scmp.ne.s32.totalorder %s65, %s66
      %p78 = scmp.eq.s32.totalorder %s23, 3
      %p79 = por %p77, %p78
      %p81 = scmp.ne.s32.totalorder %s66, %s80
      %p82 = scmp.eq.s32.totalorder %s23, 0
      %p83 = por %p81, %p82
      %s85 = sadd.s32 %s84, 1
      %p88 = scmp.eq.s32.totalorder %s17, 3
      %p89 = scmp.ne.s32.totalorder %s84, %s86
      %p90 = scmp.eq.s32.totalorder %s17, 0
      %p91 = por %p89, %p90
      %p92 = scmp.ne.s32.totalorder %s84, %s86
      %p93 = scmp.eq.s32.totalorder %s22, 3
      %p94 = por %p92, %p93
      %p95 = scmp.ne.s32.totalorder %s86, %s87
      %p96 = scmp.eq.s32.totalorder %s22, 0
      %p97 = por %p95, %p96
      %p98 = scmp.ne.s32.totalorder %s86, %s87
      %p99 = scmp.eq.s32.totalorder %s23, 3
      %p100 = por %p98, %p99
      %p102 = scmp.ne.s32.totalorder %s87, %s101
      %p103 = scmp.eq.s32.totalorder %s23, 0
      %p104 = por %p102, %p103
      %s106 = sadd.s32 %s105, 1
      %p109 = scmp.eq.s32.totalorder %s17, 3
      %p110 = scmp.ne.s32.totalorder %s105, %s107
      %p111 = scmp.eq.s32.totalorder %s17, 0
      %p112 = por %p110, %p111
      %p113 = scmp.ne.s32.totalorder %s105, %s107
      %p114 = scmp.eq.s32.totalorder %s22, 3
      %p115 = por %p113, %p114
      %p116 = scmp.ne.s32.totalorder %s107, %s108
      %p117 = scmp.eq.s32.totalorder %s22, 0
      %p118 = por %p116, %p117
      %p119 = scmp.ne.s32.totalorder %s107, %s108
      %p120 = scmp.eq.s32.totalorder %s23, 3
      %p121 = por %p119, %p120
      %p123 = scmp.ne.s32.totalorder %s108, %s122
      %p124 = scmp.eq.s32.totalorder %s23, 0
      %p125 = por %p123, %p124
      %s126 = ssub.s32 %s24, %s36
      %s127 = ssub.s32 %s25, %s32
      %s128 = sor.u32 %s126, %s127
      %p129 = scmp.eq.s32.totalorder %s128, 0
      %s131 = sadd.s32 %s130, 1
      %s132 = scalar_select %p129, %s130, %s131
      %p135 = pneg %p129
      %p136 = scmp.eq.s32.totalorder %s17, 3
      %p137 = por %p135, %p136
      %p138 = scmp.ne.s32.totalorder %s130, %s133
      %p139 = scmp.eq.s32.totalorder %s17, 0
      %p140 = por %p138, %p139
      %p141 = scmp.ne.s32.totalorder %s130, %s133
      %p142 = scmp.eq.s32.totalorder %s22, 3
      %p143 = por %p141, %p142
      %p144 = scmp.ne.s32.totalorder %s133, %s134
      %p145 = scmp.eq.s32.totalorder %s22, 0
      %p146 = por %p144, %p145
      %p147 = scmp.ne.s32.totalorder %s133, %s134
      %p148 = scmp.eq.s32.totalorder %s23, 3
      %p149 = por %p147, %p148
      %p151 = scmp.ne.s32.totalorder %s134, %s150
      %p152 = scmp.eq.s32.totalorder %s23, 0
      %p153 = por %p151, %p152
      %p154 = scmp.le.s32.totalorder 1, %s17
      %p155 = scmp.lt.s32.totalorder %s17, 5
      %p156 = pnand %p154, %p155
      %p157 = pneg %p156
      // Predicated region
      $region9: #{tpu_custom_call.1} parent=5 // pred_check
        _
      $region10: #{tpu_custom_call.1} parent=5 // pred_check_branch
        %159 = sbr.rel (%p156) target = $region12
      $region11: #{tpu_custom_call.1} parent=5 // pred_region
        %s160 = ssub.s32 %s17, 1
        // Predicated region
        $region13: #{tpu_custom_call.1} parent=11 // pred_check
          %p161 = pneg %p76
        $region14: #{tpu_custom_call.1} parent=11 // pred_check_branch
          %163 = sbr.rel (%p161) target = $region16
        $region15: #{tpu_custom_call.1} parent=11 // pred_region
          _
        $region16: #{tpu_custom_call.1} parent=11 // pred_fallthru
          _
        // Predicated region
        $region17: #{tpu_custom_call.1} parent=11 // pred_check
          %p164 = pneg %p97
        $region18: #{tpu_custom_call.1} parent=11 // pred_check_branch
          %166 = sbr.rel (%p164) target = $region20
        $region19: #{tpu_custom_call.1} parent=11 // pred_region
          _
        $region20: #{tpu_custom_call.1} parent=11 // pred_fallthru
          _
        // Predicated region
        $region21: #{tpu_custom_call.1} parent=11 // pred_check
          %p167 = pneg %p118
        $region22: #{tpu_custom_call.1} parent=11 // pred_check_branch
          %169 = sbr.rel (%p167) target = $region24
        $region23: #{tpu_custom_call.1} parent=11 // pred_region
          _
        $region24: #{tpu_custom_call.1} parent=11 // pred_fallthru
          _
      $region12: #{tpu_custom_call.1} parent=5 // pred_fallthru
        _
      %p170 = scmp.lt.s32.totalorder %s17, 4
      // Predicated region
      $region25: #{tpu_custom_call.1} parent=5 // pred_check
        %p171 = pneg %p170
      $region26: #{tpu_custom_call.1} parent=5 // pred_check_branch
        %173 = sbr.rel (%p171) target = $region28
      $region27: #{tpu_custom_call.1} parent=5 // pred_region
        // Predicated region
        $region29: #{tpu_custom_call.1} parent=27 // pred_check
          %p174 = pneg %p49
        $region30: #{tpu_custom_call.1} parent=27 // pred_check_branch
          %176 = sbr.rel (%p174) target = $region32
        $region31: #{tpu_custom_call.1} parent=27 // pred_region
          %s177 = sand.u32 %s39, 1
          %s178 = scalar_lea.sflag [#allocation5], %s177
          %s179 = sand.u32 %s39, 1
          %s180 = smul.addr %s179, 64
          %s181 = scalar_lea.vmem [#allocation4], %s180
          %183 = vsyncadd %s178, 0
          %s184 = smul.addr %s24, 8
          %s185 = smul.addr %s184, 8
          %s186 = scalar_lea.hbm %s0, %s185
          %s187 = sshll.u32 %s186, 4
          %s188 = int_to_ptr.hbm [resolvable:$true] %s187
          %s189 = sshll.u32 %s181, 4
          %s190 = int_to_ptr.vmem [resolvable:$true] %s189
          %195 = dma.hbm_to_vmem [thread:$0]  %s188, 1024, %s190, %s178, 512, 512, 32
        $region32: #{tpu_custom_call.1} parent=27 // pred_fallthru
          _
      $region28: #{tpu_custom_call.1} parent=5 // pred_fallthru
        _
      %p196 = scmp.le.s32.totalorder 1, %s17
      %p197 = scmp.lt.s32.totalorder %s17, 5
      %p198 = pnand %p196, %p197
      %p199 = pneg %p198
      // Predicated region
      $region33: #{tpu_custom_call.1} parent=5 // pred_check
        _
      $region34: #{tpu_custom_call.1} parent=5 // pred_check_branch
        %201 = sbr.rel (%p198) target = $region36
      $region35: #{tpu_custom_call.1} parent=5 // pred_region
        %s202 = ssub.s32 %s17, 1
        %s203 = sand.u32 %s42, 1
        %s204 = scalar_lea.sflag [#allocation5], %s203
        %s205 = sand.u32 %s42, 1
        %s206 = smul.addr %s205, 64
        %s207 = scalar_lea.vmem [#allocation4], %s206
        // Predicated region
        $region37: #{tpu_custom_call.1} parent=35 // pred_check
          %p208 = pneg %p55
        $region38: #{tpu_custom_call.1} parent=35 // pred_check_branch
          %210 = sbr.rel (%p208) target = $region40
        $region39: #{tpu_custom_call.1} parent=35 // pred_region
          %212 = dma.done %s204, 1024
        $region40: #{tpu_custom_call.1} parent=35 // pred_fallthru
          _
        %s213 = sand.u32 %s42, 1
        %s214 = scalar_lea.sflag [#allocation5], %s213
        %s215 = sand.u32 %s42, 1
        %s216 = smul.addr %s215, 64
        %s217 = scalar_lea.vmem [#allocation4], %s216
        %p218 = pneg %p55
        %p219 = pneg %p52
        %p220 = pneg %p76
        %p221 = pneg %p73
        %p222 = pneg %p97
        %p223 = pneg %p94
        %p224 = pneg %p118
        %p225 = pneg %p115
        %p226 = pneg %p146
        %p227 = pneg %p143
        %s228 = sand.u32 %s133, 1
        %s229 = scalar_lea.sflag [#allocation6], %s228
        %s230 = sand.u32 %s133, 1
        %s231 = smul.addr %s230, 16
        %s232 = scalar_lea.vmem [#allocation7], %s231
        %s233 = smul.u32 2, %s27
        %p235 = scmp.eq.s32.totalorder %s27, 0
        // Predicated region
        $region41: #{tpu_custom_call.1} parent=35 // pred_check
          %p236 = pneg %p235
        $region42: #{tpu_custom_call.1} parent=35 // pred_check_branch
          %238 = sbr.rel (%p236) target = $region44
        $region43: #{tpu_custom_call.1} parent=35 // pred_region
          %v239 = vld [vmem:[%s207] sm:$0xff]
          %v240 = vld [vmem:[%s207 + $0x8] sm:$0xff]
          %v241 = vld [vmem:[%s207 + $0x20] sm:$0xff]
          %v242 = vld [vmem:[%s207 + $0x28] sm:$0xff]
          %v243 = vpack.c.bf16 %v241, %v239
          %v244 = vpack.c.bf16 %v242, %v240
          %v245 = vld [vmem:[%s1] sm:$0xf]
          %v246 = vld [vmem:[%s1 + $0x4] sm:$0xf]
          %v247 = vld [vmem:[%s1 + $0x8] sm:$0xf]
          %v248 = vld [vmem:[%s1 + $0xc] sm:$0xf]
          %v249 = vld [vmem:[%s1 + $0x10] sm:$0xf]
          %v250 = vld [vmem:[%s1 + $0x14] sm:$0xf]
          %v251 = vld [vmem:[%s2] sm:$0xff]
          %v252 = vld [vmem:[%s2 + $0x8] sm:$0xff]
          %v253 = vld [vmem:[%s2 + $0x10] sm:$0xff]
          %v254 = vld [vmem:[%s2 + $0x18] sm:$0xff]
          %v255 = vld [vmem:[%s2 + $0x20] sm:$0xff]
          %v256 = vld [vmem:[%s2 + $0x28] sm:$0xff]
          %258 = vset.pattern.permute.xlu0 0
          %259 = vperm.xlu0 %258, %v251
          %v260 = vpop.permute.xlu0 %259
          %263 = vset.pattern.permute.xlu0 0
          %264 = vperm.xlu0 %263, %v252
          %v265 = vpop.permute.xlu0 %264
          %268 = vset.pattern.permute.xlu0 0
          %269 = vperm.xlu0 %268, %v253
          %v270 = vpop.permute.xlu0 %269
          %273 = vset.pattern.permute.xlu0 0
          %274 = vperm.xlu0 %273, %v254
          %v275 = vpop.permute.xlu0 %274
          %278 = vset.pattern.permute.xlu0 0
          %279 = vperm.xlu0 %278, %v255
          %v280 = vpop.permute.xlu0 %279
          %283 = vset.pattern.permute.xlu0 0
          %284 = vperm.xlu0 %283, %v256
          %v285 = vpop.permute.xlu0 %284
          %v293 = vunpack.c.l.b16 %v245
          %v294 = vunpack.c.l.b16 %v246
          %v295 = vunpack.c.l.b16 %v247
          %v296 = vunpack.c.l.b16 %v248
          %v297 = vunpack.c.l.b16 %v249
          %v298 = vunpack.c.l.b16 %v250
          %v299 = vpack.c.b16 %v294, %v293
          %v300 = vpack.c.b16 %v296, %v295
          %v301 = vpack.c.b16 %v298, %v297
          %vm302 = vcmask 130048
          %v304 = vsel %vm302, %v299, 0
          %v307 = vsel %vm302, %v300, 0
          %v310 = vsel %vm302, %v301, 0
          %312 = vmatpush.bf16.msra.mxu0 0
          %313 = vmatpush.bf16.msra.mxu0 0
          %314 = vmatpush.bf16.msra.mxu0 0
          %315 = vmatpush.bf16.msra.mxu0 0
          %316 = vmatpush.bf16.msra.mxu0 0
          %317 = vmatpush.bf16.msra.mxu0 0
          %318 = vmatpush.bf16.msra.mxu0 0
          %319 = vmatpush.bf16.msra.mxu0 %v243
          %320 = vmatmul.bf16.gmra.mxu0 %v304
          %v321 = vpop.f32.mrf.mxu0
          %v322 = vadd.f32 %v260, %v321
          %v323 = vpop.f32.mrf.mxu0
          %v324 = vadd.f32 %v265, %v323
          %325 = vmatmul.bf16.gmra.mxu0 %v307
          %v326 = vpop.f32.mrf.mxu0
          %v327 = vadd.f32 %v270, %v326
          %v328 = vpop.f32.mrf.mxu0
          %v329 = vadd.f32 %v275, %v328
          %330 = vmatmul.bf16.gmra.mxu0 %v310
          %v331 = vpop.f32.mrf.mxu0
          %v332 = vadd.f32 %v280, %v331
          %v333 = vpop.f32.mrf.mxu0
          %v334 = vadd.f32 %v285, %v333
          %335 = vdwg.mxu0
          %336 = vmatpush.bf16.msra.mxu0 0
          %337 = vmatpush.bf16.msra.mxu0 0
          %338 = vmatpush.bf16.msra.mxu0 0
          %339 = vmatpush.bf16.msra.mxu0 0
          %340 = vmatpush.bf16.msra.mxu0 0
          %341 = vmatpush.bf16.msra.mxu0 0
          %342 = vmatpush.bf16.msra.mxu0 0
          %343 = vmatpush.bf16.msra.mxu0 %v244
          %344 = vmatmul.bf16.gmra.mxu0 %v304
          %v345 = vpop.f32.mrf.mxu0
          %v346 = vadd.f32 %v260, %v345
          %v347 = vpop.f32.mrf.mxu0
          %v348 = vadd.f32 %v265, %v347
          %349 = vmatmul.bf16.gmra.mxu0 %v307
          %v350 = vpop.f32.mrf.mxu0
          %v351 = vadd.f32 %v270, %v350
          %v352 = vpop.f32.mrf.mxu0
          %v353 = vadd.f32 %v275, %v352
          %354 = vmatmul.bf16.gmra.mxu0 %v310
          %v355 = vpop.f32.mrf.mxu0
          %v356 = vadd.f32 %v280, %v355
          %v357 = vpop.f32.mrf.mxu0
          %v358 = vadd.f32 %v285, %v357
          %359 = vdwg.mxu0
          %v360 = vpack.c.bf16 %v346, %v322
          %v361 = vpack.c.bf16 %v348, %v324
          %v362 = vpack.c.bf16 %v351, %v327
          %v363 = vpack.c.bf16 %v353, %v329
          %v364 = vpack.c.bf16 %v356, %v332
          %v365 = vpack.c.bf16 %v358, %v334
          %366 = vst [vmem:[#allocation2] sm:$0xff] %v360
          %367 = vst [vmem:[#allocation2 + $0x10] sm:$0xff] %v361
          %368 = vst [vmem:[#allocation2 + $0x20] sm:$0xff] %v362
          %369 = vst [vmem:[#allocation2 + $0x30] sm:$0xff] %v363
          %370 = vst [vmem:[#allocation2 + $0x40] sm:$0xff] %v364
          %371 = vst [vmem:[#allocation2 + $0x50] sm:$0xff] %v365
          %s372 = scalar_lea.vmem %s207, 16 [#allocation4]
          %v373 = vld [vmem:[%s372] sm:$0xff]
          %v374 = vld [vmem:[%s372 + $0x8] sm:$0xff]
          %v375 = vld [vmem:[%s372 + $0x20] sm:$0xff]
          %v376 = vld [vmem:[%s372 + $0x28] sm:$0xff]
          %v377 = vpack.c.bf16 %v375, %v373
          %v378 = vpack.c.bf16 %v376, %v374
          %v379 = vld [vmem:[%s1] sm:$0xf]
          %v380 = vld [vmem:[%s1 + $0x4] sm:$0xf]
          %v381 = vld [vmem:[%s1 + $0x8] sm:$0xf]
          %v382 = vld [vmem:[%s1 + $0xc] sm:$0xf]
          %v383 = vld [vmem:[%s1 + $0x10] sm:$0xf]
          %v384 = vld [vmem:[%s1 + $0x14] sm:$0xf]
          %v385 = vld [vmem:[%s2] sm:$0xff]
          %v386 = vld [vmem:[%s2 + $0x8] sm:$0xff]
          %v387 = vld [vmem:[%s2 + $0x10] sm:$0xff]
          %v388 = vld [vmem:[%s2 + $0x18] sm:$0xff]
          %v389 = vld [vmem:[%s2 + $0x20] sm:$0xff]
          %v390 = vld [vmem:[%s2 + $0x28] sm:$0xff]
          %392 = vset.pattern.permute.xlu0 0
          %393 = vperm.xlu0 %392, %v385
          %v394 = vpop.permute.xlu0 %393
          %397 = vset.pattern.permute.xlu0 0
          %398 = vperm.xlu0 %397, %v386
          %v399 = vpop.permute.xlu0 %398
          %402 = vset.pattern.permute.xlu0 0
          %403 = vperm.xlu0 %402, %v387
          %v404 = vpop.permute.xlu0 %403
          %407 = vset.pattern.permute.xlu0 0
          %408 = vperm.xlu0 %407, %v388
          %v409 = vpop.permute.xlu0 %408
          %412 = vset.pattern.permute.xlu0 0
          %413 = vperm.xlu0 %412, %v389
          %v414 = vpop.permute.xlu0 %413
          %417 = vset.pattern.permute.xlu0 0
          %418 = vperm.xlu0 %417, %v390
          %v419 = vpop.permute.xlu0 %418
          %v427 = vunpack.c.l.b16 %v379
          %v428 = vunpack.c.l.b16 %v380
          %v429 = vunpack.c.l.b16 %v381
          %v430 = vunpack.c.l.b16 %v382
          %v431 = vunpack.c.l.b16 %v383
          %v432 = vunpack.c.l.b16 %v384
          %v433 = vpack.c.b16 %v428, %v427
          %v434 = vpack.c.b16 %v430, %v429
          %v435 = vpack.c.b16 %v432, %v431
          %v437 = vsel %vm302, %v433, 0
          %v440 = vsel %vm302, %v434, 0
          %v443 = vsel %vm302, %v435, 0
          %445 = vmatpush.bf16.msra.mxu0 0
          %446 = vmatpush.bf16.msra.mxu0 0
          %447 = vmatpush.bf16.msra.mxu0 0
          %448 = vmatpush.bf16.msra.mxu0 0
          %449 = vmatpush.bf16.msra.mxu0 0
          %450 = vmatpush.bf16.msra.mxu0 0
          %451 = vmatpush.bf16.msra.mxu0 0
          %452 = vmatpush.bf16.msra.mxu0 %v377
          %453 = vmatmul.bf16.gmra.mxu0 %v437
          %v454 = vpop.f32.mrf.mxu0
          %v455 = vadd.f32 %v394, %v454
          %v456 = vpop.f32.mrf.mxu0
          %v457 = vadd.f32 %v399, %v456
          %458 = vmatmul.bf16.gmra.mxu0 %v440
          %v459 = vpop.f32.mrf.mxu0
          %v460 = vadd.f32 %v404, %v459
          %v461 = vpop.f32.mrf.mxu0
          %v462 = vadd.f32 %v409, %v461
          %463 = vmatmul.bf16.gmra.mxu0 %v443
          %v464 = vpop.f32.mrf.mxu0
          %v465 = vadd.f32 %v414, %v464
          %v466 = vpop.f32.mrf.mxu0
          %v467 = vadd.f32 %v419, %v466
          %468 = vdwg.mxu0
          %469 = vmatpush.bf16.msra.mxu0 0
          %470 = vmatpush.bf16.msra.mxu0 0
          %471 = vmatpush.bf16.msra.mxu0 0
          %472 = vmatpush.bf16.msra.mxu0 0
          %473 = vmatpush.bf16.msra.mxu0 0
          %474 = vmatpush.bf16.msra.mxu0 0
          %475 = vmatpush.bf16.msra.mxu0 0
          %476 = vmatpush.bf16.msra.mxu0 %v378
          %477 = vmatmul.bf16.gmra.mxu0 %v437
          %v478 = vpop.f32.mrf.mxu0
          %v479 = vadd.f32 %v394, %v478
          %v480 = vpop.f32.mrf.mxu0
          %v481 = vadd.f32 %v399, %v480
          %482 = vmatmul.bf16.gmra.mxu0 %v440
          %v483 = vpop.f32.mrf.mxu0
          %v484 = vadd.f32 %v404, %v483
          %v485 = vpop.f32.mrf.mxu0
          %v486 = vadd.f32 %v409, %v485
          %487 = vmatmul.bf16.gmra.mxu0 %v443
          %v488 = vpop.f32.mrf.mxu0
          %v489 = vadd.f32 %v414, %v488
          %v490 = vpop.f32.mrf.mxu0
          %v491 = vadd.f32 %v419, %v490
          %492 = vdwg.mxu0
          %v493 = vpack.c.bf16 %v479, %v455
          %v494 = vpack.c.bf16 %v481, %v457
          %v495 = vpack.c.bf16 %v484, %v460
          %v496 = vpack.c.bf16 %v486, %v462
          %v497 = vpack.c.bf16 %v489, %v465
          %v498 = vpack.c.bf16 %v491, %v467
          %s499 = scalar_lea.vmem [#allocation2], 8
          %500 = vst [vmem:[%s499] sm:$0xff] %v493
          %501 = vst [vmem:[%s499 + $0x10] sm:$0xff] %v494
          %502 = vst [vmem:[%s499 + $0x20] sm:$0xff] %v495
          %503 = vst [vmem:[%s499 + $0x30] sm:$0xff] %v496
          %504 = vst [vmem:[%s499 + $0x40] sm:$0xff] %v497
          %505 = vst [vmem:[%s499 + $0x50] sm:$0xff] %v498
        $region44: #{tpu_custom_call.1} parent=35 // pred_fallthru
          _
        %s506 = smul.u32 %s27, 256
        %s507 = sshra.s32 %s506, 7
        %s508 = sand.u32 %s506, 127
        %s509 = smul.addr %s507, 4
        %s510 = scalar_lea.vmem [#allocation2], %s509
        %v511 = vld [vmem:[%s510] sm:$0xff]
        %v512 = vld [vmem:[%s510 + $0x10] sm:$0xff]
        %v513 = vld [vmem:[#allocation2 + $0x20] sm:$0xff]
        %v514 = vld [vmem:[#allocation2 + $0x28] sm:$0xff]
        %v515 = vld [vmem:[#allocation2 + $0x30] sm:$0xff]
        %v516 = vld [vmem:[#allocation2 + $0x38] sm:$0xff]
        %v517 = vld [vmem:[#allocation2 + $0x40] sm:$0xff]
        %v518 = vld [vmem:[#allocation2 + $0x48] sm:$0xff]
        %v519 = vld [vmem:[#allocation2 + $0x50] sm:$0xff]
        %v520 = vld [vmem:[#allocation2 + $0x58] sm:$0xff]
        %v523 = vunpack.c.l.b16 %v511
        %v524 = vunpack.c.h.b16 %v511
        %v525 = vunpack.c.l.b16 %v512
        %v526 = vunpack.c.h.b16 %v512
        %v527 = vpack.c.b16 %v525, %v523
        %v528 = vpack.c.b16 %v526, %v524
        %531 = vxpose.binary.xlu0.c.b16.start [1/16] %v528, %v527, 128
        %532 = vxpose.binary.xlu0.c.b16.cont [2/16] 0, 0, 128
        %533 = vxpose.binary.xlu0.c.b16.cont [3/16] 0, 0, 128
        %534 = vxpose.binary.xlu0.c.b16.cont [4/16] 0, 0, 128
        %535 = vxpose.binary.xlu0.c.b16.cont [5/16] 0, 0, 128
        %536 = vxpose.binary.xlu0.c.b16.cont [6/16] 0, 0, 128
        %537 = vxpose.binary.xlu0.c.b16.cont [7/16] 0, 0, 128
        %538 = vxpose.binary.xlu0.c.b16.end [8/16] 0, 0, 128
        %v539 = vpop.trf.xlu0
        %v540 = vpop.trf.xlu0
        %v541 = vpop.trf.xlu0
        %v542 = vpop.trf.xlu0
        %v543 = vpop.trf.xlu0
        %v544 = vpop.trf.xlu0
        %v545 = vpop.trf.xlu0
        %v546 = vpop.trf.xlu0
        %v547 = vpop.trf.xlu0
        %v548 = vpop.trf.xlu0
        %v549 = vpop.trf.xlu0
        %v550 = vpop.trf.xlu0
        %v551 = vpop.trf.xlu0
        %v552 = vpop.trf.xlu0
        %v553 = vpop.trf.xlu0
        %v554 = vpop.trf.xlu0
        %v559 = vunpack.c.l.b16 %v513
        %v560 = vunpack.c.h.b16 %v513
        %v561 = vunpack.c.l.b16 %v514
        %v562 = vunpack.c.h.b16 %v514
        %v563 = vunpack.c.l.b16 %v515
        %v564 = vunpack.c.h.b16 %v515
        %v565 = vunpack.c.l.b16 %v516
        %v566 = vunpack.c.h.b16 %v516
        %v567 = vpack.c.b16 %v563, %v559
        %v568 = vpack.c.b16 %v564, %v560
        %v569 = vpack.c.b16 %v565, %v561
        %v570 = vpack.c.b16 %v566, %v562
        %vm575 = vcmask 130048
        %v577 = vsel %vm575, %v539, 0
        %v580 = vsel %vm575, %v541, 0
        %v583 = vsel %vm575, %v543, 0
        %v586 = vsel %vm575, %v545, 0
        %v589 = vsel %vm575, %v547, 0
        %v592 = vsel %vm575, %v549, 0
        %v595 = vsel %vm575, %v551, 0
        %v598 = vsel %vm575, %v553, 0
        %v601 = vsel %vm575, %v540, 0
        %v604 = vsel %vm575, %v542, 0
        %v607 = vsel %vm575, %v544, 0
        %v610 = vsel %vm575, %v546, 0
        %v613 = vsel %vm575, %v548, 0
        %v616 = vsel %vm575, %v550, 0
        %v619 = vsel %vm575, %v552, 0
        %v622 = vsel %vm575, %v554, 0
        %624 = vmatpush.bf16.msra.mxu0 0
        %625 = vmatpush.bf16.msra.mxu0 0
        %626 = vmatpush.bf16.msra.mxu0 0
        %627 = vmatpush.bf16.msra.mxu0 0
        %628 = vmatpush.bf16.msra.mxu0 0
        %629 = vmatpush.bf16.msra.mxu0 0
        %630 = vmatpush.bf16.msra.mxu0 0
        %631 = vmatpush.bf16.msra.mxu0 %v567
        %632 = vmatmul.bf16.gmra.mxu0 %v577
        %v633 = vpop.f32.mrf.mxu0
        %v634 = vadd.f32 0.0, %v633
        %v635 = vpop.f32.mrf.mxu0
        %v636 = vadd.f32 0.0, %v635
        %637 = vmatmul.bf16.gmra.mxu0 %v580
        %v638 = vpop.f32.mrf.mxu0
        %v639 = vadd.f32 0.0, %v638
        %v640 = vpop.f32.mrf.mxu0
        %v641 = vadd.f32 0.0, %v640
        %642 = vmatmul.bf16.gmra.mxu0 %v583
        %v643 = vpop.f32.mrf.mxu0
        %v644 = vadd.f32 0.0, %v643
        %v645 = vpop.f32.mrf.mxu0
        %v646 = vadd.f32 0.0, %v645
        %647 = vmatmul.bf16.gmra.mxu0 %v586
        %v648 = vpop.f32.mrf.mxu0
        %v649 = vadd.f32 0.0, %v648
        %v650 = vpop.f32.mrf.mxu0
        %v651 = vadd.f32 0.0, %v650
        %652 = vmatmul.bf16.gmra.mxu0 %v589
        %v653 = vpop.f32.mrf.mxu0
        %v654 = vadd.f32 0.0, %v653
        %v655 = vpop.f32.mrf.mxu0
        %v656 = vadd.f32 0.0, %v655
        %657 = vmatmul.bf16.gmra.mxu0 %v592
        %v658 = vpop.f32.mrf.mxu0
        %v659 = vadd.f32 0.0, %v658
        %v660 = vpop.f32.mrf.mxu0
        %v661 = vadd.f32 0.0, %v660
        %662 = vmatmul.bf16.gmra.mxu0 %v595
        %v663 = vpop.f32.mrf.mxu0
        %v664 = vadd.f32 0.0, %v663
        %v665 = vpop.f32.mrf.mxu0
        %v666 = vadd.f32 0.0, %v665
        %667 = vmatmul.bf16.gmra.mxu0 %v598
        %v668 = vpop.f32.mrf.mxu0
        %v669 = vadd.f32 0.0, %v668
        %v670 = vpop.f32.mrf.mxu0
        %v671 = vadd.f32 0.0, %v670
        %672 = vmatmul.bf16.gmra.mxu0 %v601
        %v673 = vpop.f32.mrf.mxu0
        %v674 = vadd.f32 0.0, %v673
        %v675 = vpop.f32.mrf.mxu0
        %v676 = vadd.f32 0.0, %v675
        %677 = vmatmul.bf16.gmra.mxu0 %v604
        %v678 = vpop.f32.mrf.mxu0
        %v679 = vadd.f32 0.0, %v678
        %v680 = vpop.f32.mrf.mxu0
        %v681 = vadd.f32 0.0, %v680
        %682 = vmatmul.bf16.gmra.mxu0 %v607
        %v683 = vpop.f32.mrf.mxu0
        %v684 = vadd.f32 0.0, %v683
        %v685 = vpop.f32.mrf.mxu0
        %v686 = vadd.f32 0.0, %v685
        %687 = vmatmul.bf16.gmra.mxu0 %v610
        %v688 = vpop.f32.mrf.mxu0
        %v689 = vadd.f32 0.0, %v688
        %v690 = vpop.f32.mrf.mxu0
        %v691 = vadd.f32 0.0, %v690
        %692 = vmatmul.bf16.gmra.mxu0 %v613
        %v693 = vpop.f32.mrf.mxu0
        %v694 = vadd.f32 0.0, %v693
        %v695 = vpop.f32.mrf.mxu0
        %v696 = vadd.f32 0.0, %v695
        %697 = vmatmul.bf16.gmra.mxu0 %v616
        %v698 = vpop.f32.mrf.mxu0
        %v699 = vadd.f32 0.0, %v698
        %v700 = vpop.f32.mrf.mxu0
        %v701 = vadd.f32 0.0, %v700
        %702 = vmatmul.bf16.gmra.mxu0 %v619
        %v703 = vpop.f32.mrf.mxu0
        %v704 = vadd.f32 0.0, %v703
        %v705 = vpop.f32.mrf.mxu0
        %v706 = vadd.f32 0.0, %v705
        %707 = vmatmul.bf16.gmra.mxu0 %v622
        %v708 = vpop.f32.mrf.mxu0
        %v709 = vadd.f32 0.0, %v708
        %v710 = vpop.f32.mrf.mxu0
        %v711 = vadd.f32 0.0, %v710
        %712 = vdwg.mxu0
        %713 = vmatpush.bf16.msra.mxu0 0
        %714 = vmatpush.bf16.msra.mxu0 0
        %715 = vmatpush.bf16.msra.mxu0 0
        %716 = vmatpush.bf16.msra.mxu0 0
        %717 = vmatpush.bf16.msra.mxu0 0
        %718 = vmatpush.bf16.msra.mxu0 0
        %719 = vmatpush.bf16.msra.mxu0 0
        %720 = vmatpush.bf16.msra.mxu0 %v568
        %721 = vmatmul.bf16.gmra.mxu0 %v577
        %v722 = vpop.f32.mrf.mxu0
        %v723 = vadd.f32 0.0, %v722
        %v724 = vpop.f32.mrf.mxu0
        %v725 = vadd.f32 0.0, %v724
        %726 = vmatmul.bf16.gmra.mxu0 %v580
        %v727 = vpop.f32.mrf.mxu0
        %v728 = vadd.f32 0.0, %v727
        %v729 = vpop.f32.mrf.mxu0
        %v730 = vadd.f32 0.0, %v729
        %731 = vmatmul.bf16.gmra.mxu0 %v583
        %v732 = vpop.f32.mrf.mxu0
        %v733 = vadd.f32 0.0, %v732
        %v734 = vpop.f32.mrf.mxu0
        %v735 = vadd.f32 0.0, %v734
        %736 = vmatmul.bf16.gmra.mxu0 %v586
        %v737 = vpop.f32.mrf.mxu0
        %v738 = vadd.f32 0.0, %v737
        %v739 = vpop.f32.mrf.mxu0
        %v740 = vadd.f32 0.0, %v739
        %741 = vmatmul.bf16.gmra.mxu0 %v589
        %v742 = vpop.f32.mrf.mxu0
        %v743 = vadd.f32 0.0, %v742
        %v744 = vpop.f32.mrf.mxu0
        %v745 = vadd.f32 0.0, %v744
        %746 = vmatmul.bf16.gmra.mxu0 %v592
        %v747 = vpop.f32.mrf.mxu0
        %v748 = vadd.f32 0.0, %v747
        %v749 = vpop.f32.mrf.mxu0
        %v750 = vadd.f32 0.0, %v749
        %751 = vmatmul.bf16.gmra.mxu0 %v595
        %v752 = vpop.f32.mrf.mxu0
        %v753 = vadd.f32 0.0, %v752
        %v754 = vpop.f32.mrf.mxu0
        %v755 = vadd.f32 0.0, %v754
        %756 = vmatmul.bf16.gmra.mxu0 %v598
        %v757 = vpop.f32.mrf.mxu0
        %v758 = vadd.f32 0.0, %v757
        %v759 = vpop.f32.mrf.mxu0
        %v760 = vadd.f32 0.0, %v759
        %761 = vmatmul.bf16.gmra.mxu0 %v601
        %v762 = vpop.f32.mrf.mxu0
        %v763 = vadd.f32 0.0, %v762
        %v764 = vpop.f32.mrf.mxu0
        %v765 = vadd.f32 0.0, %v764
        %766 = vmatmul.bf16.gmra.mxu0 %v604
        %v767 = vpop.f32.mrf.mxu0
        %v768 = vadd.f32 0.0, %v767
        %v769 = vpop.f32.mrf.mxu0
        %v770 = vadd.f32 0.0, %v769
        %771 = vmatmul.bf16.gmra.mxu0 %v607
        %v772 = vpop.f32.mrf.mxu0
        %v773 = vadd.f32 0.0, %v772
        %v774 = vpop.f32.mrf.mxu0
        %v775 = vadd.f32 0.0, %v774
        %776 = vmatmul.bf16.gmra.mxu0 %v610
        %v777 = vpop.f32.mrf.mxu0
        %v778 = vadd.f32 0.0, %v777
        %v779 = vpop.f32.mrf.mxu0
        %v780 = vadd.f32 0.0, %v779
        %781 = vmatmul.bf16.gmra.mxu0 %v613
        %v782 = vpop.f32.mrf.mxu0
        %v783 = vadd.f32 0.0, %v782
        %v784 = vpop.f32.mrf.mxu0
        %v785 = vadd.f32 0.0, %v784
        %786 = vmatmul.bf16.gmra.mxu0 %v616
        %v787 = vpop.f32.mrf.mxu0
        %v788 = vadd.f32 0.0, %v787
        %v789 = vpop.f32.mrf.mxu0
        %v790 = vadd.f32 0.0, %v789
        %791 = vmatmul.bf16.gmra.mxu0 %v619
        %v792 = vpop.f32.mrf.mxu0
        %v793 = vadd.f32 0.0, %v792
        %v794 = vpop.f32.mrf.mxu0
        %v795 = vadd.f32 0.0, %v794
        %796 = vmatmul.bf16.gmra.mxu0 %v622
        %v797 = vpop.f32.mrf.mxu0
        %v798 = vadd.f32 0.0, %v797
        %v799 = vpop.f32.mrf.mxu0
        %v800 = vadd.f32 0.0, %v799
        %801 = vdwg.mxu0
        %802 = vmatpush.bf16.msra.mxu0 0
        %803 = vmatpush.bf16.msra.mxu0 0
        %804 = vmatpush.bf16.msra.mxu0 0
        %805 = vmatpush.bf16.msra.mxu0 0
        %806 = vmatpush.bf16.msra.mxu0 0
        %807 = vmatpush.bf16.msra.mxu0 0
        %808 = vmatpush.bf16.msra.mxu0 0
        %809 = vmatpush.bf16.msra.mxu0 %v569
        %810 = vmatmul.bf16.gmra.mxu0 %v577
        %v811 = vpop.f32.mrf.mxu0
        %v812 = vadd.f32 0.0, %v811
        %v813 = vpop.f32.mrf.mxu0
        %v814 = vadd.f32 0.0, %v813
        %815 = vmatmul.bf16.gmra.mxu0 %v580
        %v816 = vpop.f32.mrf.mxu0
        %v817 = vadd.f32 0.0, %v816
        %v818 = vpop.f32.mrf.mxu0
        %v819 = vadd.f32 0.0, %v818
        %820 = vmatmul.bf16.gmra.mxu0 %v583
        %v821 = vpop.f32.mrf.mxu0
        %v822 = vadd.f32 0.0, %v821
        %v823 = vpop.f32.mrf.mxu0
        %v824 = vadd.f32 0.0, %v823
        %825 = vmatmul.bf16.gmra.mxu0 %v586
        %v826 = vpop.f32.mrf.mxu0
        %v827 = vadd.f32 0.0, %v826
        %v828 = vpop.f32.mrf.mxu0
        %v829 = vadd.f32 0.0, %v828
        %830 = vmatmul.bf16.gmra.mxu0 %v589
        %v831 = vpop.f32.mrf.mxu0
        %v832 = vadd.f32 0.0, %v831
        %v833 = vpop.f32.mrf.mxu0
        %v834 = vadd.f32 0.0, %v833
        %835 = vmatmul.bf16.gmra.mxu0 %v592
        %v836 = vpop.f32.mrf.mxu0
        %v837 = vadd.f32 0.0, %v836
        %v838 = vpop.f32.mrf.mxu0
        %v839 = vadd.f32 0.0, %v838
        %840 = vmatmul.bf16.gmra.mxu0 %v595
        %v841 = vpop.f32.mrf.mxu0
        %v842 = vadd.f32 0.0, %v841
        %v843 = vpop.f32.mrf.mxu0
        %v844 = vadd.f32 0.0, %v843
        %845 = vmatmul.bf16.gmra.mxu0 %v598
        %v846 = vpop.f32.mrf.mxu0
        %v847 = vadd.f32 0.0, %v846
        %v848 = vpop.f32.mrf.mxu0
        %v849 = vadd.f32 0.0, %v848
        %850 = vmatmul.bf16.gmra.mxu0 %v601
        %v851 = vpop.f32.mrf.mxu0
        %v852 = vadd.f32 0.0, %v851
        %v853 = vpop.f32.mrf.mxu0
        %v854 = vadd.f32 0.0, %v853
        %855 = vmatmul.bf16.gmra.mxu0 %v604
        %v856 = vpop.f32.mrf.mxu0
        %v857 = vadd.f32 0.0, %v856
        %v858 = vpop.f32.mrf.mxu0
        %v859 = vadd.f32 0.0, %v858
        %860 = vmatmul.bf16.gmra.mxu0 %v607
        %v861 = vpop.f32.mrf.mxu0
        %v862 = vadd.f32 0.0, %v861
        %v863 = vpop.f32.mrf.mxu0
        %v864 = vadd.f32 0.0, %v863
        %865 = vmatmul.bf16.gmra.mxu0 %v610
        %v866 = vpop.f32.mrf.mxu0
        %v867 = vadd.f32 0.0, %v866
        %v868 = vpop.f32.mrf.mxu0
        %v869 = vadd.f32 0.0, %v868
        %870 = vmatmul.bf16.gmra.mxu0 %v613
        %v871 = vpop.f32.mrf.mxu0
        %v872 = vadd.f32 0.0, %v871
        %v873 = vpop.f32.mrf.mxu0
        %v874 = vadd.f32 0.0, %v873
        %875 = vmatmul.bf16.gmra.mxu0 %v616
        %v876 = vpop.f32.mrf.mxu0
        %v877 = vadd.f32 0.0, %v876
        %v878 = vpop.f32.mrf.mxu0
        %v879 = vadd.f32 0.0, %v878
        %880 = vmatmul.bf16.gmra.mxu0 %v619
        %v881 = vpop.f32.mrf.mxu0
        %v882 = vadd.f32 0.0, %v881
        %v883 = vpop.f32.mrf.mxu0
        %v884 = vadd.f32 0.0, %v883
        %885 = vmatmul.bf16.gmra.mxu0 %v622
        %v886 = vpop.f32.mrf.mxu0
        %v887 = vadd.f32 0.0, %v886
        %v888 = vpop.f32.mrf.mxu0
        %v889 = vadd.f32 0.0, %v888
        %890 = vdwg.mxu0
        %891 = vmatpush.bf16.msra.mxu0 0
        %892 = vmatpush.bf16.msra.mxu0 0
        %893 = vmatpush.bf16.msra.mxu0 0
        %894 = vmatpush.bf16.msra.mxu0 0
        %895 = vmatpush.bf16.msra.mxu0 0
        %896 = vmatpush.bf16.msra.mxu0 0
        %897 = vmatpush.bf16.msra.mxu0 0
        %898 = vmatpush.bf16.msra.mxu0 %v570
        %899 = vmatmul.bf16.gmra.mxu0 %v577
        %v900 = vpop.f32.mrf.mxu0
        %v901 = vadd.f32 0.0, %v900
        %v902 = vpop.f32.mrf.mxu0
        %v903 = vadd.f32 0.0, %v902
        %904 = vmatmul.bf16.gmra.mxu0 %v580
        %v905 = vpop.f32.mrf.mxu0
        %v906 = vadd.f32 0.0, %v905
        %v907 = vpop.f32.mrf.mxu0
        %v908 = vadd.f32 0.0, %v907
        %909 = vmatmul.bf16.gmra.mxu0 %v583
        %v910 = vpop.f32.mrf.mxu0
        %v911 = vadd.f32 0.0, %v910
        %v912 = vpop.f32.mrf.mxu0
        %v913 = vadd.f32 0.0, %v912
        %914 = vmatmul.bf16.gmra.mxu0 %v586
        %v915 = vpop.f32.mrf.mxu0
        %v916 = vadd.f32 0.0, %v915
        %v917 = vpop.f32.mrf.mxu0
        %v918 = vadd.f32 0.0, %v917
        %919 = vmatmul.bf16.gmra.mxu0 %v589
        %v920 = vpop.f32.mrf.mxu0
        %v921 = vadd.f32 0.0, %v920
        %v922 = vpop.f32.mrf.mxu0
        %v923 = vadd.f32 0.0, %v922
        %924 = vmatmul.bf16.gmra.mxu0 %v592
        %v925 = vpop.f32.mrf.mxu0
        %v926 = vadd.f32 0.0, %v925
        %v927 = vpop.f32.mrf.mxu0
        %v928 = vadd.f32 0.0, %v927
        %929 = vmatmul.bf16.gmra.mxu0 %v595
        %v930 = vpop.f32.mrf.mxu0
        %v931 = vadd.f32 0.0, %v930
        %v932 = vpop.f32.mrf.mxu0
        %v933 = vadd.f32 0.0, %v932
        %934 = vmatmul.bf16.gmra.mxu0 %v598
        %v935 = vpop.f32.mrf.mxu0
        %v936 = vadd.f32 0.0, %v935
        %v937 = vpop.f32.mrf.mxu0
        %v938 = vadd.f32 0.0, %v937
        %939 = vmatmul.bf16.gmra.mxu0 %v601
        %v940 = vpop.f32.mrf.mxu0
        %v941 = vadd.f32 0.0, %v940
        %v942 = vpop.f32.mrf.mxu0
        %v943 = vadd.f32 0.0, %v942
        %944 = vmatmul.bf16.gmra.mxu0 %v604
        %v945 = vpop.f32.mrf.mxu0
        %v946 = vadd.f32 0.0, %v945
        %v947 = vpop.f32.mrf.mxu0
        %v948 = vadd.f32 0.0, %v947
        %949 = vmatmul.bf16.gmra.mxu0 %v607
        %v950 = vpop.f32.mrf.mxu0
        %v951 = vadd.f32 0.0, %v950
        %v952 = vpop.f32.mrf.mxu0
        %v953 = vadd.f32 0.0, %v952
        %954 = vmatmul.bf16.gmra.mxu0 %v610
        %v955 = vpop.f32.mrf.mxu0
        %v956 = vadd.f32 0.0, %v955
        %v957 = vpop.f32.mrf.mxu0
        %v958 = vadd.f32 0.0, %v957
        %959 = vmatmul.bf16.gmra.mxu0 %v613
        %v960 = vpop.f32.mrf.mxu0
        %v961 = vadd.f32 0.0, %v960
        %v962 = vpop.f32.mrf.mxu0
        %v963 = vadd.f32 0.0, %v962
        %964 = vmatmul.bf16.gmra.mxu0 %v616
        %v965 = vpop.f32.mrf.mxu0
        %v966 = vadd.f32 0.0, %v965
        %v967 = vpop.f32.mrf.mxu0
        %v968 = vadd.f32 0.0, %v967
        %969 = vmatmul.bf16.gmra.mxu0 %v619
        %v970 = vpop.f32.mrf.mxu0
        %v971 = vadd.f32 0.0, %v970
        %v972 = vpop.f32.mrf.mxu0
        %v973 = vadd.f32 0.0, %v972
        %974 = vmatmul.bf16.gmra.mxu0 %v622
        %v975 = vpop.f32.mrf.mxu0
        %v976 = vadd.f32 0.0, %v975
        %v977 = vpop.f32.mrf.mxu0
        %v978 = vadd.f32 0.0, %v977
        %979 = vdwg.mxu0
        %v980 = vmax.f32 %v634, %v723
        %v981 = vmax.f32 %v980, %v812
        %v982 = vmax.f32 %v981, %v901
        %983 = vmax.xlane.f32.xlu0 %v982
        %v984 = vpop.xlane.xlu0 %983
        %v985 = vmax.f32 %v636, %v725
        %v986 = vmax.f32 %v985, %v814
        %v987 = vmax.f32 %v986, %v903
        %988 = vmax.xlane.f32.xlu0 %v987
        %v989 = vpop.xlane.xlu0 %988
        %v990 = vmax.f32 %v639, %v728
        %v991 = vmax.f32 %v990, %v817
        %v992 = vmax.f32 %v991, %v906
        %993 = vmax.xlane.f32.xlu0 %v992
        %v994 = vpop.xlane.xlu0 %993
        %v995 = vmax.f32 %v641, %v730
        %v996 = vmax.f32 %v995, %v819
        %v997 = vmax.f32 %v996, %v908
        %998 = vmax.xlane.f32.xlu0 %v997
        %v999 = vpop.xlane.xlu0 %998
        %v1000 = vmax.f32 %v644, %v733
        %v1001 = vmax.f32 %v1000, %v822
        %v1002 = vmax.f32 %v1001, %v911
        %1003 = vmax.xlane.f32.xlu0 %v1002
        %v1004 = vpop.xlane.xlu0 %1003
        %v1005 = vmax.f32 %v646, %v735
        %v1006 = vmax.f32 %v1005, %v824
        %v1007 = vmax.f32 %v1006, %v913
        %1008 = vmax.xlane.f32.xlu0 %v1007
        %v1009 = vpop.xlane.xlu0 %1008
        %v1010 = vmax.f32 %v649, %v738
        %v1011 = vmax.f32 %v1010, %v827
        %v1012 = vmax.f32 %v1011, %v916
        %1013 = vmax.xlane.f32.xlu0 %v1012
        %v1014 = vpop.xlane.xlu0 %1013
        %v1015 = vmax.f32 %v651, %v740
        %v1016 = vmax.f32 %v1015, %v829
        %v1017 = vmax.f32 %v1016, %v918
        %1018 = vmax.xlane.f32.xlu0 %v1017
        %v1019 = vpop.xlane.xlu0 %1018
        %v1020 = vmax.f32 %v654, %v743
        %v1021 = vmax.f32 %v1020, %v832
        %v1022 = vmax.f32 %v1021, %v921
        %1023 = vmax.xlane.f32.xlu0 %v1022
        %v1024 = vpop.xlane.xlu0 %1023
        %v1025 = vmax.f32 %v656, %v745
        %v1026 = vmax.f32 %v1025, %v834
        %v1027 = vmax.f32 %v1026, %v923
        %1028 = vmax.xlane.f32.xlu0 %v1027
        %v1029 = vpop.xlane.xlu0 %1028
        %v1030 = vmax.f32 %v659, %v748
        %v1031 = vmax.f32 %v1030, %v837
        %v1032 = vmax.f32 %v1031, %v926
        %1033 = vmax.xlane.f32.xlu0 %v1032
        %v1034 = vpop.xlane.xlu0 %1033
        %v1035 = vmax.f32 %v661, %v750
        %v1036 = vmax.f32 %v1035, %v839
        %v1037 = vmax.f32 %v1036, %v928
        %1038 = vmax.xlane.f32.xlu0 %v1037
        %v1039 = vpop.xlane.xlu0 %1038
        %v1040 = vmax.f32 %v664, %v753
        %v1041 = vmax.f32 %v1040, %v842
        %v1042 = vmax.f32 %v1041, %v931
        %1043 = vmax.xlane.f32.xlu0 %v1042
        %v1044 = vpop.xlane.xlu0 %1043
        %v1045 = vmax.f32 %v666, %v755
        %v1046 = vmax.f32 %v1045, %v844
        %v1047 = vmax.f32 %v1046, %v933
        %1048 = vmax.xlane.f32.xlu0 %v1047
        %v1049 = vpop.xlane.xlu0 %1048
        %v1050 = vmax.f32 %v669, %v758
        %v1051 = vmax.f32 %v1050, %v847
        %v1052 = vmax.f32 %v1051, %v936
        %1053 = vmax.xlane.f32.xlu0 %v1052
        %v1054 = vpop.xlane.xlu0 %1053
        %v1055 = vmax.f32 %v671, %v760
        %v1056 = vmax.f32 %v1055, %v849
        %v1057 = vmax.f32 %v1056, %v938
        %1058 = vmax.xlane.f32.xlu0 %v1057
        %v1059 = vpop.xlane.xlu0 %1058
        %v1060 = vmax.f32 %v674, %v763
        %v1061 = vmax.f32 %v1060, %v852
        %v1062 = vmax.f32 %v1061, %v941
        %1063 = vmax.xlane.f32.xlu0 %v1062
        %v1064 = vpop.xlane.xlu0 %1063
        %v1065 = vmax.f32 %v676, %v765
        %v1066 = vmax.f32 %v1065, %v854
        %v1067 = vmax.f32 %v1066, %v943
        %1068 = vmax.xlane.f32.xlu0 %v1067
        %v1069 = vpop.xlane.xlu0 %1068
        %v1070 = vmax.f32 %v679, %v768
        %v1071 = vmax.f32 %v1070, %v857
        %v1072 = vmax.f32 %v1071, %v946
        %1073 = vmax.xlane.f32.xlu0 %v1072
        %v1074 = vpop.xlane.xlu0 %1073
        %v1075 = vmax.f32 %v681, %v770
        %v1076 = vmax.f32 %v1075, %v859
        %v1077 = vmax.f32 %v1076, %v948
        %1078 = vmax.xlane.f32.xlu0 %v1077
        %v1079 = vpop.xlane.xlu0 %1078
        %v1080 = vmax.f32 %v684, %v773
        %v1081 = vmax.f32 %v1080, %v862
        %v1082 = vmax.f32 %v1081, %v951
        %1083 = vmax.xlane.f32.xlu0 %v1082
        %v1084 = vpop.xlane.xlu0 %1083
        %v1085 = vmax.f32 %v686, %v775
        %v1086 = vmax.f32 %v1085, %v864
        %v1087 = vmax.f32 %v1086, %v953
        %1088 = vmax.xlane.f32.xlu0 %v1087
        %v1089 = vpop.xlane.xlu0 %1088
        %v1090 = vmax.f32 %v689, %v778
        %v1091 = vmax.f32 %v1090, %v867
        %v1092 = vmax.f32 %v1091, %v956
        %1093 = vmax.xlane.f32.xlu0 %v1092
        %v1094 = vpop.xlane.xlu0 %1093
        %v1095 = vmax.f32 %v691, %v780
        %v1096 = vmax.f32 %v1095, %v869
        %v1097 = vmax.f32 %v1096, %v958
        %1098 = vmax.xlane.f32.xlu0 %v1097
        %v1099 = vpop.xlane.xlu0 %1098
        %v1100 = vmax.f32 %v694, %v783
        %v1101 = vmax.f32 %v1100, %v872
        %v1102 = vmax.f32 %v1101, %v961
        %1103 = vmax.xlane.f32.xlu0 %v1102
        %v1104 = vpop.xlane.xlu0 %1103
        %v1105 = vmax.f32 %v696, %v785
        %v1106 = vmax.f32 %v1105, %v874
        %v1107 = vmax.f32 %v1106, %v963
        %1108 = vmax.xlane.f32.xlu0 %v1107
        %v1109 = vpop.xlane.xlu0 %1108
        %v1110 = vmax.f32 %v699, %v788
        %v1111 = vmax.f32 %v1110, %v877
        %v1112 = vmax.f32 %v1111, %v966
        %1113 = vmax.xlane.f32.xlu0 %v1112
        %v1114 = vpop.xlane.xlu0 %1113
        %v1115 = vmax.f32 %v701, %v790
        %v1116 = vmax.f32 %v1115, %v879
        %v1117 = vmax.f32 %v1116, %v968
        %1118 = vmax.xlane.f32.xlu0 %v1117
        %v1119 = vpop.xlane.xlu0 %1118
        %v1120 = vmax.f32 %v704, %v793
        %v1121 = vmax.f32 %v1120, %v882
        %v1122 = vmax.f32 %v1121, %v971
        %1123 = vmax.xlane.f32.xlu0 %v1122
        %v1124 = vpop.xlane.xlu0 %1123
        %v1125 = vmax.f32 %v706, %v795
        %v1126 = vmax.f32 %v1125, %v884
        %v1127 = vmax.f32 %v1126, %v973
        %1128 = vmax.xlane.f32.xlu0 %v1127
        %v1129 = vpop.xlane.xlu0 %1128
        %v1130 = vmax.f32 %v709, %v798
        %v1131 = vmax.f32 %v1130, %v887
        %v1132 = vmax.f32 %v1131, %v976
        %1133 = vmax.xlane.f32.xlu0 %v1132
        %v1134 = vpop.xlane.xlu0 %1133
        %v1135 = vmax.f32 %v711, %v800
        %v1136 = vmax.f32 %v1135, %v889
        %v1137 = vmax.f32 %v1136, %v978
        %1138 = vmax.xlane.f32.xlu0 %v1137
        %v1139 = vpop.xlane.xlu0 %1138
        %v1140 = vsub.f32 %v634, %v984
        %v1141 = vsub.f32 %v723, %v984
        %v1142 = vsub.f32 %v812, %v984
        %v1143 = vsub.f32 %v901, %v984
        %v1144 = vsub.f32 %v636, %v989
        %v1145 = vsub.f32 %v725, %v989
        %v1146 = vsub.f32 %v814, %v989
        %v1147 = vsub.f32 %v903, %v989
        %v1148 = vsub.f32 %v639, %v994
        %v1149 = vsub.f32 %v728, %v994
        %v1150 = vsub.f32 %v817, %v994
        %v1151 = vsub.f32 %v906, %v994
        %v1152 = vsub.f32 %v641, %v999
        %v1153 = vsub.f32 %v730, %v999
        %v1154 = vsub.f32 %v819, %v999
        %v1155 = vsub.f32 %v908, %v999
        %v1156 = vsub.f32 %v644, %v1004
        %v1157 = vsub.f32 %v733, %v1004
        %v1158 = vsub.f32 %v822, %v1004
        %v1159 = vsub.f32 %v911, %v1004
        %v1160 = vsub.f32 %v646, %v1009
        %v1161 = vsub.f32 %v735, %v1009
        %v1162 = vsub.f32 %v824, %v1009
        %v1163 = vsub.f32 %v913, %v1009
        %v1164 = vsub.f32 %v649, %v1014
        %v1165 = vsub.f32 %v738, %v1014
        %v1166 = vsub.f32 %v827, %v1014
        %v1167 = vsub.f32 %v916, %v1014
        %v1168 = vsub.f32 %v651, %v1019
        %v1169 = vsub.f32 %v740, %v1019
        %v1170 = vsub.f32 %v829, %v1019
        %v1171 = vsub.f32 %v918, %v1019
        %v1172 = vsub.f32 %v654, %v1024
        %v1173 = vsub.f32 %v743, %v1024
        %v1174 = vsub.f32 %v832, %v1024
        %v1175 = vsub.f32 %v921, %v1024
        %v1176 = vsub.f32 %v656, %v1029
        %v1177 = vsub.f32 %v745, %v1029
        %v1178 = vsub.f32 %v834, %v1029
        %v1179 = vsub.f32 %v923, %v1029
        %v1180 = vsub.f32 %v659, %v1034
        %v1181 = vsub.f32 %v748, %v1034
        %v1182 = vsub.f32 %v837, %v1034
        %v1183 = vsub.f32 %v926, %v1034
        %v1184 = vsub.f32 %v661, %v1039
        %v1185 = vsub.f32 %v750, %v1039
        %v1186 = vsub.f32 %v839, %v1039
        %v1187 = vsub.f32 %v928, %v1039
        %v1188 = vsub.f32 %v664, %v1044
        %v1189 = vsub.f32 %v753, %v1044
        %v1190 = vsub.f32 %v842, %v1044
        %v1191 = vsub.f32 %v931, %v1044
        %v1192 = vsub.f32 %v666, %v1049
        %v1193 = vsub.f32 %v755, %v1049
        %v1194 = vsub.f32 %v844, %v1049
        %v1195 = vsub.f32 %v933, %v1049
        %v1196 = vsub.f32 %v669, %v1054
        %v1197 = vsub.f32 %v758, %v1054
        %v1198 = vsub.f32 %v847, %v1054
        %v1199 = vsub.f32 %v936, %v1054
        %v1200 = vsub.f32 %v671, %v1059
        %v1201 = vsub.f32 %v760, %v1059
        %v1202 = vsub.f32 %v849, %v1059
        %v1203 = vsub.f32 %v938, %v1059
        %v1204 = vsub.f32 %v674, %v1064
        %v1205 = vsub.f32 %v763, %v1064
        %v1206 = vsub.f32 %v852, %v1064
        %v1207 = vsub.f32 %v941, %v1064
        %v1208 = vsub.f32 %v676, %v1069
        %v1209 = vsub.f32 %v765, %v1069
        %v1210 = vsub.f32 %v854, %v1069
        %v1211 = vsub.f32 %v943, %v1069
        %v1212 = vsub.f32 %v679, %v1074
        %v1213 = vsub.f32 %v768, %v1074
        %v1214 = vsub.f32 %v857, %v1074
        %v1215 = vsub.f32 %v946, %v1074
        %v1216 = vsub.f32 %v681, %v1079
        %v1217 = vsub.f32 %v770, %v1079
        %v1218 = vsub.f32 %v859, %v1079
        %v1219 = vsub.f32 %v948, %v1079
        %v1220 = vsub.f32 %v684, %v1084
        %v1221 = vsub.f32 %v773, %v1084
        %v1222 = vsub.f32 %v862, %v1084
        %v1223 = vsub.f32 %v951, %v1084
        %v1224 = vsub.f32 %v686, %v1089
        %v1225 = vsub.f32 %v775, %v1089
        %v1226 = vsub.f32 %v864, %v1089
        %v1227 = vsub.f32 %v953, %v1089
        %v1228 = vsub.f32 %v689, %v1094
        %v1229 = vsub.f32 %v778, %v1094
        %v1230 = vsub.f32 %v867, %v1094
        %v1231 = vsub.f32 %v956, %v1094
        %v1232 = vsub.f32 %v691, %v1099
        %v1233 = vsub.f32 %v780, %v1099
        %v1234 = vsub.f32 %v869, %v1099
        %v1235 = vsub.f32 %v958, %v1099
        %v1236 = vsub.f32 %v694, %v1104
        %v1237 = vsub.f32 %v783, %v1104
        %v1238 = vsub.f32 %v872, %v1104
        %v1239 = vsub.f32 %v961, %v1104
        %v1240 = vsub.f32 %v696, %v1109
        %v1241 = vsub.f32 %v785, %v1109
        %v1242 = vsub.f32 %v874, %v1109
        %v1243 = vsub.f32 %v963, %v1109
        %v1244 = vsub.f32 %v699, %v1114
        %v1245 = vsub.f32 %v788, %v1114
        %v1246 = vsub.f32 %v877, %v1114
        %v1247 = vsub.f32 %v966, %v1114
        %v1248 = vsub.f32 %v701, %v1119
        %v1249 = vsub.f32 %v790, %v1119
        %v1250 = vsub.f32 %v879, %v1119
        %v1251 = vsub.f32 %v968, %v1119
        %v1252 = vsub.f32 %v704, %v1124
        %v1253 = vsub.f32 %v793, %v1124
        %v1254 = vsub.f32 %v882, %v1124
        %v1255 = vsub.f32 %v971, %v1124
        %v1256 = vsub.f32 %v706, %v1129
        %v1257 = vsub.f32 %v795, %v1129
        %v1258 = vsub.f32 %v884, %v1129
        %v1259 = vsub.f32 %v973, %v1129
        %v1260 = vsub.f32 %v709, %v1134
        %v1261 = vsub.f32 %v798, %v1134
        %v1262 = vsub.f32 %v887, %v1134
        %v1263 = vsub.f32 %v976, %v1134
        %v1264 = vsub.f32 %v711, %v1139
        %v1265 = vsub.f32 %v800, %v1139
        %v1266 = vsub.f32 %v889, %v1139
        %v1267 = vsub.f32 %v978, %v1139
        %v1268 = vmul.f32 %v1140, 1.442695
        %v1269 = vpow.pop %v1268
        %v1270 = vmul.f32 %v1141, 1.442695
        %v1271 = vpow.pop %v1270
        %v1272 = vmul.f32 %v1142, 1.442695
        %v1273 = vpow.pop %v1272
        %v1274 = vmul.f32 %v1143, 1.442695
        %v1275 = vpow.pop %v1274
        %v1276 = vmul.f32 %v1144, 1.442695
        %v1277 = vpow.pop %v1276
        %v1278 = vmul.f32 %v1145, 1.442695
        %v1279 = vpow.pop %v1278
        %v1280 = vmul.f32 %v1146, 1.442695
        %v1281 = vpow.pop %v1280
        %v1282 = vmul.f32 %v1147, 1.442695
        %v1283 = vpow.pop %v1282
        %v1284 = vmul.f32 %v1148, 1.442695
        %v1285 = vpow.pop %v1284
        %v1286 = vmul.f32 %v1149, 1.442695
        %v1287 = vpow.pop %v1286
        %v1288 = vmul.f32 %v1150, 1.442695
        %v1289 = vpow.pop %v1288
        %v1290 = vmul.f32 %v1151, 1.442695
        %v1291 = vpow.pop %v1290
        %v1292 = vmul.f32 %v1152, 1.442695
        %v1293 = vpow.pop %v1292
        %v1294 = vmul.f32 %v1153, 1.442695
        %v1295 = vpow.pop %v1294
        %v1296 = vmul.f32 %v1154, 1.442695
        %v1297 = vpow.pop %v1296
        %v1298 = vmul.f32 %v1155, 1.442695
        %v1299 = vpow.pop %v1298
        %v1300 = vmul.f32 %v1156, 1.442695
        %v1301 = vpow.pop %v1300
        %v1302 = vmul.f32 %v1157, 1.442695
        %v1303 = vpow.pop %v1302
        %v1304 = vmul.f32 %v1158, 1.442695
        %v1305 = vpow.pop %v1304
        %v1306 = vmul.f32 %v1159, 1.442695
        %v1307 = vpow.pop %v1306
        %v1308 = vmul.f32 %v1160, 1.442695
        %v1309 = vpow.pop %v1308
        %v1310 = vmul.f32 %v1161, 1.442695
        %v1311 = vpow.pop %v1310
        %v1312 = vmul.f32 %v1162, 1.442695
        %v1313 = vpow.pop %v1312
        %v1314 = vmul.f32 %v1163, 1.442695
        %v1315 = vpow.pop %v1314
        %v1316 = vmul.f32 %v1164, 1.442695
        %v1317 = vpow.pop %v1316
        %v1318 = vmul.f32 %v1165, 1.442695
        %v1319 = vpow.pop %v1318
        %v1320 = vmul.f32 %v1166, 1.442695
        %v1321 = vpow.pop %v1320
        %v1322 = vmul.f32 %v1167, 1.442695
        %v1323 = vpow.pop %v1322
        %v1324 = vmul.f32 %v1168, 1.442695
        %v1325 = vpow.pop %v1324
        %v1326 = vmul.f32 %v1169, 1.442695
        %v1327 = vpow.pop %v1326
        %v1328 = vmul.f32 %v1170, 1.442695
        %v1329 = vpow.pop %v1328
        %v1330 = vmul.f32 %v1171, 1.442695
        %v1331 = vpow.pop %v1330
        %v1332 = vmul.f32 %v1172, 1.442695
        %v1333 = vpow.pop %v1332
        %v1334 = vmul.f32 %v1173, 1.442695
        %v1335 = vpow.pop %v1334
        %v1336 = vmul.f32 %v1174, 1.442695
        %v1337 = vpow.pop %v1336
        %v1338 = vmul.f32 %v1175, 1.442695
        %v1339 = vpow.pop %v1338
        %v1340 = vmul.f32 %v1176, 1.442695
        %v1341 = vpow.pop %v1340
        %v1342 = vmul.f32 %v1177, 1.442695
        %v1343 = vpow.pop %v1342
        %v1344 = vmul.f32 %v1178, 1.442695
        %v1345 = vpow.pop %v1344
        %v1346 = vmul.f32 %v1179, 1.442695
        %v1347 = vpow.pop %v1346
        %v1348 = vmul.f32 %v1180, 1.442695
        %v1349 = vpow.pop %v1348
        %v1350 = vmul.f32 %v1181, 1.442695
        %v1351 = vpow.pop %v1350
        %v1352 = vmul.f32 %v1182, 1.442695
        %v1353 = vpow.pop %v1352
        %v1354 = vmul.f32 %v1183, 1.442695
        %v1355 = vpow.pop %v1354
        %v1356 = vmul.f32 %v1184, 1.442695
        %v1357 = vpow.pop %v1356
        %v1358 = vmul.f32 %v1185, 1.442695
        %v1359 = vpow.pop %v1358
        %v1360 = vmul.f32 %v1186, 1.442695
        %v1361 = vpow.pop %v1360
        %v1362 = vmul.f32 %v1187, 1.442695
        %v1363 = vpow.pop %v1362
        %v1364 = vmul.f32 %v1188, 1.442695
        %v1365 = vpow.pop %v1364
        %v1366 = vmul.f32 %v1189, 1.442695
        %v1367 = vpow.pop %v1366
        %v1368 = vmul.f32 %v1190, 1.442695
        %v1369 = vpow.pop %v1368
        %v1370 = vmul.f32 %v1191, 1.442695
        %v1371 = vpow.pop %v1370
        %v1372 = vmul.f32 %v1192, 1.442695
        %v1373 = vpow.pop %v1372
        %v1374 = vmul.f32 %v1193, 1.442695
        %v1375 = vpow.pop %v1374
        %v1376 = vmul.f32 %v1194, 1.442695
        %v1377 = vpow.pop %v1376
        %v1378 = vmul.f32 %v1195, 1.442695
        %v1379 = vpow.pop %v1378
        %v1380 = vmul.f32 %v1196, 1.442695
        %v1381 = vpow.pop %v1380
        %v1382 = vmul.f32 %v1197, 1.442695
        %v1383 = vpow.pop %v1382
        %v1384 = vmul.f32 %v1198, 1.442695
        %v1385 = vpow.pop %v1384
        %v1386 = vmul.f32 %v1199, 1.442695
        %v1387 = vpow.pop %v1386
        %v1388 = vmul.f32 %v1200, 1.442695
        %v1389 = vpow.pop %v1388
        %v1390 = vmul.f32 %v1201, 1.442695
        %v1391 = vpow.pop %v1390
        %v1392 = vmul.f32 %v1202, 1.442695
        %v1393 = vpow.pop %v1392
        %v1394 = vmul.f32 %v1203, 1.442695
        %v1395 = vpow.pop %v1394
        %v1396 = vmul.f32 %v1204, 1.442695
        %v1397 = vpow.pop %v1396
        %v1398 = vmul.f32 %v1205, 1.442695
        %v1399 = vpow.pop %v1398
        %v1400 = vmul.f32 %v1206, 1.442695
        %v1401 = vpow.pop %v1400
        %v1402 = vmul.f32 %v1207, 1.442695
        %v1403 = vpow.pop %v1402
        %v1404 = vmul.f32 %v1208, 1.442695
        %v1405 = vpow.pop %v1404
        %v1406 = vmul.f32 %v1209, 1.442695
        %v1407 = vpow.pop %v1406
        %v1408 = vmul.f32 %v1210, 1.442695
        %v1409 = vpow.pop %v1408
        %v1410 = vmul.f32 %v1211, 1.442695
        %v1411 = vpow.pop %v1410
        %v1412 = vmul.f32 %v1212, 1.442695
        %v1413 = vpow.pop %v1412
        %v1414 = vmul.f32 %v1213, 1.442695
        %v1415 = vpow.pop %v1414
        %v1416 = vmul.f32 %v1214, 1.442695
        %v1417 = vpow.pop %v1416
        %v1418 = vmul.f32 %v1215, 1.442695
        %v1419 = vpow.pop %v1418
        %v1420 = vmul.f32 %v1216, 1.442695
        %v1421 = vpow.pop %v1420
        %v1422 = vmul.f32 %v1217, 1.442695
        %v1423 = vpow.pop %v1422
        %v1424 = vmul.f32 %v1218, 1.442695
        %v1425 = vpow.pop %v1424
        %v1426 = vmul.f32 %v1219, 1.442695
        %v1427 = vpow.pop %v1426
        %v1428 = vmul.f32 %v1220, 1.442695
        %v1429 = vpow.pop %v1428
        %v1430 = vmul.f32 %v1221, 1.442695
        %v1431 = vpow.pop %v1430
        %v1432 = vmul.f32 %v1222, 1.442695
        %v1433 = vpow.pop %v1432
        %v1434 = vmul.f32 %v1223, 1.442695
        %v1435 = vpow.pop %v1434
        %v1436 = vmul.f32 %v1224, 1.442695
        %v1437 = vpow.pop %v1436
        %v1438 = vmul.f32 %v1225, 1.442695
        %v1439 = vpow.pop %v1438
        %v1440 = vmul.f32 %v1226, 1.442695
        %v1441 = vpow.pop %v1440
        %v1442 = vmul.f32 %v1227, 1.442695
        %v1443 = vpow.pop %v1442
        %v1444 = vmul.f32 %v1228, 1.442695
        %v1445 = vpow.pop %v1444
        %v1446 = vmul.f32 %v1229, 1.442695
        %v1447 = vpow.pop %v1446
        %v1448 = vmul.f32 %v1230, 1.442695
        %v1449 = vpow.pop %v1448
        %v1450 = vmul.f32 %v1231, 1.442695
        %v1451 = vpow.pop %v1450
        %v1452 = vmul.f32 %v1232, 1.442695
        %v1453 = vpow.pop %v1452
        %v1454 = vmul.f32 %v1233, 1.442695
        %v1455 = vpow.pop %v1454
        %v1456 = vmul.f32 %v1234, 1.442695
        %v1457 = vpow.pop %v1456
        %v1458 = vmul.f32 %v1235, 1.442695
        %v1459 = vpow.pop %v1458
        %v1460 = vmul.f32 %v1236, 1.442695
        %v1461 = vpow.pop %v1460
        %v1462 = vmul.f32 %v1237, 1.442695
        %v1463 = vpow.pop %v1462
        %v1464 = vmul.f32 %v1238, 1.442695
        %v1465 = vpow.pop %v1464
        %v1466 = vmul.f32 %v1239, 1.442695
        %v1467 = vpow.pop %v1466
        %v1468 = vmul.f32 %v1240, 1.442695
        %v1469 = vpow.pop %v1468
        %v1470 = vmul.f32 %v1241, 1.442695
        %v1471 = vpow.pop %v1470
        %v1472 = vmul.f32 %v1242, 1.442695
        %v1473 = vpow.pop %v1472
        %v1474 = vmul.f32 %v1243, 1.442695
        %v1475 = vpow.pop %v1474
        %v1476 = vmul.f32 %v1244, 1.442695
        %v1477 = vpow.pop %v1476
        %v1478 = vmul.f32 %v1245, 1.442695
        %v1479 = vpow.pop %v1478
        %v1480 = vmul.f32 %v1246, 1.442695
        %v1481 = vpow.pop %v1480
        %v1482 = vmul.f32 %v1247, 1.442695
        %v1483 = vpow.pop %v1482
        %v1484 = vmul.f32 %v1248, 1.442695
        %v1485 = vpow.pop %v1484
        %v1486 = vmul.f32 %v1249, 1.442695
        %v1487 = vpow.pop %v1486
        %v1488 = vmul.f32 %v1250, 1.442695
        %v1489 = vpow.pop %v1488
        %v1490 = vmul.f32 %v1251, 1.442695
        %v1491 = vpow.pop %v1490
        %v1492 = vmul.f32 %v1252, 1.442695
        %v1493 = vpow.pop %v1492
        %v1494 = vmul.f32 %v1253, 1.442695
        %v1495 = vpow.pop %v1494
        %v1496 = vmul.f32 %v1254, 1.442695
        %v1497 = vpow.pop %v1496
        %v1498 = vmul.f32 %v1255, 1.442695
        %v1499 = vpow.pop %v1498
        %v1500 = vmul.f32 %v1256, 1.442695
        %v1501 = vpow.pop %v1500
        %v1502 = vmul.f32 %v1257, 1.442695
        %v1503 = vpow.pop %v1502
        %v1504 = vmul.f32 %v1258, 1.442695
        %v1505 = vpow.pop %v1504
        %v1506 = vmul.f32 %v1259, 1.442695
        %v1507 = vpow.pop %v1506
        %v1508 = vmul.f32 %v1260, 1.442695
        %v1509 = vpow.pop %v1508
        %v1510 = vmul.f32 %v1261, 1.442695
        %v1511 = vpow.pop %v1510
        %v1512 = vmul.f32 %v1262, 1.442695
        %v1513 = vpow.pop %v1512
        %v1514 = vmul.f32 %v1263, 1.442695
        %v1515 = vpow.pop %v1514
        %v1516 = vmul.f32 %v1264, 1.442695
        %v1517 = vpow.pop %v1516
        %v1518 = vmul.f32 %v1265, 1.442695
        %v1519 = vpow.pop %v1518
        %v1520 = vmul.f32 %v1266, 1.442695
        %v1521 = vpow.pop %v1520
        %v1522 = vmul.f32 %v1267, 1.442695
        %v1523 = vpow.pop %v1522
        %v1524 = vadd.f32 %v1269, %v1271
        %v1525 = vadd.f32 %v1524, %v1273
        %v1526 = vadd.f32 %v1525, %v1275
        %1527 = vadd.xlane.f32.xlu0 %v1526
        %v1528 = vpop.xlane.xlu0 %1527
        %v1529 = vadd.f32 %v1277, %v1279
        %v1530 = vadd.f32 %v1529, %v1281
        %v1531 = vadd.f32 %v1530, %v1283
        %1532 = vadd.xlane.f32.xlu0 %v1531
        %v1533 = vpop.xlane.xlu0 %1532
        %v1534 = vadd.f32 %v1285, %v1287
        %v1535 = vadd.f32 %v1534, %v1289
        %v1536 = vadd.f32 %v1535, %v1291
        %1537 = vadd.xlane.f32.xlu0 %v1536
        %v1538 = vpop.xlane.xlu0 %1537
        %v1539 = vadd.f32 %v1293, %v1295
        %v1540 = vadd.f32 %v1539, %v1297
        %v1541 = vadd.f32 %v1540, %v1299
        %1542 = vadd.xlane.f32.xlu0 %v1541
        %v1543 = vpop.xlane.xlu0 %1542
        %v1544 = vadd.f32 %v1301, %v1303
        %v1545 = vadd.f32 %v1544, %v1305
        %v1546 = vadd.f32 %v1545, %v1307
        %1547 = vadd.xlane.f32.xlu0 %v1546
        %v1548 = vpop.xlane.xlu0 %1547
        %v1549 = vadd.f32 %v1309, %v1311
        %v1550 = vadd.f32 %v1549, %v1313
        %v1551 = vadd.f32 %v1550, %v1315
        %1552 = vadd.xlane.f32.xlu0 %v1551
        %v1553 = vpop.xlane.xlu0 %1552
        %v1554 = vadd.f32 %v1317, %v1319
        %v1555 = vadd.f32 %v1554, %v1321
        %v1556 = vadd.f32 %v1555, %v1323
        %1557 = vadd.xlane.f32.xlu0 %v1556
        %v1558 = vpop.xlane.xlu0 %1557
        %v1559 = vadd.f32 %v1325, %v1327
        %v1560 = vadd.f32 %v1559, %v1329
        %v1561 = vadd.f32 %v1560, %v1331
        %1562 = vadd.xlane.f32.xlu0 %v1561
        %v1563 = vpop.xlane.xlu0 %1562
        %v1564 = vadd.f32 %v1333, %v1335
        %v1565 = vadd.f32 %v1564, %v1337
        %v1566 = vadd.f32 %v1565, %v1339
        %1567 = vadd.xlane.f32.xlu0 %v1566
        %v1568 = vpop.xlane.xlu0 %1567
        %v1569 = vadd.f32 %v1341, %v1343
        %v1570 = vadd.f32 %v1569, %v1345
        %v1571 = vadd.f32 %v1570, %v1347
        %1572 = vadd.xlane.f32.xlu0 %v1571
        %v1573 = vpop.xlane.xlu0 %1572
        %v1574 = vadd.f32 %v1349, %v1351
        %v1575 = vadd.f32 %v1574, %v1353
        %v1576 = vadd.f32 %v1575, %v1355
        %1577 = vadd.xlane.f32.xlu0 %v1576
        %v1578 = vpop.xlane.xlu0 %1577
        %v1579 = vadd.f32 %v1357, %v1359
        %v1580 = vadd.f32 %v1579, %v1361
        %v1581 = vadd.f32 %v1580, %v1363
        %1582 = vadd.xlane.f32.xlu0 %v1581
        %v1583 = vpop.xlane.xlu0 %1582
        %v1584 = vadd.f32 %v1365, %v1367
        %v1585 = vadd.f32 %v1584, %v1369
        %v1586 = vadd.f32 %v1585, %v1371
        %1587 = vadd.xlane.f32.xlu0 %v1586
        %v1588 = vpop.xlane.xlu0 %1587
        %v1589 = vadd.f32 %v1373, %v1375
        %v1590 = vadd.f32 %v1589, %v1377
        %v1591 = vadd.f32 %v1590, %v1379
        %1592 = vadd.xlane.f32.xlu0 %v1591
        %v1593 = vpop.xlane.xlu0 %1592
        %v1594 = vadd.f32 %v1381, %v1383
        %v1595 = vadd.f32 %v1594, %v1385
        %v1596 = vadd.f32 %v1595, %v1387
        %1597 = vadd.xlane.f32.xlu0 %v1596
        %v1598 = vpop.xlane.xlu0 %1597
        %v1599 = vadd.f32 %v1389, %v1391
        %v1600 = vadd.f32 %v1599, %v1393
        %v1601 = vadd.f32 %v1600, %v1395
        %1602 = vadd.xlane.f32.xlu0 %v1601
        %v1603 = vpop.xlane.xlu0 %1602
        %v1604 = vadd.f32 %v1397, %v1399
        %v1605 = vadd.f32 %v1604, %v1401
        %v1606 = vadd.f32 %v1605, %v1403
        %1607 = vadd.xlane.f32.xlu0 %v1606
        %v1608 = vpop.xlane.xlu0 %1607
        %v1609 = vadd.f32 %v1405, %v1407
        %v1610 = vadd.f32 %v1609, %v1409
        %v1611 = vadd.f32 %v1610, %v1411
        %1612 = vadd.xlane.f32.xlu0 %v1611
        %v1613 = vpop.xlane.xlu0 %1612
        %v1614 = vadd.f32 %v1413, %v1415
        %v1615 = vadd.f32 %v1614, %v1417
        %v1616 = vadd.f32 %v1615, %v1419
        %1617 = vadd.xlane.f32.xlu0 %v1616
        %v1618 = vpop.xlane.xlu0 %1617
        %v1619 = vadd.f32 %v1421, %v1423
        %v1620 = vadd.f32 %v1619, %v1425
        %v1621 = vadd.f32 %v1620, %v1427
        %1622 = vadd.xlane.f32.xlu0 %v1621
        %v1623 = vpop.xlane.xlu0 %1622
        %v1624 = vadd.f32 %v1429, %v1431
        %v1625 = vadd.f32 %v1624, %v1433
        %v1626 = vadd.f32 %v1625, %v1435
        %1627 = vadd.xlane.f32.xlu0 %v1626
        %v1628 = vpop.xlane.xlu0 %1627
        %v1629 = vadd.f32 %v1437, %v1439
        %v1630 = vadd.f32 %v1629, %v1441
        %v1631 = vadd.f32 %v1630, %v1443
        %1632 = vadd.xlane.f32.xlu0 %v1631
        %v1633 = vpop.xlane.xlu0 %1632
        %v1634 = vadd.f32 %v1445, %v1447
        %v1635 = vadd.f32 %v1634, %v1449
        %v1636 = vadd.f32 %v1635, %v1451
        %1637 = vadd.xlane.f32.xlu0 %v1636
        %v1638 = vpop.xlane.xlu0 %1637
        %v1639 = vadd.f32 %v1453, %v1455
        %v1640 = vadd.f32 %v1639, %v1457
        %v1641 = vadd.f32 %v1640, %v1459
        %1642 = vadd.xlane.f32.xlu0 %v1641
        %v1643 = vpop.xlane.xlu0 %1642
        %v1644 = vadd.f32 %v1461, %v1463
        %v1645 = vadd.f32 %v1644, %v1465
        %v1646 = vadd.f32 %v1645, %v1467
        %1647 = vadd.xlane.f32.xlu0 %v1646
        %v1648 = vpop.xlane.xlu0 %1647
        %v1649 = vadd.f32 %v1469, %v1471
        %v1650 = vadd.f32 %v1649, %v1473
        %v1651 = vadd.f32 %v1650, %v1475
        %1652 = vadd.xlane.f32.xlu0 %v1651
        %v1653 = vpop.xlane.xlu0 %1652
        %v1654 = vadd.f32 %v1477, %v1479
        %v1655 = vadd.f32 %v1654, %v1481
        %v1656 = vadd.f32 %v1655, %v1483
        %1657 = vadd.xlane.f32.xlu0 %v1656
        %v1658 = vpop.xlane.xlu0 %1657
        %v1659 = vadd.f32 %v1485, %v1487
        %v1660 = vadd.f32 %v1659, %v1489
        %v1661 = vadd.f32 %v1660, %v1491
        %1662 = vadd.xlane.f32.xlu0 %v1661
        %v1663 = vpop.xlane.xlu0 %1662
        %v1664 = vadd.f32 %v1493, %v1495
        %v1665 = vadd.f32 %v1664, %v1497
        %v1666 = vadd.f32 %v1665, %v1499
        %1667 = vadd.xlane.f32.xlu0 %v1666
        %v1668 = vpop.xlane.xlu0 %1667
        %v1669 = vadd.f32 %v1501, %v1503
        %v1670 = vadd.f32 %v1669, %v1505
        %v1671 = vadd.f32 %v1670, %v1507
        %1672 = vadd.xlane.f32.xlu0 %v1671
        %v1673 = vpop.xlane.xlu0 %1672
        %v1674 = vadd.f32 %v1509, %v1511
        %v1675 = vadd.f32 %v1674, %v1513
        %v1676 = vadd.f32 %v1675, %v1515
        %1677 = vadd.xlane.f32.xlu0 %v1676
        %v1678 = vpop.xlane.xlu0 %1677
        %v1679 = vadd.f32 %v1517, %v1519
        %v1680 = vadd.f32 %v1679, %v1521
        %v1681 = vadd.f32 %v1680, %v1523
        %1682 = vadd.xlane.f32.xlu0 %v1681
        %v1683 = vpop.xlane.xlu0 %1682
        %v1684 = vpack.c.bf16 %v1277, %v1269
        %v1685 = vpack.c.bf16 %v1279, %v1271
        %v1686 = vpack.c.bf16 %v1281, %v1273
        %v1687 = vpack.c.bf16 %v1283, %v1275
        %v1688 = vpack.c.bf16 %v1293, %v1285
        %v1689 = vpack.c.bf16 %v1295, %v1287
        %v1690 = vpack.c.bf16 %v1297, %v1289
        %v1691 = vpack.c.bf16 %v1299, %v1291
        %v1692 = vpack.c.bf16 %v1309, %v1301
        %v1693 = vpack.c.bf16 %v1311, %v1303
        %v1694 = vpack.c.bf16 %v1313, %v1305
        %v1695 = vpack.c.bf16 %v1315, %v1307
        %v1696 = vpack.c.bf16 %v1325, %v1317
        %v1697 = vpack.c.bf16 %v1327, %v1319
        %v1698 = vpack.c.bf16 %v1329, %v1321
        %v1699 = vpack.c.bf16 %v1331, %v1323
        %v1700 = vpack.c.bf16 %v1341, %v1333
        %v1701 = vpack.c.bf16 %v1343, %v1335
        %v1702 = vpack.c.bf16 %v1345, %v1337
        %v1703 = vpack.c.bf16 %v1347, %v1339
        %v1704 = vpack.c.bf16 %v1357, %v1349
        %v1705 = vpack.c.bf16 %v1359, %v1351
        %v1706 = vpack.c.bf16 %v1361, %v1353
        %v1707 = vpack.c.bf16 %v1363, %v1355
        %v1708 = vpack.c.bf16 %v1373, %v1365
        %v1709 = vpack.c.bf16 %v1375, %v1367
        %v1710 = vpack.c.bf16 %v1377, %v1369
        %v1711 = vpack.c.bf16 %v1379, %v1371
        %v1712 = vpack.c.bf16 %v1389, %v1381
        %v1713 = vpack.c.bf16 %v1391, %v1383
        %v1714 = vpack.c.bf16 %v1393, %v1385
        %v1715 = vpack.c.bf16 %v1395, %v1387
        %v1716 = vpack.c.bf16 %v1405, %v1397
        %v1717 = vpack.c.bf16 %v1407, %v1399
        %v1718 = vpack.c.bf16 %v1409, %v1401
        %v1719 = vpack.c.bf16 %v1411, %v1403
        %v1720 = vpack.c.bf16 %v1421, %v1413
        %v1721 = vpack.c.bf16 %v1423, %v1415
        %v1722 = vpack.c.bf16 %v1425, %v1417
        %v1723 = vpack.c.bf16 %v1427, %v1419
        %v1724 = vpack.c.bf16 %v1437, %v1429
        %v1725 = vpack.c.bf16 %v1439, %v1431
        %v1726 = vpack.c.bf16 %v1441, %v1433
        %v1727 = vpack.c.bf16 %v1443, %v1435
        %v1728 = vpack.c.bf16 %v1453, %v1445
        %v1729 = vpack.c.bf16 %v1455, %v1447
        %v1730 = vpack.c.bf16 %v1457, %v1449
        %v1731 = vpack.c.bf16 %v1459, %v1451
        %v1732 = vpack.c.bf16 %v1469, %v1461
        %v1733 = vpack.c.bf16 %v1471, %v1463
        %v1734 = vpack.c.bf16 %v1473, %v1465
        %v1735 = vpack.c.bf16 %v1475, %v1467
        %v1736 = vpack.c.bf16 %v1485, %v1477
        %v1737 = vpack.c.bf16 %v1487, %v1479
        %v1738 = vpack.c.bf16 %v1489, %v1481
        %v1739 = vpack.c.bf16 %v1491, %v1483
        %v1740 = vpack.c.bf16 %v1501, %v1493
        %v1741 = vpack.c.bf16 %v1503, %v1495
        %v1742 = vpack.c.bf16 %v1505, %v1497
        %v1743 = vpack.c.bf16 %v1507, %v1499
        %v1744 = vpack.c.bf16 %v1517, %v1509
        %v1745 = vpack.c.bf16 %v1519, %v1511
        %v1746 = vpack.c.bf16 %v1521, %v1513
        %v1747 = vpack.c.bf16 %v1523, %v1515
        %v1752 = vunpack.c.l.b16 %v517
        %v1753 = vunpack.c.h.b16 %v517
        %v1754 = vunpack.c.l.b16 %v518
        %v1755 = vunpack.c.h.b16 %v518
        %v1756 = vunpack.c.l.b16 %v519
        %v1757 = vunpack.c.h.b16 %v519
        %v1758 = vunpack.c.l.b16 %v520
        %v1759 = vunpack.c.h.b16 %v520
        %v1760 = vpack.c.b16 %v1756, %v1752
        %v1761 = vpack.c.b16 %v1757, %v1753
        %v1762 = vpack.c.b16 %v1758, %v1754
        %v1763 = vpack.c.b16 %v1759, %v1755
        %1768 = vmatpush.bf16.xpose.msra.mxu0 %v1712
        %1769 = vmatpush.bf16.xpose.msra.mxu0 %v1708
        %1770 = vmatpush.bf16.xpose.msra.mxu0 %v1704
        %1771 = vmatpush.bf16.xpose.msra.mxu0 %v1700
        %1772 = vmatpush.bf16.xpose.msra.mxu0 %v1696
        %1773 = vmatpush.bf16.xpose.msra.mxu0 %v1692
        %1774 = vmatpush.bf16.xpose.msra.mxu0 %v1688
        %1775 = vmatpush.bf16.xpose.msra.mxu0 %v1684
        %1776 = vmatmul.bf16.gmra.mxu0 %v1760
        %v1777 = vpop.f32.mrf.mxu0
        %v1778 = vadd.f32 0.0, %v1777
        %v1779 = vpop.f32.mrf.mxu0
        %v1780 = vadd.f32 0.0, %v1779
        %1781 = vdwg.mxu0
        %1782 = vmatpush.bf16.xpose.msra.mxu0 %v1713
        %1783 = vmatpush.bf16.xpose.msra.mxu0 %v1709
        %1784 = vmatpush.bf16.xpose.msra.mxu0 %v1705
        %1785 = vmatpush.bf16.xpose.msra.mxu0 %v1701
        %1786 = vmatpush.bf16.xpose.msra.mxu0 %v1697
        %1787 = vmatpush.bf16.xpose.msra.mxu0 %v1693
        %1788 = vmatpush.bf16.xpose.msra.mxu0 %v1689
        %1789 = vmatpush.bf16.xpose.msra.mxu0 %v1685
        %1790 = vmatmul.bf16.gmra.mxu0 %v1761
        %v1791 = vpop.f32.mrf.mxu0
        %v1792 = vadd.f32 %v1778, %v1791
        %v1793 = vpop.f32.mrf.mxu0
        %v1794 = vadd.f32 %v1780, %v1793
        %1795 = vdwg.mxu0
        %1796 = vmatpush.bf16.xpose.msra.mxu0 %v1714
        %1797 = vmatpush.bf16.xpose.msra.mxu0 %v1710
        %1798 = vmatpush.bf16.xpose.msra.mxu0 %v1706
        %1799 = vmatpush.bf16.xpose.msra.mxu0 %v1702
        %1800 = vmatpush.bf16.xpose.msra.mxu0 %v1698
        %1801 = vmatpush.bf16.xpose.msra.mxu0 %v1694
        %1802 = vmatpush.bf16.xpose.msra.mxu0 %v1690
        %1803 = vmatpush.bf16.xpose.msra.mxu0 %v1686
        %1804 = vmatmul.bf16.gmra.mxu0 %v1762
        %v1805 = vpop.f32.mrf.mxu0
        %v1806 = vadd.f32 %v1792, %v1805
        %v1807 = vpop.f32.mrf.mxu0
        %v1808 = vadd.f32 %v1794, %v1807
        %1809 = vdwg.mxu0
        %1810 = vmatpush.bf16.xpose.msra.mxu0 %v1715
        %1811 = vmatpush.bf16.xpose.msra.mxu0 %v1711
        %1812 = vmatpush.bf16.xpose.msra.mxu0 %v1707
        %1813 = vmatpush.bf16.xpose.msra.mxu0 %v1703
        %1814 = vmatpush.bf16.xpose.msra.mxu0 %v1699
        %1815 = vmatpush.bf16.xpose.msra.mxu0 %v1695
        %1816 = vmatpush.bf16.xpose.msra.mxu0 %v1691
        %1817 = vmatpush.bf16.xpose.msra.mxu0 %v1687
        %1818 = vmatmul.bf16.gmra.mxu0 %v1763
        %v1819 = vpop.f32.mrf.mxu0
        %v1820 = vadd.f32 %v1806, %v1819
        %v1821 = vpop.f32.mrf.mxu0
        %v1822 = vadd.f32 %v1808, %v1821
        %1823 = vdwg.mxu0
        %1824 = vmatpush.bf16.xpose.msra.mxu0 %v1744
        %1825 = vmatpush.bf16.xpose.msra.mxu0 %v1740
        %1826 = vmatpush.bf16.xpose.msra.mxu0 %v1736
        %1827 = vmatpush.bf16.xpose.msra.mxu0 %v1732
        %1828 = vmatpush.bf16.xpose.msra.mxu0 %v1728
        %1829 = vmatpush.bf16.xpose.msra.mxu0 %v1724
        %1830 = vmatpush.bf16.xpose.msra.mxu0 %v1720
        %1831 = vmatpush.bf16.xpose.msra.mxu0 %v1716
        %1832 = vmatmul.bf16.gmra.mxu0 %v1760
        %v1833 = vpop.f32.mrf.mxu0
        %v1834 = vadd.f32 0.0, %v1833
        %v1835 = vpop.f32.mrf.mxu0
        %v1836 = vadd.f32 0.0, %v1835
        %1837 = vdwg.mxu0
        %1838 = vmatpush.bf16.xpose.msra.mxu0 %v1745
        %1839 = vmatpush.bf16.xpose.msra.mxu0 %v1741
        %1840 = vmatpush.bf16.xpose.msra.mxu0 %v1737
        %1841 = vmatpush.bf16.xpose.msra.mxu0 %v1733
        %1842 = vmatpush.bf16.xpose.msra.mxu0 %v1729
        %1843 = vmatpush.bf16.xpose.msra.mxu0 %v1725
        %1844 = vmatpush.bf16.xpose.msra.mxu0 %v1721
        %1845 = vmatpush.bf16.xpose.msra.mxu0 %v1717
        %1846 = vmatmul.bf16.gmra.mxu0 %v1761
        %v1847 = vpop.f32.mrf.mxu0
        %v1848 = vadd.f32 %v1834, %v1847
        %v1849 = vpop.f32.mrf.mxu0
        %v1850 = vadd.f32 %v1836, %v1849
        %1851 = vdwg.mxu0
        %1852 = vmatpush.bf16.xpose.msra.mxu0 %v1746
        %1853 = vmatpush.bf16.xpose.msra.mxu0 %v1742
        %1854 = vmatpush.bf16.xpose.msra.mxu0 %v1738
        %1855 = vmatpush.bf16.xpose.msra.mxu0 %v1734
        %1856 = vmatpush.bf16.xpose.msra.mxu0 %v1730
        %1857 = vmatpush.bf16.xpose.msra.mxu0 %v1726
        %1858 = vmatpush.bf16.xpose.msra.mxu0 %v1722
        %1859 = vmatpush.bf16.xpose.msra.mxu0 %v1718
        %1860 = vmatmul.bf16.gmra.mxu0 %v1762
        %v1861 = vpop.f32.mrf.mxu0
        %v1862 = vadd.f32 %v1848, %v1861
        %v1863 = vpop.f32.mrf.mxu0
        %v1864 = vadd.f32 %v1850, %v1863
        %1865 = vdwg.mxu0
        %1866 = vmatpush.bf16.xpose.msra.mxu0 %v1747
        %1867 = vmatpush.bf16.xpose.msra.mxu0 %v1743
        %1868 = vmatpush.bf16.xpose.msra.mxu0 %v1739
        %1869 = vmatpush.bf16.xpose.msra.mxu0 %v1735
        %1870 = vmatpush.bf16.xpose.msra.mxu0 %v1731
        %1871 = vmatpush.bf16.xpose.msra.mxu0 %v1727
        %1872 = vmatpush.bf16.xpose.msra.mxu0 %v1723
        %1873 = vmatpush.bf16.xpose.msra.mxu0 %v1719
        %1874 = vmatmul.bf16.gmra.mxu0 %v1763
        %v1875 = vpop.f32.mrf.mxu0
        %v1876 = vadd.f32 %v1862, %v1875
        %v1877 = vpop.f32.mrf.mxu0
        %v1878 = vadd.f32 %v1864, %v1877
        %1879 = vdwg.mxu0
        %s1880 = sld [smem:[#allocation3]]
        %v1881 = vrcp.pop %v1528
        %v1882 = vrcp.pop %v1533
        %v1883 = vrcp.pop %v1538
        %v1884 = vrcp.pop %v1543
        %v1885 = vrcp.pop %v1548
        %v1886 = vrcp.pop %v1553
        %v1887 = vrcp.pop %v1558
        %v1888 = vrcp.pop %v1563
        %v1889 = vrcp.pop %v1568
        %v1890 = vrcp.pop %v1573
        %v1891 = vrcp.pop %v1578
        %v1892 = vrcp.pop %v1583
        %v1893 = vrcp.pop %v1588
        %v1894 = vrcp.pop %v1593
        %v1895 = vrcp.pop %v1598
        %v1896 = vrcp.pop %v1603
        %v1897 = vrcp.pop %v1608
        %v1898 = vrcp.pop %v1613
        %v1899 = vrcp.pop %v1618
        %v1900 = vrcp.pop %v1623
        %v1901 = vrcp.pop %v1628
        %v1902 = vrcp.pop %v1633
        %v1903 = vrcp.pop %v1638
        %v1904 = vrcp.pop %v1643
        %v1905 = vrcp.pop %v1648
        %v1906 = vrcp.pop %v1653
        %v1907 = vrcp.pop %v1658
        %v1908 = vrcp.pop %v1663
        %v1909 = vrcp.pop %v1668
        %v1910 = vrcp.pop %v1673
        %v1911 = vrcp.pop %v1678
        %v1912 = vrcp.pop %v1683
        %v1913 = vstv %s1880
        %v1914 = vmul.f32 %v1913, %v1881
        %v1915 = vmul.f32 %v1913, %v1882
        %v1916 = vmul.f32 %v1913, %v1883
        %v1917 = vmul.f32 %v1913, %v1884
        %v1918 = vmul.f32 %v1913, %v1885
        %v1919 = vmul.f32 %v1913, %v1886
        %v1920 = vmul.f32 %v1913, %v1887
        %v1921 = vmul.f32 %v1913, %v1888
        %v1922 = vmul.f32 %v1913, %v1889
        %v1923 = vmul.f32 %v1913, %v1890
        %v1924 = vmul.f32 %v1913, %v1891
        %v1925 = vmul.f32 %v1913, %v1892
        %v1926 = vmul.f32 %v1913, %v1893
        %v1927 = vmul.f32 %v1913, %v1894
        %v1928 = vmul.f32 %v1913, %v1895
        %v1929 = vmul.f32 %v1913, %v1896
        %v1930 = vmul.f32 %v1913, %v1897
        %v1931 = vmul.f32 %v1913, %v1898
        %v1932 = vmul.f32 %v1913, %v1899
        %v1933 = vmul.f32 %v1913, %v1900
        %v1934 = vmul.f32 %v1913, %v1901
        %v1935 = vmul.f32 %v1913, %v1902
        %v1936 = vmul.f32 %v1913, %v1903
        %v1937 = vmul.f32 %v1913, %v1904
        %v1938 = vmul.f32 %v1913, %v1905
        %v1939 = vmul.f32 %v1913, %v1906
        %v1940 = vmul.f32 %v1913, %v1907
        %v1941 = vmul.f32 %v1913, %v1908
        %v1942 = vmul.f32 %v1913, %v1909
        %v1943 = vmul.f32 %v1913, %v1910
        %v1944 = vmul.f32 %v1913, %v1911
        %v1945 = vmul.f32 %v1913, %v1912
        %s1946 = smul.addr %s507, 8
        %s1947 = scalar_lea.vmem %s207, %s1946 [#allocation4]
        %v1948 = vld [vmem:[%s1947] sm:$0xff]
        %v1949 = vld [vmem:[%s1947 + $0x8] sm:$0xff]
        %v1950 = vld [vmem:[%s1947 + $0x20] sm:$0xff]
        %v1951 = vld [vmem:[%s1947 + $0x28] sm:$0xff]
        %v1984 = vlaneseq
        %v1985 = vand.u32 %v1984, 127
        %v1986 = vperm.slane %v1914, %v1985
        %v1987 = vadd.s32 %v1985, 4294967288
        %v1988 = vperm.slane %v1915, %v1987
        %vm1989 = vcmask 130112
        %v1990 = vsel %vm1989, %v1988, %v1986
        %v1991 = vadd.s32 %v1985, 4294967280
        %v1992 = vperm.slane %v1916, %v1991
        %vm1993 = vcmask 195712
        %v1994 = vsel %vm1993, %v1992, %v1990
        %v1995 = vadd.s32 %v1985, 4294967272
        %v1996 = vperm.slane %v1917, %v1995
        %vm1997 = vcmask 261312
        %v1998 = vsel %vm1997, %v1996, %v1994
        %v1999 = vadd.s32 %v1985, 4294967264
        %v2000 = vperm.slane %v1918, %v1999
        %vm2001 = vcmask 326912
        %v2002 = vsel %vm2001, %v2000, %v1998
        %v2003 = vadd.s32 %v1985, 4294967256
        %v2004 = vperm.slane %v1919, %v2003
        %vm2005 = vcmask 392512
        %v2006 = vsel %vm2005, %v2004, %v2002
        %v2007 = vadd.s32 %v1985, 4294967248
        %v2008 = vperm.slane %v1920, %v2007
        %vm2009 = vcmask 458112
        %v2010 = vsel %vm2009, %v2008, %v2006
        %v2011 = vadd.s32 %v1985, 4294967240
        %v2012 = vperm.slane %v1921, %v2011
        %vm2013 = vcmask 523712
        %v2014 = vsel %vm2013, %v2012, %v2010
        %v2015 = vadd.s32 %v1985, 4294967232
        %v2016 = vperm.slane %v1922, %v2015
        %vm2017 = vcmask 589312
        %v2018 = vsel %vm2017, %v2016, %v2014
        %v2019 = vadd.s32 %v1985, 4294967224
        %v2020 = vperm.slane %v1923, %v2019
        %vm2021 = vcmask 654912
        %v2022 = vsel %vm2021, %v2020, %v2018
        %v2023 = vadd.s32 %v1985, 4294967216
        %v2024 = vperm.slane %v1924, %v2023
        %vm2025 = vcmask 720512
        %v2026 = vsel %vm2025, %v2024, %v2022
        %v2027 = vadd.s32 %v1985, 4294967208
        %v2028 = vperm.slane %v1925, %v2027
        %vm2029 = vcmask 786112
        %v2030 = vsel %vm2029, %v2028, %v2026
        %v2031 = vadd.s32 %v1985, 4294967200
        %v2032 = vperm.slane %v1926, %v2031
        %vm2033 = vcmask 851712
        %v2034 = vsel %vm2033, %v2032, %v2030
        %v2035 = vadd.s32 %v1985, 4294967192
        %v2036 = vperm.slane %v1927, %v2035
        %vm2037 = vcmask 917312
        %v2038 = vsel %vm2037, %v2036, %v2034
        %v2039 = vadd.s32 %v1985, 4294967184
        %v2040 = vperm.slane %v1928, %v2039
        %vm2041 = vcmask 982912
        %v2042 = vsel %vm2041, %v2040, %v2038
        %v2043 = vadd.s32 %v1985, 4294967176
        %v2044 = vperm.slane %v1929, %v2043
        %vm2045 = vcmask 1048512
        %v2046 = vsel %vm2045, %v2044, %v2042
        %v2047 = vperm.slane %v1930, %v1985
        %v2048 = vperm.slane %v1931, %v1987
        %v2049 = vsel %vm1989, %v2048, %v2047
        %v2050 = vperm.slane %v1932, %v1991
        %v2051 = vsel %vm1993, %v2050, %v2049
        %v2052 = vperm.slane %v1933, %v1995
        %v2053 = vsel %vm1997, %v2052, %v2051
        %v2054 = vperm.slane %v1934, %v1999
        %v2055 = vsel %vm2001, %v2054, %v2053
        %v2056 = vperm.slane %v1935, %v2003
        %v2057 = vsel %vm2005, %v2056, %v2055
        %v2058 = vperm.slane %v1936, %v2007
        %v2059 = vsel %vm2009, %v2058, %v2057
        %v2060 = vperm.slane %v1937, %v2011
        %v2061 = vsel %vm2013, %v2060, %v2059
        %v2062 = vperm.slane %v1938, %v2015
        %v2063 = vsel %vm2017, %v2062, %v2061
        %v2064 = vperm.slane %v1939, %v2019
        %v2065 = vsel %vm2021, %v2064, %v2063
        %v2066 = vperm.slane %v1940, %v2023
        %v2067 = vsel %vm2025, %v2066, %v2065
        %v2068 = vperm.slane %v1941, %v2027
        %v2069 = vsel %vm2029, %v2068, %v2067
        %v2070 = vperm.slane %v1942, %v2031
        %v2071 = vsel %vm2033, %v2070, %v2069
        %v2072 = vperm.slane %v1943, %v2035
        %v2073 = vsel %vm2037, %v2072, %v2071
        %v2074 = vperm.slane %v1944, %v2039
        %v2075 = vsel %vm2041, %v2074, %v2073
        %v2076 = vperm.slane %v1945, %v2043
        %v2077 = vsel %vm2045, %v2076, %v2075
        %vm2078 = vcmask 1042434
        %v2079 = vsel %vm2078, %v2046, %v2046
        %vm2080 = vcmask 1043459
        %v2081 = vsel %vm2080, %v2046, %v2079
        %vm2082 = vcmask 1044484
        %v2083 = vsel %vm2082, %v2046, %v2081
        %vm2084 = vcmask 1045509
        %v2085 = vsel %vm2084, %v2046, %v2083
        %vm2086 = vcmask 1046534
        %v2087 = vsel %vm2086, %v2046, %v2085
        %vm2088 = vcmask 1047559
        %v2089 = vsel %vm2088, %v2046, %v2087
        %v2090 = vsel %vm2078, %v2077, %v2077
        %v2091 = vsel %vm2080, %v2077, %v2090
        %v2092 = vsel %vm2082, %v2077, %v2091
        %v2093 = vsel %vm2084, %v2077, %v2092
        %v2094 = vsel %vm2086, %v2077, %v2093
        %v2095 = vsel %vm2088, %v2077, %v2094
        %v2098 = vmul.f32 %v1820, %v2089
        %v2099 = vmul.f32 %v1876, %v2095
        %v2100 = vmul.f32 %v1822, %v2089
        %v2101 = vmul.f32 %v1878, %v2095
        %v2102 = vadd.f32 %v2098, %v1948
        %v2103 = vadd.f32 %v2099, %v1949
        %v2104 = vadd.f32 %v2100, %v1950
        %v2105 = vadd.f32 %v2101, %v1951
        %v2106 = vpack.c.bf16 %v2103, %v2102
        %v2107 = vpack.c.bf16 %v2105, %v2104
        %2108 = vst [vmem:[%s232] sm:$0xff] %v2106
        %2109 = vst [vmem:[%s232 + $0x8] sm:$0xff] %v2107
        %s2110 = sand.u32 %s133, 1
        %s2111 = scalar_lea.sflag [#allocation6], %s2110
        %s2112 = sand.u32 %s133, 1
        %s2113 = smul.addr %s2112, 16
        %s2114 = scalar_lea.vmem [#allocation7], %s2113
        // Predicated region
        $region45: #{tpu_custom_call.1} parent=35 // pred_check
          %p2115 = pneg %p143
        $region46: #{tpu_custom_call.1} parent=35 // pred_check_branch
          %2117 = sbr.rel (%p2115) target = $region48
        $region47: #{tpu_custom_call.1} parent=35 // pred_region
          %s2118 = smul.u32 2, %s27
          %2120 = vsyncadd %s2111, 0
          %s2121 = smul.addr %s26, 8
          %s2122 = sadd.s32 %s2118, %s2121
          %s2123 = smul.addr %s2122, 4
          %s2124 = scalar_lea.hbm %s4, %s2123
          %s2125 = sshll.u32 %s2114, 4
          %s2126 = int_to_ptr.vmem [resolvable:$true] %s2125
          %s2127 = sshll.u32 %s2124, 4
          %s2128 = int_to_ptr.hbm [resolvable:$true] %s2127
          %2133 = dma.vmem_to_hbm [thread:$0]  %s2126, 256, %s2128, %s2111, 128, 256, 8
        $region48: #{tpu_custom_call.1} parent=35 // pred_fallthru
          _
      $region36: #{tpu_custom_call.1} parent=5 // pred_fallthru
        _
      %p2134 = scmp.le.s32.totalorder 2, %s17
      // Predicated region
      $region49: #{tpu_custom_call.1} parent=5 // pred_check
        %p2135 = pneg %p2134
      $region50: #{tpu_custom_call.1} parent=5 // pred_check_branch
        %2137 = sbr.rel (%p2135) target = $region52
      $region51: #{tpu_custom_call.1} parent=5 // pred_region
        %s2138 = ssub.s32 %s17, 2
        // Predicated region
        $region53: #{tpu_custom_call.1} parent=51 // pred_check
          %p2139 = pneg %p149
        $region54: #{tpu_custom_call.1} parent=51 // pred_check_branch
          %2141 = sbr.rel (%p2139) target = $region56
        $region55: #{tpu_custom_call.1} parent=51 // pred_region
          %s2142 = sand.u32 %s134, 1
          %s2143 = scalar_lea.sflag [#allocation6], %s2142
          %s2144 = sand.u32 %s134, 1
          %s2145 = smul.addr %s2144, 16
          %s2146 = scalar_lea.vmem [#allocation7], %s2145
          %2148 = dma.done %s2143, 256
        $region56: #{tpu_custom_call.1} parent=51 // pred_fallthru
          _
      $region52: #{tpu_custom_call.1} parent=5 // pred_fallthru
        _
    $region6: #{tpu_custom_call.1} parent=1 // loop_footer
      %s21 = sadd.s32 1, %s17
    $region7: #{tpu_custom_call.1} parent=1 // loop_footer_branch
      %16 = sbr.rel target = $region3
    $region8: #{tpu_custom_call.1} parent=1 // loop_exit
      _
    %2149 = vsyncpa [#allocation5], 1
    %s2150 = scalar_lea.sflag [#allocation5], 1
    %2151 = vsyncpa %s2150, 1
    %2152 = vsyncpa [#allocation6], 1
    %s2153 = scalar_lea.sflag [#allocation6], 1
    %2154 = vsyncpa %s2153, 1

</llo_original>
